<compile_context>
chip_gen: v5e
topology: v5e:2x2
jax: 0.10.0
libtpu: 0.0.40
codegen_flags: <defaults>
</compile_context>

<pallas_src>
import math
from functools import partial

import jax
import jax.numpy as jnp
from jax import lax
from jax.experimental import pallas as pl
from jax.experimental.pallas import tpu as pltpu


# --------------------------- exact GELU helper --------------------------------

def _erf_f32(z):
    # TODO(synk): Mosaic has no guaranteed erf primitive lowering; exact-GELU's
    # erf uses the Abramowitz-Stegun 7.1.26 polynomial (max abs err ~1.5e-7).
    p = 0.3275911
    a1, a2, a3, a4, a5 = (0.254829592, -0.284496736, 1.421413741,
                          -1.453152027, 1.061405429)
    za = jnp.abs(z)
    t = 1.0 / (1.0 + p * za)
    poly = ((((a5 * t + a4) * t + a3) * t + a2) * t + a1) * t
    y = 1.0 - poly * jnp.exp(-za * za)
    return jnp.where(z >= 0, y, -y)


def _gelu_exact(x):
    return 0.5 * x * (1.0 + _erf_f32(x * 0.7071067811865476))


# ------------------------------ fused kernel ----------------------------------

def _performer_kernel(x_ref,
                      g1_ref, be1_ref, wqk_ref, bqk_ref, wv_ref, bv_ref,
                      wo_ref, bo_ref, projbd_ref,
                      g2_ref, be2_ref, w1_ref, b1_ref, w2_ref, b2_ref,
                      d2m_ref, m2d_ref, m2m_ref,
                      xout_ref, aw_ref, *,
                      depth, heads, dim_head, nb_features, ln_eps, eps):
    H, Dh, M = heads, dim_head, nb_features
    inner = H * Dh
    c = float(Dh) ** -0.25                       # data_normalizer
    ratio = float(M) ** -0.5

    x = x_ref[0]                                 # (N, D) f32
    N = x.shape[0]

    d2m = d2m_ref[...]                           # (inner, H*M) block-ones
    m2d = m2d_ref[...]                           # (H*M, inner) block-ones
    m2m = m2m_ref[...]                           # (H*M, H*M)   block-ones

    def layer_norm(z, g, b):
        mu = jnp.mean(z, axis=-1, keepdims=True)
        var = jnp.mean((z - mu) ** 2, axis=-1, keepdims=True)
        return (z - mu) * lax.rsqrt(var + ln_eps) * g + b

    def feature_maps(xin, d, with_v):
        # PreLayerNorm (f32 statistics), then fused Q|K projection (bf16 MXU).
        xl = layer_norm(xin, g1_ref[d], be1_ref[d])
        xlb = xl.astype(jnp.bfloat16)
        qk = jnp.dot(xlb, wqk_ref[d],
                     preferred_element_type=jnp.float32) + bqk_ref[d]   # (N, 2*inner)
        # stack query rows on top of key rows -> one projection matmul for both.
        data = jnp.concatenate([qk[:, :inner], qk[:, inner:]], axis=0) * c   # (2N, inner)
        dd = jnp.dot(data.astype(jnp.bfloat16), projbd_ref[d],
                     preferred_element_type=jnp.float32)                # (2N, H*M)
        # diag term 0.5 * sum_h (c*x_h)^2, broadcast over each head's M features
        diag = 0.5 * jnp.dot(data * data, d2m,
                             preferred_element_type=jnp.float32)        # (2N, H*M)
        # stabilisers: queries -> per-row/per-head max; keys -> per-head max
        # over (rows, features), exactly like softmax_kernel(is_query=False).
        segs = []
        for h in range(H):                        # tiny elementwise loop, no MXU
            seg = dd[:, h * M:(h + 1) * M]
            rmax = jnp.max(seg, axis=-1, keepdims=True)          # (2N, 1)
            kmax = jnp.max(rmax[N:], axis=0, keepdims=True)      # (1, 1)
            col = jnp.concatenate([rmax[:N], jnp.broadcast_to(kmax, (N, 1))],
                                  axis=0)                        # (2N, 1)
            segs.append(jnp.broadcast_to(col, (2 * N, M)))
        stab = jnp.concatenate(segs, axis=1)                     # (2N, H*M)
        feat = ratio * (jnp.exp(dd - diag - stab) + eps)
        qp, kp = feat[:N], feat[N:]
        if with_v:
            v = jnp.dot(xlb, wv_ref[d],
                        preferred_element_type=jnp.float32) + bv_ref[d]   # (N, inner)
            return qp, kp, v
        return qp, kp

    aw_acc = jnp.zeros((N, N), jnp.float32)

    for d in range(depth):                       # static unroll over layers
        # ---- attention f-branch: x <- x + to_out(linear_attention(q,k,v)) ----
        qp, kp, v = feature_maps(x, d, with_v=True)
        ksum = jnp.sum(kp, axis=0, keepdims=True)                          # (1, H*M)
        denom = jnp.dot(qp * ksum, m2d,
                        preferred_element_type=jnp.float32)                # (N, inner)
        ctx = lax.dot_general(kp, v, (((0,), (0,)), ((), ())),
                              preferred_element_type=jnp.float32) * m2d    # (H*M, inner)
        out = jnp.dot(qp, ctx, preferred_element_type=jnp.float32) \
            * pl.reciprocal(denom, approx=True)                            # (N, inner)
        o = jnp.dot(out.astype(jnp.bfloat16), wo_ref[d],
                    preferred_element_type=jnp.float32) + bo_ref[d]
        x = x + o

        # ---- attention weights: SequentialSequence re-invokes f on UPDATED x.
        # With v = I_N:  aw_h = d_inv * (q' @ k'^T); no identity tensor needed.
        qp2, kp2 = feature_maps(x, d, with_v=False)
        ksum2 = jnp.sum(kp2, axis=0, keepdims=True)
        denom2 = jnp.dot(qp2 * ksum2, m2m,
                         preferred_element_type=jnp.float32)               # (N, H*M)
        qs = qp2 * pl.reciprocal(denom2, approx=True)
        aw_acc = aw_acc + lax.dot_general(
            qs, kp2, (((1,), (1,)), ((), ())),
            preferred_element_type=jnp.float32) * (1.0 / H)

        # ---- FFN g-branch: x <- x + W2(GELU(W1(LN(x)))) ----------------------
        xl2 = layer_norm(x, g2_ref[d], be2_ref[d]).astype(jnp.bfloat16)
        h1 = jnp.dot(xl2, w1_ref[d],
                     preferred_element_type=jnp.float32) + b1_ref[d]
        h1 = _gelu_exact(h1)
        y = jnp.dot(h1.astype(jnp.bfloat16), w2_ref[d],
                    preferred_element_type=jnp.float32) + b2_ref[d]
        x = x + y

    xout_ref[0] = x
    aw_ref[0] = aw_acc * (1.0 / depth)           # mean over depth (SequentialSequence)


# ------------------------------ wrapper ----------------------------------------

def _const_spec(shape):
    if len(shape) == 2:
        return pl.BlockSpec(shape, lambda b: (0, 0))
    return pl.BlockSpec(shape, lambda b: (0, 0, 0))


def performer_forward(x, params, heads, dim_head):
    B, N, D = x.shape
    # output_attentions=True in the reference only broadcasts correctly for B==1.
    assert B == 1, "output_attentions=True requires batch=1 (as in the reference)"
    p = params
    depth = p["wqk"].shape[0]
    M = p["proj_bd"].shape[2] // heads

    weight_args = (p["ln1_g"], p["ln1_b"], p["wqk"], p["bqk"], p["wv"], p["bv"],
                   p["wo"], p["bo"], p["proj_bd"], p["ln2_g"], p["ln2_b"],
                   p["w1"], p["b1"], p["w2"], p["b2"],
                   p["d2m"], p["m2d"], p["m2m"])

    kern = partial(_performer_kernel, depth=depth, heads=heads,
                   dim_head=dim_head, nb_features=M, ln_eps=1e-5, eps=1e-4)

    x_new, aw = pl.pallas_call(
        kern,
        out_shape=(jax.ShapeDtypeStruct((B, N, D), jnp.float32),
                   jax.ShapeDtypeStruct((B, N, N), jnp.float32)),
        grid=(B,),
        in_specs=[pl.BlockSpec((1, N, D), lambda b: (b, 0, 0))]
                 + [_const_spec(a.shape) for a in weight_args],
        out_specs=(pl.BlockSpec((1, N, D), lambda b: (b, 0, 0)),
                   pl.BlockSpec((1, N, N), lambda b: (b, 0, 0))),
        compiler_params=pltpu.CompilerParams(dimension_semantics=("parallel",)),
    )(x, *weight_args)
    return x_new, aw.reshape(1, 1, N, N)


# ------------------------------ parameters -------------------------------------

def init_params(key, dim, depth, heads, dim_head, ff_mult, nb_features):
    inner = heads * dim_head
    DF = dim * ff_mult
    M = nb_features

    def rn(k, shape, scale=0.02):
        return scale * jax.random.normal(k, shape, dtype=jnp.float32)

    names = ["ln1_g", "ln1_b", "wqk", "bqk", "wv", "bv", "wo", "bo", "proj_bd",
             "ln2_g", "ln2_b", "w1", "b1", "w2", "b2"]
    L = {n: [] for n in names}

    for _ in range(depth):
        key, *ks = jax.random.split(key, 12)
        wq, wk, wv = (rn(ks[0], (dim, inner)), rn(ks[1], (dim, inner)),
                      rn(ks[2], (dim, inner)))
        bq, bk, bv = rn(ks[3], (inner,)), rn(ks[4], (inner,)), rn(ks[5], (inner,))
        # TODO(synk): gaussian_orthogonal_random_matrix (QR-orthogonalized blocks)
        # approximated by a plain Gaussian draw; init-only, not forward compute.
        proj = jax.random.normal(ks[10], (M, dim_head), dtype=jnp.float32)

        L["ln1_g"].append(jnp.ones((1, dim), jnp.float32))
        L["ln1_b"].append(jnp.zeros((1, dim), jnp.float32))
        # fused Q|K weight (bf16); V kept separate so the weights-recompute pass
        # can skip it entirely.
        L["wqk"].append(jnp.concatenate([wq, wk], axis=1).astype(jnp.bfloat16))
        L["bqk"].append(jnp.concatenate([bq, bk], axis=0).reshape(1, 2 * inner))
        L["wv"].append(wv.astype(jnp.bfloat16))
        L["bv"].append(bv.reshape(1, inner))
        L["wo"].append(rn(ks[6], (inner, dim)).astype(jnp.bfloat16))
        L["bo"].append(rn(ks[7], (dim,)).reshape(1, dim))
        # block-diagonal random-feature projection, precomputed once, bf16.
        L["proj_bd"].append(
            jnp.kron(jnp.eye(heads, dtype=jnp.float32), proj.T).astype(jnp.bfloat16))
        L["ln2_g"].append(jnp.ones((1, dim), jnp.float32))
        L["ln2_b"].append(jnp.zeros((1, dim), jnp.float32))
        L["w1"].append(rn(ks[8], (dim, DF)).astype(jnp.bfloat16))
        L["b1"].append(jnp.zeros((1, DF), jnp.float32))
        L["w2"].append(rn(ks[9], (DF, dim)).astype(jnp.bfloat16))
        L["b2"].append(jnp.zeros((1, dim), jnp.float32))

    params = {n: jnp.stack(v, axis=0) for n, v in L.items()}
    # head-block 0/1 indicator constants shared by all layers (f32 for exact math)
    eyeH = jnp.eye(heads, dtype=jnp.float32)
    params["d2m"] = jnp.kron(eyeH, jnp.ones((dim_head, M), jnp.float32))
    params["m2d"] = jnp.kron(eyeH, jnp.ones((M, dim_head), jnp.float32))
    params["m2m"] = jnp.kron(eyeH, jnp.ones((M, M), jnp.float32))
    return params


# --------------------------------- main -----------------------------------------

if __name__ == "__main__":
    B, N = 1, 16                      # batch must be 1 for output_attentions=True
    dim, depth, heads, dim_head, ff_mult = 32, 2, 4, 8, 4
    nb_features = int(dim_head * math.log(dim_head))   # default nb_features = 16

    key = jax.random.PRNGKey(0)
    kx, kp = jax.random.split(key)
    x = jax.random.normal(kx, (B, N, dim), dtype=jnp.float32)
    params = init_params(kp, dim, depth, heads, dim_head, ff_mult, nb_features)

    fwd = jax.jit(lambda xx, pp: performer_forward(xx, pp, heads, dim_head))
    out, attn_w = fwd(x, params)
    jax.block_until_ready((out, attn_w))

    assert out.shape == (B, N, dim)
    assert attn_w.shape == (1, 1, N, N)
    assert bool(jnp.all(jnp.isfinite(out))) and bool(jnp.all(jnp.isfinite(attn_w)))
    print("KERNEL_OK")
</pallas_src>

<mosaic_0001>
module attributes {stable_mosaic.version = 11 : i64} {
  func.func @_performer_kernel(%arg0: i32, %arg1: memref<1x16x32xf32, #tpu.memory_space<vmem>>, %arg2: memref<2x1x32xf32, #tpu.memory_space<vmem>>, %arg3: memref<2x1x32xf32, #tpu.memory_space<vmem>>, %arg4: memref<2x32x64xbf16, #tpu.memory_space<vmem>>, %arg5: memref<2x1x64xf32, #tpu.memory_space<vmem>>, %arg6: memref<2x32x32xbf16, #tpu.memory_space<vmem>>, %arg7: memref<2x1x32xf32, #tpu.memory_space<vmem>>, %arg8: memref<2x32x32xbf16, #tpu.memory_space<vmem>>, %arg9: memref<2x1x32xf32, #tpu.memory_space<vmem>>, %arg10: memref<2x32x64xbf16, #tpu.memory_space<vmem>>, %arg11: memref<2x1x32xf32, #tpu.memory_space<vmem>>, %arg12: memref<2x1x32xf32, #tpu.memory_space<vmem>>, %arg13: memref<2x32x128xbf16, #tpu.memory_space<vmem>>, %arg14: memref<2x1x128xf32, #tpu.memory_space<vmem>>, %arg15: memref<2x128x32xbf16, #tpu.memory_space<vmem>>, %arg16: memref<2x1x32xf32, #tpu.memory_space<vmem>>, %arg17: memref<32x64xf32, #tpu.memory_space<vmem>>, %arg18: memref<64x32xf32, #tpu.memory_space<vmem>>, %arg19: memref<64x64xf32, #tpu.memory_space<vmem>>, %arg20: memref<1x16x32xf32, #tpu.memory_space<vmem>>, %arg21: memref<1x16x16xf32, #tpu.memory_space<vmem>>) attributes {dimension_semantics = [#tpu.dimension_semantics<parallel>], iteration_bounds = array<i64: 1>, scalar_prefetch = 0 : i64, scratch_operands = 0 : i64, tpu.core_type = #tpu.core_type<tc>, window_params = [{transform_indices = @transform_0, window_bounds = array<i64: 1, 16, 32>}, {pipeline_mode = #tpu.pipeline_mode<synchronous>, transform_indices = @transform_1, window_bounds = array<i64: 2, 1, 32>}, {pipeline_mode = #tpu.pipeline_mode<synchronous>, transform_indices = @transform_2, window_bounds = array<i64: 2, 1, 32>}, {pipeline_mode = #tpu.pipeline_mode<synchronous>, transform_indices = @transform_3, window_bounds = array<i64: 2, 32, 64>}, {pipeline_mode = #tpu.pipeline_mode<synchronous>, transform_indices = @transform_4, window_bounds = array<i64: 2, 1, 64>}, {pipeline_mode = #tpu.pipeline_mode<synchronous>, transform_indices = @transform_5, window_bounds = array<i64: 2, 32, 32>}, {pipeline_mode = #tpu.pipeline_mode<synchronous>, transform_indices = @transform_6, window_bounds = array<i64: 2, 1, 32>}, {pipeline_mode = #tpu.pipeline_mode<synchronous>, transform_indices = @transform_7, window_bounds = array<i64: 2, 32, 32>}, {pipeline_mode = #tpu.pipeline_mode<synchronous>, transform_indices = @transform_8, window_bounds = array<i64: 2, 1, 32>}, {pipeline_mode = #tpu.pipeline_mode<synchronous>, transform_indices = @transform_9, window_bounds = array<i64: 2, 32, 64>}, {pipeline_mode = #tpu.pipeline_mode<synchronous>, transform_indices = @transform_10, window_bounds = array<i64: 2, 1, 32>}, {pipeline_mode = #tpu.pipeline_mode<synchronous>, transform_indices = @transform_11, window_bounds = array<i64: 2, 1, 32>}, {pipeline_mode = #tpu.pipeline_mode<synchronous>, transform_indices = @transform_12, window_bounds = array<i64: 2, 32, 128>}, {pipeline_mode = #tpu.pipeline_mode<synchronous>, transform_indices = @transform_13, window_bounds = array<i64: 2, 1, 128>}, {pipeline_mode = #tpu.pipeline_mode<synchronous>, transform_indices = @transform_14, window_bounds = array<i64: 2, 128, 32>}, {pipeline_mode = #tpu.pipeline_mode<synchronous>, transform_indices = @transform_15, window_bounds = array<i64: 2, 1, 32>}, {pipeline_mode = #tpu.pipeline_mode<synchronous>, transform_indices = @transform_16, window_bounds = array<i64: 32, 64>}, {pipeline_mode = #tpu.pipeline_mode<synchronous>, transform_indices = @transform_17, window_bounds = array<i64: 64, 32>}, {pipeline_mode = #tpu.pipeline_mode<synchronous>, transform_indices = @transform_18, window_bounds = array<i64: 64, 64>}, {transform_indices = @transform_19, window_bounds = array<i64: 1, 16, 32>}, {transform_indices = @transform_20, window_bounds = array<i64: 1, 16, 16>}]} {
    %c0 = arith.constant 0 : index
    %c0_0 = arith.constant 0 : index
    %c0_1 = arith.constant 0 : index
    %0 = vector.load %arg1[%c0, %c0_0, %c0_1] : memref<1x16x32xf32, #tpu.memory_space<vmem>>, vector<1x16x32xf32>
    %1 = vector.shape_cast %0 : vector<1x16x32xf32> to vector<16x32xf32>
    %c0_2 = arith.constant 0 : index
    %c0_3 = arith.constant 0 : index
    %2 = vector.load %arg17[%c0_2, %c0_3] : memref<32x64xf32, #tpu.memory_space<vmem>>, vector<32x64xf32>
    %c0_4 = arith.constant 0 : index
    %c0_5 = arith.constant 0 : index
    %3 = vector.load %arg18[%c0_4, %c0_5] : memref<64x32xf32, #tpu.memory_space<vmem>>, vector<64x32xf32>
    %c0_6 = arith.constant 0 : index
    %c0_7 = arith.constant 0 : index
    %4 = vector.load %arg19[%c0_6, %c0_7] : memref<64x64xf32, #tpu.memory_space<vmem>>, vector<64x64xf32>
    %cst = arith.constant 0.000000e+00 : f32
    %5 = vector.broadcast %cst : f32 to vector<16x16xf32>
    %c0_8 = arith.constant 0 : index
    %c0_9 = arith.constant 0 : index
    %c0_10 = arith.constant 0 : index
    %6 = vector.load %arg2[%c0_8, %c0_9, %c0_10] : memref<2x1x32xf32, #tpu.memory_space<vmem>>, vector<1x1x32xf32>
    %7 = vector.shape_cast %6 : vector<1x1x32xf32> to vector<1x32xf32>
    %c0_11 = arith.constant 0 : index
    %c0_12 = arith.constant 0 : index
    %c0_13 = arith.constant 0 : index
    %8 = vector.load %arg3[%c0_11, %c0_12, %c0_13] : memref<2x1x32xf32, #tpu.memory_space<vmem>>, vector<1x1x32xf32>
    %9 = vector.shape_cast %8 : vector<1x1x32xf32> to vector<1x32xf32>
    %cst_14 = arith.constant dense<0.000000e+00> : vector<16xf32>
    %10 = vector.multi_reduction <add>, %1, %cst_14 [1] : vector<16x32xf32> to vector<16xf32>
    %11 = vector.shape_cast %10 : vector<16xf32> to vector<16x1xf32>
    %cst_15 = arith.constant 3.200000e+01 : f32
    %12 = vector.broadcast %cst_15 : f32 to vector<16x1xf32>
    %13 = arith.divf %11, %12 : vector<16x1xf32>
    %14 = vector.broadcast %13 : vector<16x1xf32> to vector<16x32xf32>
    %15 = arith.subf %1, %14 : vector<16x32xf32>
    %16 = arith.mulf %15, %15 : vector<16x32xf32>
    %cst_16 = arith.constant dense<0.000000e+00> : vector<16xf32>
    %17 = vector.multi_reduction <add>, %16, %cst_16 [1] : vector<16x32xf32> to vector<16xf32>
    %18 = vector.shape_cast %17 : vector<16xf32> to vector<16x1xf32>
    %cst_17 = arith.constant 3.200000e+01 : f32
    %19 = vector.broadcast %cst_17 : f32 to vector<16x1xf32>
    %20 = arith.divf %18, %19 : vector<16x1xf32>
    %21 = vector.broadcast %13 : vector<16x1xf32> to vector<16x32xf32>
    %22 = arith.subf %1, %21 : vector<16x32xf32>
    %cst_18 = arith.constant 9.99999974E-6 : f32
    %23 = vector.broadcast %cst_18 : f32 to vector<16x1xf32>
    %24 = arith.addf %20, %23 : vector<16x1xf32>
    %25 = math.rsqrt %24 : vector<16x1xf32>
    %26 = vector.broadcast %25 : vector<16x1xf32> to vector<16x32xf32>
    %27 = arith.mulf %22, %26 : vector<16x32xf32>
    %28 = vector.broadcast %7 : vector<1x32xf32> to vector<16x32xf32>
    %29 = arith.mulf %27, %28 : vector<16x32xf32>
    %30 = vector.broadcast %9 : vector<1x32xf32> to vector<16x32xf32>
    %31 = arith.addf %29, %30 : vector<16x32xf32>
    %32 = arith.truncf %31 : vector<16x32xf32> to vector<16x32xbf16>
    %c0_19 = arith.constant 0 : index
    %c0_20 = arith.constant 0 : index
    %c0_21 = arith.constant 0 : index
    %33 = vector.load %arg4[%c0_19, %c0_20, %c0_21] : memref<2x32x64xbf16, #tpu.memory_space<vmem>>, vector<1x32x64xbf16>
    %34 = vector.shape_cast %33 : vector<1x32x64xbf16> to vector<32x64xbf16>
    %cst_22 = arith.constant dense<0.000000e+00> : vector<16x64xf32>
    %35 = tpu.matmul %32, %34, %cst_22 {dimension_numbers = #tpu.dot_dimension_numbers<[1], [0], [0], [1], [0, 0, 1, 1], [], []>} : vector<16x32xbf16>, vector<32x64xbf16>, vector<16x64xf32> -> vector<16x64xf32>
    %c0_23 = arith.constant 0 : index
    %c0_24 = arith.constant 0 : index
    %c0_25 = arith.constant 0 : index
    %36 = vector.load %arg5[%c0_23, %c0_24, %c0_25] : memref<2x1x64xf32, #tpu.memory_space<vmem>>, vector<1x1x64xf32>
    %37 = vector.shape_cast %36 : vector<1x1x64xf32> to vector<1x64xf32>
    %38 = vector.broadcast %37 : vector<1x64xf32> to vector<16x64xf32>
    %39 = arith.addf %35, %38 : vector<16x64xf32>
    %40 = vector.extract_strided_slice %39 {offsets = [0, 0], sizes = [16, 32], strides = [1, 1]} : vector<16x64xf32> to vector<16x32xf32>
    %41 = vector.extract_strided_slice %39 {offsets = [0, 32], sizes = [16, 32], strides = [1, 1]} : vector<16x64xf32> to vector<16x32xf32>
    %42 = tpu.concatenate %40, %41 in 0 : vector<16x32xf32>, vector<16x32xf32> -> vector<32x32xf32>
    %cst_26 = arith.constant 0.594603539 : f32
    %43 = vector.broadcast %cst_26 : f32 to vector<32x32xf32>
    %44 = arith.mulf %42, %43 : vector<32x32xf32>
    %45 = arith.truncf %44 : vector<32x32xf32> to vector<32x32xbf16>
    %c0_27 = arith.constant 0 : index
    %c0_28 = arith.constant 0 : index
    %c0_29 = arith.constant 0 : index
    %46 = vector.load %arg10[%c0_27, %c0_28, %c0_29] : memref<2x32x64xbf16, #tpu.memory_space<vmem>>, vector<1x32x64xbf16>
    %47 = vector.shape_cast %46 : vector<1x32x64xbf16> to vector<32x64xbf16>
    %cst_30 = arith.constant dense<0.000000e+00> : vector<32x64xf32>
    %48 = tpu.matmul %45, %47, %cst_30 {dimension_numbers = #tpu.dot_dimension_numbers<[1], [0], [0], [1], [0, 0, 1, 1], [], []>} : vector<32x32xbf16>, vector<32x64xbf16>, vector<32x64xf32> -> vector<32x64xf32>
    %49 = arith.mulf %44, %44 : vector<32x32xf32>
    %cst_31 = arith.constant dense<0.000000e+00> : vector<32x64xf32>
    %50 = tpu.matmul %49, %2, %cst_31 {dimension_numbers = #tpu.dot_dimension_numbers<[1], [0], [0], [1], [0, 0, 1, 1], [], []>} : vector<32x32xf32>, vector<32x64xf32>, vector<32x64xf32> -> vector<32x64xf32>
    %cst_32 = arith.constant 5.000000e-01 : f32
    %51 = vector.broadcast %cst_32 : f32 to vector<32x64xf32>
    %52 = arith.mulf %51, %50 : vector<32x64xf32>
    %53 = vector.extract_strided_slice %48 {offsets = [0, 0], sizes = [32, 16], strides = [1, 1]} : vector<32x64xf32> to vector<32x16xf32>
    %cst_33 = arith.constant dense<0xFF800000> : vector<32xf32>
    %54 = vector.multi_reduction <maximumf>, %53, %cst_33 [1] : vector<32x16xf32> to vector<32xf32>
    %55 = vector.shape_cast %54 : vector<32xf32> to vector<32x1xf32>
    %56 = vector.extract_strided_slice %55 {offsets = [16, 0], sizes = [16, 1], strides = [1, 1]} : vector<32x1xf32> to vector<16x1xf32>
    %cst_34 = arith.constant dense<0xFF800000> : vector<1xf32>
    %57 = vector.multi_reduction <maximumf>, %56, %cst_34 [0] : vector<16x1xf32> to vector<1xf32>
    %58 = vector.shape_cast %57 : vector<1xf32> to vector<1x1xf32>
    %59 = vector.extract_strided_slice %55 {offsets = [0, 0], sizes = [16, 1], strides = [1, 1]} : vector<32x1xf32> to vector<16x1xf32>
    %60 = vector.shape_cast %58 : vector<1x1xf32> to vector<1x1xf32>
    %61 = vector.broadcast %60 : vector<1x1xf32> to vector<16x1xf32>
    %62 = tpu.concatenate %59, %61 in 0 : vector<16x1xf32>, vector<16x1xf32> -> vector<32x1xf32>
    %63 = vector.shape_cast %62 : vector<32x1xf32> to vector<32x1xf32>
    %64 = vector.broadcast %63 : vector<32x1xf32> to vector<32x16xf32>
    %65 = vector.extract_strided_slice %48 {offsets = [0, 16], sizes = [32, 16], strides = [1, 1]} : vector<32x64xf32> to vector<32x16xf32>
    %cst_35 = arith.constant dense<0xFF800000> : vector<32xf32>
    %66 = vector.multi_reduction <maximumf>, %65, %cst_35 [1] : vector<32x16xf32> to vector<32xf32>
    %67 = vector.shape_cast %66 : vector<32xf32> to vector<32x1xf32>
    %68 = vector.extract_strided_slice %67 {offsets = [16, 0], sizes = [16, 1], strides = [1, 1]} : vector<32x1xf32> to vector<16x1xf32>
    %cst_36 = arith.constant dense<0xFF800000> : vector<1xf32>
    %69 = vector.multi_reduction <maximumf>, %68, %cst_36 [0] : vector<16x1xf32> to vector<1xf32>
    %70 = vector.shape_cast %69 : vector<1xf32> to vector<1x1xf32>
    %71 = vector.extract_strided_slice %67 {offsets = [0, 0], sizes = [16, 1], strides = [1, 1]} : vector<32x1xf32> to vector<16x1xf32>
    %72 = vector.shape_cast %70 : vector<1x1xf32> to vector<1x1xf32>
    %73 = vector.broadcast %72 : vector<1x1xf32> to vector<16x1xf32>
    %74 = tpu.concatenate %71, %73 in 0 : vector<16x1xf32>, vector<16x1xf32> -> vector<32x1xf32>
    %75 = vector.shape_cast %74 : vector<32x1xf32> to vector<32x1xf32>
    %76 = vector.broadcast %75 : vector<32x1xf32> to vector<32x16xf32>
    %77 = vector.extract_strided_slice %48 {offsets = [0, 32], sizes = [32, 16], strides = [1, 1]} : vector<32x64xf32> to vector<32x16xf32>
    %cst_37 = arith.constant dense<0xFF800000> : vector<32xf32>
    %78 = vector.multi_reduction <maximumf>, %77, %cst_37 [1] : vector<32x16xf32> to vector<32xf32>
    %79 = vector.shape_cast %78 : vector<32xf32> to vector<32x1xf32>
    %80 = vector.extract_strided_slice %79 {offsets = [16, 0], sizes = [16, 1], strides = [1, 1]} : vector<32x1xf32> to vector<16x1xf32>
    %cst_38 = arith.constant dense<0xFF800000> : vector<1xf32>
    %81 = vector.multi_reduction <maximumf>, %80, %cst_38 [0] : vector<16x1xf32> to vector<1xf32>
    %82 = vector.shape_cast %81 : vector<1xf32> to vector<1x1xf32>
    %83 = vector.extract_strided_slice %79 {offsets = [0, 0], sizes = [16, 1], strides = [1, 1]} : vector<32x1xf32> to vector<16x1xf32>
    %84 = vector.shape_cast %82 : vector<1x1xf32> to vector<1x1xf32>
    %85 = vector.broadcast %84 : vector<1x1xf32> to vector<16x1xf32>
    %86 = tpu.concatenate %83, %85 in 0 : vector<16x1xf32>, vector<16x1xf32> -> vector<32x1xf32>
    %87 = vector.shape_cast %86 : vector<32x1xf32> to vector<32x1xf32>
    %88 = vector.broadcast %87 : vector<32x1xf32> to vector<32x16xf32>
    %89 = vector.extract_strided_slice %48 {offsets = [0, 48], sizes = [32, 16], strides = [1, 1]} : vector<32x64xf32> to vector<32x16xf32>
    %cst_39 = arith.constant dense<0xFF800000> : vector<32xf32>
    %90 = vector.multi_reduction <maximumf>, %89, %cst_39 [1] : vector<32x16xf32> to vector<32xf32>
    %91 = vector.shape_cast %90 : vector<32xf32> to vector<32x1xf32>
    %92 = vector.extract_strided_slice %91 {offsets = [16, 0], sizes = [16, 1], strides = [1, 1]} : vector<32x1xf32> to vector<16x1xf32>
    %cst_40 = arith.constant dense<0xFF800000> : vector<1xf32>
    %93 = vector.multi_reduction <maximumf>, %92, %cst_40 [0] : vector<16x1xf32> to vector<1xf32>
    %94 = vector.shape_cast %93 : vector<1xf32> to vector<1x1xf32>
    %95 = vector.extract_strided_slice %91 {offsets = [0, 0], sizes = [16, 1], strides = [1, 1]} : vector<32x1xf32> to vector<16x1xf32>
    %96 = vector.shape_cast %94 : vector<1x1xf32> to vector<1x1xf32>
    %97 = vector.broadcast %96 : vector<1x1xf32> to vector<16x1xf32>
    %98 = tpu.concatenate %95, %97 in 0 : vector<16x1xf32>, vector<16x1xf32> -> vector<32x1xf32>
    %99 = vector.shape_cast %98 : vector<32x1xf32> to vector<32x1xf32>
    %100 = vector.broadcast %99 : vector<32x1xf32> to vector<32x16xf32>
    %101 = tpu.concatenate %64, %76, %88, %100 in 1 : vector<32x16xf32>, vector<32x16xf32>, vector<32x16xf32>, vector<32x16xf32> -> vector<32x64xf32>
    %102 = arith.subf %48, %52 : vector<32x64xf32>
    %103 = arith.subf %102, %101 : vector<32x64xf32>
    %104 = math.exp %103 : vector<32x64xf32>
    %cst_41 = arith.constant 9.99999974E-5 : f32
    %105 = vector.broadcast %cst_41 : f32 to vector<32x64xf32>
    %106 = arith.addf %104, %105 : vector<32x64xf32>
    %cst_42 = arith.constant 2.500000e-01 : f32
    %107 = vector.broadcast %cst_42 : f32 to vector<32x64xf32>
    %108 = arith.mulf %107, %106 : vector<32x64xf32>
    %109 = vector.extract_strided_slice %108 {offsets = [0, 0], sizes = [16, 64], strides = [1, 1]} : vector<32x64xf32> to vector<16x64xf32>
    %110 = vector.extract_strided_slice %108 {offsets = [16, 0], sizes = [16, 64], strides = [1, 1]} : vector<32x64xf32> to vector<16x64xf32>
    %c0_43 = arith.constant 0 : index
    %c0_44 = arith.constant 0 : index
    %c0_45 = arith.constant 0 : index
    %111 = vector.load %arg6[%c0_43, %c0_44, %c0_45] : memref<2x32x32xbf16, #tpu.memory_space<vmem>>, vector<1x32x32xbf16>
    %112 = vector.shape_cast %111 : vector<1x32x32xbf16> to vector<32x32xbf16>
    %cst_46 = arith.constant dense<0.000000e+00> : vector<16x32xf32>
    %113 = tpu.matmul %32, %112, %cst_46 {dimension_numbers = #tpu.dot_dimension_numbers<[1], [0], [0], [1], [0, 0, 1, 1], [], []>} : vector<16x32xbf16>, vector<32x32xbf16>, vector<16x32xf32> -> vector<16x32xf32>
    %c0_47 = arith.constant 0 : index
    %c0_48 = arith.constant 0 : index
    %c0_49 = arith.constant 0 : index
    %114 = vector.load %arg7[%c0_47, %c0_48, %c0_49] : memref<2x1x32xf32, #tpu.memory_space<vmem>>, vector<1x1x32xf32>
    %115 = vector.shape_cast %114 : vector<1x1x32xf32> to vector<1x32xf32>
    %116 = vector.broadcast %115 : vector<1x32xf32> to vector<16x32xf32>
    %117 = arith.addf %113, %116 : vector<16x32xf32>
    %cst_50 = arith.constant dense<0.000000e+00> : vector<64xf32>
    %118 = vector.multi_reduction <add>, %110, %cst_50 [0] : vector<16x64xf32> to vector<64xf32>
    %119 = vector.shape_cast %118 : vector<64xf32> to vector<1x64xf32>
    %120 = vector.broadcast %119 : vector<1x64xf32> to vector<16x64xf32>
    %121 = arith.mulf %109, %120 : vector<16x64xf32>
    %cst_51 = arith.constant dense<0.000000e+00> : vector<16x32xf32>
    %122 = tpu.matmul %121, %3, %cst_51 {dimension_numbers = #tpu.dot_dimension_numbers<[1], [0], [0], [1], [0, 0, 1, 1], [], []>} : vector<16x64xf32>, vector<64x32xf32>, vector<16x32xf32> -> vector<16x32xf32>
    %cst_52 = arith.constant dense<0.000000e+00> : vector<64x32xf32>
    %123 = tpu.matmul %110, %117, %cst_52 {dimension_numbers = #tpu.dot_dimension_numbers<[0], [0], [1], [1], [0, 1, 1, 1], [], []>} : vector<16x64xf32>, vector<16x32xf32>, vector<64x32xf32> -> vector<64x32xf32>
    %124 = arith.mulf %123, %3 : vector<64x32xf32>
    %cst_53 = arith.constant dense<0.000000e+00> : vector<16x32xf32>
    %125 = tpu.matmul %109, %124, %cst_53 {dimension_numbers = #tpu.dot_dimension_numbers<[1], [0], [0], [1], [0, 0, 1, 1], [], []>} : vector<16x64xf32>, vector<64x32xf32>, vector<16x32xf32> -> vector<16x32xf32>
    %126 = tpu.reciprocal %122 {approx = true} : vector<16x32xf32> -> vector<16x32xf32>
    %127 = arith.mulf %125, %126 : vector<16x32xf32>
    %128 = arith.truncf %127 : vector<16x32xf32> to vector<16x32xbf16>
    %c0_54 = arith.constant 0 : index
    %c0_55 = arith.constant 0 : index
    %c0_56 = arith.constant 0 : index
    %129 = vector.load %arg8[%c0_54, %c0_55, %c0_56] : memref<2x32x32xbf16, #tpu.memory_space<vmem>>, vector<1x32x32xbf16>
    %130 = vector.shape_cast %129 : vector<1x32x32xbf16> to vector<32x32xbf16>
    %cst_57 = arith.constant dense<0.000000e+00> : vector<16x32xf32>
    %131 = tpu.matmul %128, %130, %cst_57 {dimension_numbers = #tpu.dot_dimension_numbers<[1], [0], [0], [1], [0, 0, 1, 1], [], []>} : vector<16x32xbf16>, vector<32x32xbf16>, vector<16x32xf32> -> vector<16x32xf32>
    %c0_58 = arith.constant 0 : index
    %c0_59 = arith.constant 0 : index
    %c0_60 = arith.constant 0 : index
    %132 = vector.load %arg9[%c0_58, %c0_59, %c0_60] : memref<2x1x32xf32, #tpu.memory_space<vmem>>, vector<1x1x32xf32>
    %133 = vector.shape_cast %132 : vector<1x1x32xf32> to vector<1x32xf32>
    %134 = vector.broadcast %133 : vector<1x32xf32> to vector<16x32xf32>
    %135 = arith.addf %131, %134 : vector<16x32xf32>
    %136 = arith.addf %1, %135 : vector<16x32xf32>
    %c0_61 = arith.constant 0 : index
    %c0_62 = arith.constant 0 : index
    %c0_63 = arith.constant 0 : index
    %137 = vector.load %arg2[%c0_61, %c0_62, %c0_63] : memref<2x1x32xf32, #tpu.memory_space<vmem>>, vector<1x1x32xf32>
    %138 = vector.shape_cast %137 : vector<1x1x32xf32> to vector<1x32xf32>
    %c0_64 = arith.constant 0 : index
    %c0_65 = arith.constant 0 : index
    %c0_66 = arith.constant 0 : index
    %139 = vector.load %arg3[%c0_64, %c0_65, %c0_66] : memref<2x1x32xf32, #tpu.memory_space<vmem>>, vector<1x1x32xf32>
    %140 = vector.shape_cast %139 : vector<1x1x32xf32> to vector<1x32xf32>
    %cst_67 = arith.constant dense<0.000000e+00> : vector<16xf32>
    %141 = vector.multi_reduction <add>, %136, %cst_67 [1] : vector<16x32xf32> to vector<16xf32>
    %142 = vector.shape_cast %141 : vector<16xf32> to vector<16x1xf32>
    %cst_68 = arith.constant 3.200000e+01 : f32
    %143 = vector.broadcast %cst_68 : f32 to vector<16x1xf32>
    %144 = arith.divf %142, %143 : vector<16x1xf32>
    %145 = vector.broadcast %144 : vector<16x1xf32> to vector<16x32xf32>
    %146 = arith.subf %136, %145 : vector<16x32xf32>
    %147 = arith.mulf %146, %146 : vector<16x32xf32>
    %cst_69 = arith.constant dense<0.000000e+00> : vector<16xf32>
    %148 = vector.multi_reduction <add>, %147, %cst_69 [1] : vector<16x32xf32> to vector<16xf32>
    %149 = vector.shape_cast %148 : vector<16xf32> to vector<16x1xf32>
    %cst_70 = arith.constant 3.200000e+01 : f32
    %150 = vector.broadcast %cst_70 : f32 to vector<16x1xf32>
    %151 = arith.divf %149, %150 : vector<16x1xf32>
    %152 = vector.broadcast %144 : vector<16x1xf32> to vector<16x32xf32>
    %153 = arith.subf %136, %152 : vector<16x32xf32>
    %cst_71 = arith.constant 9.99999974E-6 : f32
    %154 = vector.broadcast %cst_71 : f32 to vector<16x1xf32>
    %155 = arith.addf %151, %154 : vector<16x1xf32>
    %156 = math.rsqrt %155 : vector<16x1xf32>
    %157 = vector.broadcast %156 : vector<16x1xf32> to vector<16x32xf32>
    %158 = arith.mulf %153, %157 : vector<16x32xf32>
    %159 = vector.broadcast %138 : vector<1x32xf32> to vector<16x32xf32>
    %160 = arith.mulf %158, %159 : vector<16x32xf32>
    %161 = vector.broadcast %140 : vector<1x32xf32> to vector<16x32xf32>
    %162 = arith.addf %160, %161 : vector<16x32xf32>
    %163 = arith.truncf %162 : vector<16x32xf32> to vector<16x32xbf16>
    %c0_72 = arith.constant 0 : index
    %c0_73 = arith.constant 0 : index
    %c0_74 = arith.constant 0 : index
    %164 = vector.load %arg4[%c0_72, %c0_73, %c0_74] : memref<2x32x64xbf16, #tpu.memory_space<vmem>>, vector<1x32x64xbf16>
    %165 = vector.shape_cast %164 : vector<1x32x64xbf16> to vector<32x64xbf16>
    %cst_75 = arith.constant dense<0.000000e+00> : vector<16x64xf32>
    %166 = tpu.matmul %163, %165, %cst_75 {dimension_numbers = #tpu.dot_dimension_numbers<[1], [0], [0], [1], [0, 0, 1, 1], [], []>} : vector<16x32xbf16>, vector<32x64xbf16>, vector<16x64xf32> -> vector<16x64xf32>
    %c0_76 = arith.constant 0 : index
    %c0_77 = arith.constant 0 : index
    %c0_78 = arith.constant 0 : index
    %167 = vector.load %arg5[%c0_76, %c0_77, %c0_78] : memref<2x1x64xf32, #tpu.memory_space<vmem>>, vector<1x1x64xf32>
    %168 = vector.shape_cast %167 : vector<1x1x64xf32> to vector<1x64xf32>
    %169 = vector.broadcast %168 : vector<1x64xf32> to vector<16x64xf32>
    %170 = arith.addf %166, %169 : vector<16x64xf32>
    %171 = vector.extract_strided_slice %170 {offsets = [0, 0], sizes = [16, 32], strides = [1, 1]} : vector<16x64xf32> to vector<16x32xf32>
    %172 = vector.extract_strided_slice %170 {offsets = [0, 32], sizes = [16, 32], strides = [1, 1]} : vector<16x64xf32> to vector<16x32xf32>
    %173 = tpu.concatenate %171, %172 in 0 : vector<16x32xf32>, vector<16x32xf32> -> vector<32x32xf32>
    %cst_79 = arith.constant 0.594603539 : f32
    %174 = vector.broadcast %cst_79 : f32 to vector<32x32xf32>
    %175 = arith.mulf %173, %174 : vector<32x32xf32>
    %176 = arith.truncf %175 : vector<32x32xf32> to vector<32x32xbf16>
    %c0_80 = arith.constant 0 : index
    %c0_81 = arith.constant 0 : index
    %c0_82 = arith.constant 0 : index
    %177 = vector.load %arg10[%c0_80, %c0_81, %c0_82] : memref<2x32x64xbf16, #tpu.memory_space<vmem>>, vector<1x32x64xbf16>
    %178 = vector.shape_cast %177 : vector<1x32x64xbf16> to vector<32x64xbf16>
    %cst_83 = arith.constant dense<0.000000e+00> : vector<32x64xf32>
    %179 = tpu.matmul %176, %178, %cst_83 {dimension_numbers = #tpu.dot_dimension_numbers<[1], [0], [0], [1], [0, 0, 1, 1], [], []>} : vector<32x32xbf16>, vector<32x64xbf16>, vector<32x64xf32> -> vector<32x64xf32>
    %180 = arith.mulf %175, %175 : vector<32x32xf32>
    %cst_84 = arith.constant dense<0.000000e+00> : vector<32x64xf32>
    %181 = tpu.matmul %180, %2, %cst_84 {dimension_numbers = #tpu.dot_dimension_numbers<[1], [0], [0], [1], [0, 0, 1, 1], [], []>} : vector<32x32xf32>, vector<32x64xf32>, vector<32x64xf32> -> vector<32x64xf32>
    %cst_85 = arith.constant 5.000000e-01 : f32
    %182 = vector.broadcast %cst_85 : f32 to vector<32x64xf32>
    %183 = arith.mulf %182, %181 : vector<32x64xf32>
    %184 = vector.extract_strided_slice %179 {offsets = [0, 0], sizes = [32, 16], strides = [1, 1]} : vector<32x64xf32> to vector<32x16xf32>
    %cst_86 = arith.constant dense<0xFF800000> : vector<32xf32>
    %185 = vector.multi_reduction <maximumf>, %184, %cst_86 [1] : vector<32x16xf32> to vector<32xf32>
    %186 = vector.shape_cast %185 : vector<32xf32> to vector<32x1xf32>
    %187 = vector.extract_strided_slice %186 {offsets = [16, 0], sizes = [16, 1], strides = [1, 1]} : vector<32x1xf32> to vector<16x1xf32>
    %cst_87 = arith.constant dense<0xFF800000> : vector<1xf32>
    %188 = vector.multi_reduction <maximumf>, %187, %cst_87 [0] : vector<16x1xf32> to vector<1xf32>
    %189 = vector.shape_cast %188 : vector<1xf32> to vector<1x1xf32>
    %190 = vector.extract_strided_slice %186 {offsets = [0, 0], sizes = [16, 1], strides = [1, 1]} : vector<32x1xf32> to vector<16x1xf32>
    %191 = vector.shape_cast %189 : vector<1x1xf32> to vector<1x1xf32>
    %192 = vector.broadcast %191 : vector<1x1xf32> to vector<16x1xf32>
    %193 = tpu.concatenate %190, %192 in 0 : vector<16x1xf32>, vector<16x1xf32> -> vector<32x1xf32>
    %194 = vector.shape_cast %193 : vector<32x1xf32> to vector<32x1xf32>
    %195 = vector.broadcast %194 : vector<32x1xf32> to vector<32x16xf32>
    %196 = vector.extract_strided_slice %179 {offsets = [0, 16], sizes = [32, 16], strides = [1, 1]} : vector<32x64xf32> to vector<32x16xf32>
    %cst_88 = arith.constant dense<0xFF800000> : vector<32xf32>
    %197 = vector.multi_reduction <maximumf>, %196, %cst_88 [1] : vector<32x16xf32> to vector<32xf32>
    %198 = vector.shape_cast %197 : vector<32xf32> to vector<32x1xf32>
    %199 = vector.extract_strided_slice %198 {offsets = [16, 0], sizes = [16, 1], strides = [1, 1]} : vector<32x1xf32> to vector<16x1xf32>
    %cst_89 = arith.constant dense<0xFF800000> : vector<1xf32>
    %200 = vector.multi_reduction <maximumf>, %199, %cst_89 [0] : vector<16x1xf32> to vector<1xf32>
    %201 = vector.shape_cast %200 : vector<1xf32> to vector<1x1xf32>
    %202 = vector.extract_strided_slice %198 {offsets = [0, 0], sizes = [16, 1], strides = [1, 1]} : vector<32x1xf32> to vector<16x1xf32>
    %203 = vector.shape_cast %201 : vector<1x1xf32> to vector<1x1xf32>
    %204 = vector.broadcast %203 : vector<1x1xf32> to vector<16x1xf32>
    %205 = tpu.concatenate %202, %204 in 0 : vector<16x1xf32>, vector<16x1xf32> -> vector<32x1xf32>
    %206 = vector.shape_cast %205 : vector<32x1xf32> to vector<32x1xf32>
    %207 = vector.broadcast %206 : vector<32x1xf32> to vector<32x16xf32>
    %208 = vector.extract_strided_slice %179 {offsets = [0, 32], sizes = [32, 16], strides = [1, 1]} : vector<32x64xf32> to vector<32x16xf32>
    %cst_90 = arith.constant dense<0xFF800000> : vector<32xf32>
    %209 = vector.multi_reduction <maximumf>, %208, %cst_90 [1] : vector<32x16xf32> to vector<32xf32>
    %210 = vector.shape_cast %209 : vector<32xf32> to vector<32x1xf32>
    %211 = vector.extract_strided_slice %210 {offsets = [16, 0], sizes = [16, 1], strides = [1, 1]} : vector<32x1xf32> to vector<16x1xf32>
    %cst_91 = arith.constant dense<0xFF800000> : vector<1xf32>
    %212 = vector.multi_reduction <maximumf>, %211, %cst_91 [0] : vector<16x1xf32> to vector<1xf32>
    %213 = vector.shape_cast %212 : vector<1xf32> to vector<1x1xf32>
    %214 = vector.extract_strided_slice %210 {offsets = [0, 0], sizes = [16, 1], strides = [1, 1]} : vector<32x1xf32> to vector<16x1xf32>
    %215 = vector.shape_cast %213 : vector<1x1xf32> to vector<1x1xf32>
    %216 = vector.broadcast %215 : vector<1x1xf32> to vector<16x1xf32>
    %217 = tpu.concatenate %214, %216 in 0 : vector<16x1xf32>, vector<16x1xf32> -> vector<32x1xf32>
    %218 = vector.shape_cast %217 : vector<32x1xf32> to vector<32x1xf32>
    %219 = vector.broadcast %218 : vector<32x1xf32> to vector<32x16xf32>
    %220 = vector.extract_strided_slice %179 {offsets = [0, 48], sizes = [32, 16], strides = [1, 1]} : vector<32x64xf32> to vector<32x16xf32>
    %cst_92 = arith.constant dense<0xFF800000> : vector<32xf32>
    %221 = vector.multi_reduction <maximumf>, %220, %cst_92 [1] : vector<32x16xf32> to vector<32xf32>
    %222 = vector.shape_cast %221 : vector<32xf32> to vector<32x1xf32>
    %223 = vector.extract_strided_slice %222 {offsets = [16, 0], sizes = [16, 1], strides = [1, 1]} : vector<32x1xf32> to vector<16x1xf32>
    %cst_93 = arith.constant dense<0xFF800000> : vector<1xf32>
    %224 = vector.multi_reduction <maximumf>, %223, %cst_93 [0] : vector<16x1xf32> to vector<1xf32>
    %225 = vector.shape_cast %224 : vector<1xf32> to vector<1x1xf32>
    %226 = vector.extract_strided_slice %222 {offsets = [0, 0], sizes = [16, 1], strides = [1, 1]} : vector<32x1xf32> to vector<16x1xf32>
    %227 = vector.shape_cast %225 : vector<1x1xf32> to vector<1x1xf32>
    %228 = vector.broadcast %227 : vector<1x1xf32> to vector<16x1xf32>
    %229 = tpu.concatenate %226, %228 in 0 : vector<16x1xf32>, vector<16x1xf32> -> vector<32x1xf32>
    %230 = vector.shape_cast %229 : vector<32x1xf32> to vector<32x1xf32>
    %231 = vector.broadcast %230 : vector<32x1xf32> to vector<32x16xf32>
    %232 = tpu.concatenate %195, %207, %219, %231 in 1 : vector<32x16xf32>, vector<32x16xf32>, vector<32x16xf32>, vector<32x16xf32> -> vector<32x64xf32>
    %233 = arith.subf %179, %183 : vector<32x64xf32>
    %234 = arith.subf %233, %232 : vector<32x64xf32>
    %235 = math.exp %234 : vector<32x64xf32>
    %cst_94 = arith.constant 9.99999974E-5 : f32
    %236 = vector.broadcast %cst_94 : f32 to vector<32x64xf32>
    %237 = arith.addf %235, %236 : vector<32x64xf32>
    %cst_95 = arith.constant 2.500000e-01 : f32
    %238 = vector.broadcast %cst_95 : f32 to vector<32x64xf32>
    %239 = arith.mulf %238, %237 : vector<32x64xf32>
    %240 = vector.extract_strided_slice %239 {offsets = [0, 0], sizes = [16, 64], strides = [1, 1]} : vector<32x64xf32> to vector<16x64xf32>
    %241 = vector.extract_strided_slice %239 {offsets = [16, 0], sizes = [16, 64], strides = [1, 1]} : vector<32x64xf32> to vector<16x64xf32>
    %cst_96 = arith.constant dense<0.000000e+00> : vector<64xf32>
    %242 = vector.multi_reduction <add>, %241, %cst_96 [0] : vector<16x64xf32> to vector<64xf32>
    %243 = vector.shape_cast %242 : vector<64xf32> to vector<1x64xf32>
    %244 = vector.broadcast %243 : vector<1x64xf32> to vector<16x64xf32>
    %245 = arith.mulf %240, %244 : vector<16x64xf32>
    %cst_97 = arith.constant dense<0.000000e+00> : vector<16x64xf32>
    %246 = tpu.matmul %245, %4, %cst_97 {dimension_numbers = #tpu.dot_dimension_numbers<[1], [0], [0], [1], [0, 0, 1, 1], [], []>} : vector<16x64xf32>, vector<64x64xf32>, vector<16x64xf32> -> vector<16x64xf32>
    %247 = tpu.reciprocal %246 {approx = true} : vector<16x64xf32> -> vector<16x64xf32>
    %248 = arith.mulf %240, %247 : vector<16x64xf32>
    %cst_98 = arith.constant dense<0.000000e+00> : vector<16x16xf32>
    %249 = tpu.matmul %248, %241, %cst_98 {dimension_numbers = #tpu.dot_dimension_numbers<[1], [1], [0], [0], [0, 0, 1, 0], [], []>} : vector<16x64xf32>, vector<16x64xf32>, vector<16x16xf32> -> vector<16x16xf32>
    %cst_99 = arith.constant 2.500000e-01 : f32
    %250 = vector.broadcast %cst_99 : f32 to vector<16x16xf32>
    %251 = arith.mulf %249, %250 : vector<16x16xf32>
    %252 = arith.addf %5, %251 : vector<16x16xf32>
    %c0_100 = arith.constant 0 : index
    %c0_101 = arith.constant 0 : index
    %c0_102 = arith.constant 0 : index
    %253 = vector.load %arg11[%c0_100, %c0_101, %c0_102] : memref<2x1x32xf32, #tpu.memory_space<vmem>>, vector<1x1x32xf32>
    %254 = vector.shape_cast %253 : vector<1x1x32xf32> to vector<1x32xf32>
    %c0_103 = arith.constant 0 : index
    %c0_104 = arith.constant 0 : index
    %c0_105 = arith.constant 0 : index
    %255 = vector.load %arg12[%c0_103, %c0_104, %c0_105] : memref<2x1x32xf32, #tpu.memory_space<vmem>>, vector<1x1x32xf32>
    %256 = vector.shape_cast %255 : vector<1x1x32xf32> to vector<1x32xf32>
    %cst_106 = arith.constant dense<0.000000e+00> : vector<16xf32>
    %257 = vector.multi_reduction <add>, %136, %cst_106 [1] : vector<16x32xf32> to vector<16xf32>
    %258 = vector.shape_cast %257 : vector<16xf32> to vector<16x1xf32>
    %cst_107 = arith.constant 3.200000e+01 : f32
    %259 = vector.broadcast %cst_107 : f32 to vector<16x1xf32>
    %260 = arith.divf %258, %259 : vector<16x1xf32>
    %261 = vector.broadcast %260 : vector<16x1xf32> to vector<16x32xf32>
    %262 = arith.subf %136, %261 : vector<16x32xf32>
    %263 = arith.mulf %262, %262 : vector<16x32xf32>
    %cst_108 = arith.constant dense<0.000000e+00> : vector<16xf32>
    %264 = vector.multi_reduction <add>, %263, %cst_108 [1] : vector<16x32xf32> to vector<16xf32>
    %265 = vector.shape_cast %264 : vector<16xf32> to vector<16x1xf32>
    %cst_109 = arith.constant 3.200000e+01 : f32
    %266 = vector.broadcast %cst_109 : f32 to vector<16x1xf32>
    %267 = arith.divf %265, %266 : vector<16x1xf32>
    %268 = vector.broadcast %260 : vector<16x1xf32> to vector<16x32xf32>
    %269 = arith.subf %136, %268 : vector<16x32xf32>
    %cst_110 = arith.constant 9.99999974E-6 : f32
    %270 = vector.broadcast %cst_110 : f32 to vector<16x1xf32>
    %271 = arith.addf %267, %270 : vector<16x1xf32>
    %272 = math.rsqrt %271 : vector<16x1xf32>
    %273 = vector.broadcast %272 : vector<16x1xf32> to vector<16x32xf32>
    %274 = arith.mulf %269, %273 : vector<16x32xf32>
    %275 = vector.broadcast %254 : vector<1x32xf32> to vector<16x32xf32>
    %276 = arith.mulf %274, %275 : vector<16x32xf32>
    %277 = vector.broadcast %256 : vector<1x32xf32> to vector<16x32xf32>
    %278 = arith.addf %276, %277 : vector<16x32xf32>
    %279 = arith.truncf %278 : vector<16x32xf32> to vector<16x32xbf16>
    %c0_111 = arith.constant 0 : index
    %c0_112 = arith.constant 0 : index
    %c0_113 = arith.constant 0 : index
    %280 = vector.load %arg13[%c0_111, %c0_112, %c0_113] : memref<2x32x128xbf16, #tpu.memory_space<vmem>>, vector<1x32x128xbf16>
    %281 = vector.shape_cast %280 : vector<1x32x128xbf16> to vector<32x128xbf16>
    %cst_114 = arith.constant dense<0.000000e+00> : vector<16x128xf32>
    %282 = tpu.matmul %279, %281, %cst_114 {dimension_numbers = #tpu.dot_dimension_numbers<[1], [0], [0], [1], [0, 0, 1, 1], [], []>} : vector<16x32xbf16>, vector<32x128xbf16>, vector<16x128xf32> -> vector<16x128xf32>
    %c0_115 = arith.constant 0 : index
    %c0_116 = arith.constant 0 : index
    %c0_117 = arith.constant 0 : index
    %283 = vector.load %arg14[%c0_115, %c0_116, %c0_117] : memref<2x1x128xf32, #tpu.memory_space<vmem>>, vector<1x1x128xf32>
    %284 = vector.shape_cast %283 : vector<1x1x128xf32> to vector<1x128xf32>
    %285 = vector.broadcast %284 : vector<1x128xf32> to vector<16x128xf32>
    %286 = arith.addf %282, %285 : vector<16x128xf32>
    %cst_118 = arith.constant 5.000000e-01 : f32
    %287 = vector.broadcast %cst_118 : f32 to vector<16x128xf32>
    %288 = arith.mulf %287, %286 : vector<16x128xf32>
    %cst_119 = arith.constant 0.707106769 : f32
    %289 = vector.broadcast %cst_119 : f32 to vector<16x128xf32>
    %290 = arith.mulf %286, %289 : vector<16x128xf32>
    %291 = math.absf %290 : vector<16x128xf32>
    %cst_120 = arith.constant 0.327591091 : f32
    %292 = vector.broadcast %cst_120 : f32 to vector<16x128xf32>
    %293 = arith.mulf %292, %291 : vector<16x128xf32>
    %cst_121 = arith.constant 1.000000e+00 : f32
    %294 = vector.broadcast %cst_121 : f32 to vector<16x128xf32>
    %295 = arith.addf %294, %293 : vector<16x128xf32>
    %cst_122 = arith.constant 1.000000e+00 : f32
    %296 = vector.broadcast %cst_122 : f32 to vector<16x128xf32>
    %297 = arith.divf %296, %295 : vector<16x128xf32>
    %cst_123 = arith.constant 1.06140542 : f32
    %298 = vector.broadcast %cst_123 : f32 to vector<16x128xf32>
    %299 = arith.mulf %298, %297 : vector<16x128xf32>
    %cst_124 = arith.constant -1.45315206 : f32
    %300 = vector.broadcast %cst_124 : f32 to vector<16x128xf32>
    %301 = arith.addf %299, %300 : vector<16x128xf32>
    %302 = arith.mulf %301, %297 : vector<16x128xf32>
    %cst_125 = arith.constant 1.42141378 : f32
    %303 = vector.broadcast %cst_125 : f32 to vector<16x128xf32>
    %304 = arith.addf %302, %303 : vector<16x128xf32>
    %305 = arith.mulf %304, %297 : vector<16x128xf32>
    %cst_126 = arith.constant -0.284496725 : f32
    %306 = vector.broadcast %cst_126 : f32 to vector<16x128xf32>
    %307 = arith.addf %305, %306 : vector<16x128xf32>
    %308 = arith.mulf %307, %297 : vector<16x128xf32>
    %cst_127 = arith.constant 0.254829586 : f32
    %309 = vector.broadcast %cst_127 : f32 to vector<16x128xf32>
    %310 = arith.addf %308, %309 : vector<16x128xf32>
    %311 = arith.mulf %310, %297 : vector<16x128xf32>
    %cst_128 = arith.constant 0.000000e+00 : f32
    %312 = vector.broadcast %cst_128 : f32 to vector<16x128xf32>
    %313 = arith.subf %312, %291 : vector<16x128xf32>
    %314 = arith.mulf %313, %291 : vector<16x128xf32>
    %315 = math.exp %314 : vector<16x128xf32>
    %316 = arith.mulf %311, %315 : vector<16x128xf32>
    %cst_129 = arith.constant 1.000000e+00 : f32
    %317 = vector.broadcast %cst_129 : f32 to vector<16x128xf32>
    %318 = arith.subf %317, %316 : vector<16x128xf32>
    %cst_130 = arith.constant 0.000000e+00 : f32
    %319 = vector.broadcast %cst_130 : f32 to vector<16x128xf32>
    %320 = arith.cmpf oge, %290, %319 : vector<16x128xf32>
    %cst_131 = arith.constant 0.000000e+00 : f32
    %321 = vector.broadcast %cst_131 : f32 to vector<16x128xf32>
    %322 = arith.subf %321, %318 : vector<16x128xf32>
    %323 = arith.select %320, %318, %322 : vector<16x128xi1>, vector<16x128xf32>
    %cst_132 = arith.constant 1.000000e+00 : f32
    %324 = vector.broadcast %cst_132 : f32 to vector<16x128xf32>
    %325 = arith.addf %324, %323 : vector<16x128xf32>
    %326 = arith.mulf %288, %325 : vector<16x128xf32>
    %327 = arith.truncf %326 : vector<16x128xf32> to vector<16x128xbf16>
    %c0_133 = arith.constant 0 : index
    %c0_134 = arith.constant 0 : index
    %c0_135 = arith.constant 0 : index
    %328 = vector.load %arg15[%c0_133, %c0_134, %c0_135] : memref<2x128x32xbf16, #tpu.memory_space<vmem>>, vector<1x128x32xbf16>
    %329 = vector.shape_cast %328 : vector<1x128x32xbf16> to vector<128x32xbf16>
    %cst_136 = arith.constant dense<0.000000e+00> : vector<16x32xf32>
    %330 = tpu.matmul %327, %329, %cst_136 {dimension_numbers = #tpu.dot_dimension_numbers<[1], [0], [0], [1], [0, 0, 1, 1], [], []>} : vector<16x128xbf16>, vector<128x32xbf16>, vector<16x32xf32> -> vector<16x32xf32>
    %c0_137 = arith.constant 0 : index
    %c0_138 = arith.constant 0 : index
    %c0_139 = arith.constant 0 : index
    %331 = vector.load %arg16[%c0_137, %c0_138, %c0_139] : memref<2x1x32xf32, #tpu.memory_space<vmem>>, vector<1x1x32xf32>
    %332 = vector.shape_cast %331 : vector<1x1x32xf32> to vector<1x32xf32>
    %333 = vector.broadcast %332 : vector<1x32xf32> to vector<16x32xf32>
    %334 = arith.addf %330, %333 : vector<16x32xf32>
    %335 = arith.addf %136, %334 : vector<16x32xf32>
    %c1 = arith.constant 1 : index
    %c0_140 = arith.constant 0 : index
    %c0_141 = arith.constant 0 : index
    %336 = vector.load %arg2[%c1, %c0_140, %c0_141] : memref<2x1x32xf32, #tpu.memory_space<vmem>>, vector<1x1x32xf32>
    %337 = vector.shape_cast %336 : vector<1x1x32xf32> to vector<1x32xf32>
    %c1_142 = arith.constant 1 : index
    %c0_143 = arith.constant 0 : index
    %c0_144 = arith.constant 0 : index
    %338 = vector.load %arg3[%c1_142, %c0_143, %c0_144] : memref<2x1x32xf32, #tpu.memory_space<vmem>>, vector<1x1x32xf32>
    %339 = vector.shape_cast %338 : vector<1x1x32xf32> to vector<1x32xf32>
    %cst_145 = arith.constant dense<0.000000e+00> : vector<16xf32>
    %340 = vector.multi_reduction <add>, %335, %cst_145 [1] : vector<16x32xf32> to vector<16xf32>
    %341 = vector.shape_cast %340 : vector<16xf32> to vector<16x1xf32>
    %cst_146 = arith.constant 3.200000e+01 : f32
    %342 = vector.broadcast %cst_146 : f32 to vector<16x1xf32>
    %343 = arith.divf %341, %342 : vector<16x1xf32>
    %344 = vector.broadcast %343 : vector<16x1xf32> to vector<16x32xf32>
    %345 = arith.subf %335, %344 : vector<16x32xf32>
    %346 = arith.mulf %345, %345 : vector<16x32xf32>
    %cst_147 = arith.constant dense<0.000000e+00> : vector<16xf32>
    %347 = vector.multi_reduction <add>, %346, %cst_147 [1] : vector<16x32xf32> to vector<16xf32>
    %348 = vector.shape_cast %347 : vector<16xf32> to vector<16x1xf32>
    %cst_148 = arith.constant 3.200000e+01 : f32
    %349 = vector.broadcast %cst_148 : f32 to vector<16x1xf32>
    %350 = arith.divf %348, %349 : vector<16x1xf32>
    %351 = vector.broadcast %343 : vector<16x1xf32> to vector<16x32xf32>
    %352 = arith.subf %335, %351 : vector<16x32xf32>
    %cst_149 = arith.constant 9.99999974E-6 : f32
    %353 = vector.broadcast %cst_149 : f32 to vector<16x1xf32>
    %354 = arith.addf %350, %353 : vector<16x1xf32>
    %355 = math.rsqrt %354 : vector<16x1xf32>
    %356 = vector.broadcast %355 : vector<16x1xf32> to vector<16x32xf32>
    %357 = arith.mulf %352, %356 : vector<16x32xf32>
    %358 = vector.broadcast %337 : vector<1x32xf32> to vector<16x32xf32>
    %359 = arith.mulf %357, %358 : vector<16x32xf32>
    %360 = vector.broadcast %339 : vector<1x32xf32> to vector<16x32xf32>
    %361 = arith.addf %359, %360 : vector<16x32xf32>
    %362 = arith.truncf %361 : vector<16x32xf32> to vector<16x32xbf16>
    %c1_150 = arith.constant 1 : index
    %c0_151 = arith.constant 0 : index
    %c0_152 = arith.constant 0 : index
    %363 = vector.load %arg4[%c1_150, %c0_151, %c0_152] : memref<2x32x64xbf16, #tpu.memory_space<vmem>>, vector<1x32x64xbf16>
    %364 = vector.shape_cast %363 : vector<1x32x64xbf16> to vector<32x64xbf16>
    %cst_153 = arith.constant dense<0.000000e+00> : vector<16x64xf32>
    %365 = tpu.matmul %362, %364, %cst_153 {dimension_numbers = #tpu.dot_dimension_numbers<[1], [0], [0], [1], [0, 0, 1, 1], [], []>} : vector<16x32xbf16>, vector<32x64xbf16>, vector<16x64xf32> -> vector<16x64xf32>
    %c1_154 = arith.constant 1 : index
    %c0_155 = arith.constant 0 : index
    %c0_156 = arith.constant 0 : index
    %366 = vector.load %arg5[%c1_154, %c0_155, %c0_156] : memref<2x1x64xf32, #tpu.memory_space<vmem>>, vector<1x1x64xf32>
    %367 = vector.shape_cast %366 : vector<1x1x64xf32> to vector<1x64xf32>
    %368 = vector.broadcast %367 : vector<1x64xf32> to vector<16x64xf32>
    %369 = arith.addf %365, %368 : vector<16x64xf32>
    %370 = vector.extract_strided_slice %369 {offsets = [0, 0], sizes = [16, 32], strides = [1, 1]} : vector<16x64xf32> to vector<16x32xf32>
    %371 = vector.extract_strided_slice %369 {offsets = [0, 32], sizes = [16, 32], strides = [1, 1]} : vector<16x64xf32> to vector<16x32xf32>
    %372 = tpu.concatenate %370, %371 in 0 : vector<16x32xf32>, vector<16x32xf32> -> vector<32x32xf32>
    %cst_157 = arith.constant 0.594603539 : f32
    %373 = vector.broadcast %cst_157 : f32 to vector<32x32xf32>
    %374 = arith.mulf %372, %373 : vector<32x32xf32>
    %375 = arith.truncf %374 : vector<32x32xf32> to vector<32x32xbf16>
    %c1_158 = arith.constant 1 : index
    %c0_159 = arith.constant 0 : index
    %c0_160 = arith.constant 0 : index
    %376 = vector.load %arg10[%c1_158, %c0_159, %c0_160] : memref<2x32x64xbf16, #tpu.memory_space<vmem>>, vector<1x32x64xbf16>
    %377 = vector.shape_cast %376 : vector<1x32x64xbf16> to vector<32x64xbf16>
    %cst_161 = arith.constant dense<0.000000e+00> : vector<32x64xf32>
    %378 = tpu.matmul %375, %377, %cst_161 {dimension_numbers = #tpu.dot_dimension_numbers<[1], [0], [0], [1], [0, 0, 1, 1], [], []>} : vector<32x32xbf16>, vector<32x64xbf16>, vector<32x64xf32> -> vector<32x64xf32>
    %379 = arith.mulf %374, %374 : vector<32x32xf32>
    %cst_162 = arith.constant dense<0.000000e+00> : vector<32x64xf32>
    %380 = tpu.matmul %379, %2, %cst_162 {dimension_numbers = #tpu.dot_dimension_numbers<[1], [0], [0], [1], [0, 0, 1, 1], [], []>} : vector<32x32xf32>, vector<32x64xf32>, vector<32x64xf32> -> vector<32x64xf32>
    %cst_163 = arith.constant 5.000000e-01 : f32
    %381 = vector.broadcast %cst_163 : f32 to vector<32x64xf32>
    %382 = arith.mulf %381, %380 : vector<32x64xf32>
    %383 = vector.extract_strided_slice %378 {offsets = [0, 0], sizes = [32, 16], strides = [1, 1]} : vector<32x64xf32> to vector<32x16xf32>
    %cst_164 = arith.constant dense<0xFF800000> : vector<32xf32>
    %384 = vector.multi_reduction <maximumf>, %383, %cst_164 [1] : vector<32x16xf32> to vector<32xf32>
    %385 = vector.shape_cast %384 : vector<32xf32> to vector<32x1xf32>
    %386 = vector.extract_strided_slice %385 {offsets = [16, 0], sizes = [16, 1], strides = [1, 1]} : vector<32x1xf32> to vector<16x1xf32>
    %cst_165 = arith.constant dense<0xFF800000> : vector<1xf32>
    %387 = vector.multi_reduction <maximumf>, %386, %cst_165 [0] : vector<16x1xf32> to vector<1xf32>
    %388 = vector.shape_cast %387 : vector<1xf32> to vector<1x1xf32>
    %389 = vector.extract_strided_slice %385 {offsets = [0, 0], sizes = [16, 1], strides = [1, 1]} : vector<32x1xf32> to vector<16x1xf32>
    %390 = vector.shape_cast %388 : vector<1x1xf32> to vector<1x1xf32>
    %391 = vector.broadcast %390 : vector<1x1xf32> to vector<16x1xf32>
    %392 = tpu.concatenate %389, %391 in 0 : vector<16x1xf32>, vector<16x1xf32> -> vector<32x1xf32>
    %393 = vector.shape_cast %392 : vector<32x1xf32> to vector<32x1xf32>
    %394 = vector.broadcast %393 : vector<32x1xf32> to vector<32x16xf32>
    %395 = vector.extract_strided_slice %378 {offsets = [0, 16], sizes = [32, 16], strides = [1, 1]} : vector<32x64xf32> to vector<32x16xf32>
    %cst_166 = arith.constant dense<0xFF800000> : vector<32xf32>
    %396 = vector.multi_reduction <maximumf>, %395, %cst_166 [1] : vector<32x16xf32> to vector<32xf32>
    %397 = vector.shape_cast %396 : vector<32xf32> to vector<32x1xf32>
    %398 = vector.extract_strided_slice %397 {offsets = [16, 0], sizes = [16, 1], strides = [1, 1]} : vector<32x1xf32> to vector<16x1xf32>
    %cst_167 = arith.constant dense<0xFF800000> : vector<1xf32>
    %399 = vector.multi_reduction <maximumf>, %398, %cst_167 [0] : vector<16x1xf32> to vector<1xf32>
    %400 = vector.shape_cast %399 : vector<1xf32> to vector<1x1xf32>
    %401 = vector.extract_strided_slice %397 {offsets = [0, 0], sizes = [16, 1], strides = [1, 1]} : vector<32x1xf32> to vector<16x1xf32>
    %402 = vector.shape_cast %400 : vector<1x1xf32> to vector<1x1xf32>
    %403 = vector.broadcast %402 : vector<1x1xf32> to vector<16x1xf32>
    %404 = tpu.concatenate %401, %403 in 0 : vector<16x1xf32>, vector<16x1xf32> -> vector<32x1xf32>
    %405 = vector.shape_cast %404 : vector<32x1xf32> to vector<32x1xf32>
    %406 = vector.broadcast %405 : vector<32x1xf32> to vector<32x16xf32>
    %407 = vector.extract_strided_slice %378 {offsets = [0, 32], sizes = [32, 16], strides = [1, 1]} : vector<32x64xf32> to vector<32x16xf32>
    %cst_168 = arith.constant dense<0xFF800000> : vector<32xf32>
    %408 = vector.multi_reduction <maximumf>, %407, %cst_168 [1] : vector<32x16xf32> to vector<32xf32>
    %409 = vector.shape_cast %408 : vector<32xf32> to vector<32x1xf32>
    %410 = vector.extract_strided_slice %409 {offsets = [16, 0], sizes = [16, 1], strides = [1, 1]} : vector<32x1xf32> to vector<16x1xf32>
    %cst_169 = arith.constant dense<0xFF800000> : vector<1xf32>
    %411 = vector.multi_reduction <maximumf>, %410, %cst_169 [0] : vector<16x1xf32> to vector<1xf32>
    %412 = vector.shape_cast %411 : vector<1xf32> to vector<1x1xf32>
    %413 = vector.extract_strided_slice %409 {offsets = [0, 0], sizes = [16, 1], strides = [1, 1]} : vector<32x1xf32> to vector<16x1xf32>
    %414 = vector.shape_cast %412 : vector<1x1xf32> to vector<1x1xf32>
    %415 = vector.broadcast %414 : vector<1x1xf32> to vector<16x1xf32>
    %416 = tpu.concatenate %413, %415 in 0 : vector<16x1xf32>, vector<16x1xf32> -> vector<32x1xf32>
    %417 = vector.shape_cast %416 : vector<32x1xf32> to vector<32x1xf32>
    %418 = vector.broadcast %417 : vector<32x1xf32> to vector<32x16xf32>
    %419 = vector.extract_strided_slice %378 {offsets = [0, 48], sizes = [32, 16], strides = [1, 1]} : vector<32x64xf32> to vector<32x16xf32>
    %cst_170 = arith.constant dense<0xFF800000> : vector<32xf32>
    %420 = vector.multi_reduction <maximumf>, %419, %cst_170 [1] : vector<32x16xf32> to vector<32xf32>
    %421 = vector.shape_cast %420 : vector<32xf32> to vector<32x1xf32>
    %422 = vector.extract_strided_slice %421 {offsets = [16, 0], sizes = [16, 1], strides = [1, 1]} : vector<32x1xf32> to vector<16x1xf32>
    %cst_171 = arith.constant dense<0xFF800000> : vector<1xf32>
    %423 = vector.multi_reduction <maximumf>, %422, %cst_171 [0] : vector<16x1xf32> to vector<1xf32>
    %424 = vector.shape_cast %423 : vector<1xf32> to vector<1x1xf32>
    %425 = vector.extract_strided_slice %421 {offsets = [0, 0], sizes = [16, 1], strides = [1, 1]} : vector<32x1xf32> to vector<16x1xf32>
    %426 = vector.shape_cast %424 : vector<1x1xf32> to vector<1x1xf32>
    %427 = vector.broadcast %426 : vector<1x1xf32> to vector<16x1xf32>
    %428 = tpu.concatenate %425, %427 in 0 : vector<16x1xf32>, vector<16x1xf32> -> vector<32x1xf32>
    %429 = vector.shape_cast %428 : vector<32x1xf32> to vector<32x1xf32>
    %430 = vector.broadcast %429 : vector<32x1xf32> to vector<32x16xf32>
    %431 = tpu.concatenate %394, %406, %418, %430 in 1 : vector<32x16xf32>, vector<32x16xf32>, vector<32x16xf32>, vector<32x16xf32> -> vector<32x64xf32>
    %432 = arith.subf %378, %382 : vector<32x64xf32>
    %433 = arith.subf %432, %431 : vector<32x64xf32>
    %434 = math.exp %433 : vector<32x64xf32>
    %cst_172 = arith.constant 9.99999974E-5 : f32
    %435 = vector.broadcast %cst_172 : f32 to vector<32x64xf32>
    %436 = arith.addf %434, %435 : vector<32x64xf32>
    %cst_173 = arith.constant 2.500000e-01 : f32
    %437 = vector.broadcast %cst_173 : f32 to vector<32x64xf32>
    %438 = arith.mulf %437, %436 : vector<32x64xf32>
    %439 = vector.extract_strided_slice %438 {offsets = [0, 0], sizes = [16, 64], strides = [1, 1]} : vector<32x64xf32> to vector<16x64xf32>
    %440 = vector.extract_strided_slice %438 {offsets = [16, 0], sizes = [16, 64], strides = [1, 1]} : vector<32x64xf32> to vector<16x64xf32>
    %c1_174 = arith.constant 1 : index
    %c0_175 = arith.constant 0 : index
    %c0_176 = arith.constant 0 : index
    %441 = vector.load %arg6[%c1_174, %c0_175, %c0_176] : memref<2x32x32xbf16, #tpu.memory_space<vmem>>, vector<1x32x32xbf16>
    %442 = vector.shape_cast %441 : vector<1x32x32xbf16> to vector<32x32xbf16>
    %cst_177 = arith.constant dense<0.000000e+00> : vector<16x32xf32>
    %443 = tpu.matmul %362, %442, %cst_177 {dimension_numbers = #tpu.dot_dimension_numbers<[1], [0], [0], [1], [0, 0, 1, 1], [], []>} : vector<16x32xbf16>, vector<32x32xbf16>, vector<16x32xf32> -> vector<16x32xf32>
    %c1_178 = arith.constant 1 : index
    %c0_179 = arith.constant 0 : index
    %c0_180 = arith.constant 0 : index
    %444 = vector.load %arg7[%c1_178, %c0_179, %c0_180] : memref<2x1x32xf32, #tpu.memory_space<vmem>>, vector<1x1x32xf32>
    %445 = vector.shape_cast %444 : vector<1x1x32xf32> to vector<1x32xf32>
    %446 = vector.broadcast %445 : vector<1x32xf32> to vector<16x32xf32>
    %447 = arith.addf %443, %446 : vector<16x32xf32>
    %cst_181 = arith.constant dense<0.000000e+00> : vector<64xf32>
    %448 = vector.multi_reduction <add>, %440, %cst_181 [0] : vector<16x64xf32> to vector<64xf32>
    %449 = vector.shape_cast %448 : vector<64xf32> to vector<1x64xf32>
    %450 = vector.broadcast %449 : vector<1x64xf32> to vector<16x64xf32>
    %451 = arith.mulf %439, %450 : vector<16x64xf32>
    %cst_182 = arith.constant dense<0.000000e+00> : vector<16x32xf32>
    %452 = tpu.matmul %451, %3, %cst_182 {dimension_numbers = #tpu.dot_dimension_numbers<[1], [0], [0], [1], [0, 0, 1, 1], [], []>} : vector<16x64xf32>, vector<64x32xf32>, vector<16x32xf32> -> vector<16x32xf32>
    %cst_183 = arith.constant dense<0.000000e+00> : vector<64x32xf32>
    %453 = tpu.matmul %440, %447, %cst_183 {dimension_numbers = #tpu.dot_dimension_numbers<[0], [0], [1], [1], [0, 1, 1, 1], [], []>} : vector<16x64xf32>, vector<16x32xf32>, vector<64x32xf32> -> vector<64x32xf32>
    %454 = arith.mulf %453, %3 : vector<64x32xf32>
    %cst_184 = arith.constant dense<0.000000e+00> : vector<16x32xf32>
    %455 = tpu.matmul %439, %454, %cst_184 {dimension_numbers = #tpu.dot_dimension_numbers<[1], [0], [0], [1], [0, 0, 1, 1], [], []>} : vector<16x64xf32>, vector<64x32xf32>, vector<16x32xf32> -> vector<16x32xf32>
    %456 = tpu.reciprocal %452 {approx = true} : vector<16x32xf32> -> vector<16x32xf32>
    %457 = arith.mulf %455, %456 : vector<16x32xf32>
    %458 = arith.truncf %457 : vector<16x32xf32> to vector<16x32xbf16>
    %c1_185 = arith.constant 1 : index
    %c0_186 = arith.constant 0 : index
    %c0_187 = arith.constant 0 : index
    %459 = vector.load %arg8[%c1_185, %c0_186, %c0_187] : memref<2x32x32xbf16, #tpu.memory_space<vmem>>, vector<1x32x32xbf16>
    %460 = vector.shape_cast %459 : vector<1x32x32xbf16> to vector<32x32xbf16>
    %cst_188 = arith.constant dense<0.000000e+00> : vector<16x32xf32>
    %461 = tpu.matmul %458, %460, %cst_188 {dimension_numbers = #tpu.dot_dimension_numbers<[1], [0], [0], [1], [0, 0, 1, 1], [], []>} : vector<16x32xbf16>, vector<32x32xbf16>, vector<16x32xf32> -> vector<16x32xf32>
    %c1_189 = arith.constant 1 : index
    %c0_190 = arith.constant 0 : index
    %c0_191 = arith.constant 0 : index
    %462 = vector.load %arg9[%c1_189, %c0_190, %c0_191] : memref<2x1x32xf32, #tpu.memory_space<vmem>>, vector<1x1x32xf32>
    %463 = vector.shape_cast %462 : vector<1x1x32xf32> to vector<1x32xf32>
    %464 = vector.broadcast %463 : vector<1x32xf32> to vector<16x32xf32>
    %465 = arith.addf %461, %464 : vector<16x32xf32>
    %466 = arith.addf %335, %465 : vector<16x32xf32>
    %c1_192 = arith.constant 1 : index
    %c0_193 = arith.constant 0 : index
    %c0_194 = arith.constant 0 : index
    %467 = vector.load %arg2[%c1_192, %c0_193, %c0_194] : memref<2x1x32xf32, #tpu.memory_space<vmem>>, vector<1x1x32xf32>
    %468 = vector.shape_cast %467 : vector<1x1x32xf32> to vector<1x32xf32>
    %c1_195 = arith.constant 1 : index
    %c0_196 = arith.constant 0 : index
    %c0_197 = arith.constant 0 : index
    %469 = vector.load %arg3[%c1_195, %c0_196, %c0_197] : memref<2x1x32xf32, #tpu.memory_space<vmem>>, vector<1x1x32xf32>
    %470 = vector.shape_cast %469 : vector<1x1x32xf32> to vector<1x32xf32>
    %cst_198 = arith.constant dense<0.000000e+00> : vector<16xf32>
    %471 = vector.multi_reduction <add>, %466, %cst_198 [1] : vector<16x32xf32> to vector<16xf32>
    %472 = vector.shape_cast %471 : vector<16xf32> to vector<16x1xf32>
    %cst_199 = arith.constant 3.200000e+01 : f32
    %473 = vector.broadcast %cst_199 : f32 to vector<16x1xf32>
    %474 = arith.divf %472, %473 : vector<16x1xf32>
    %475 = vector.broadcast %474 : vector<16x1xf32> to vector<16x32xf32>
    %476 = arith.subf %466, %475 : vector<16x32xf32>
    %477 = arith.mulf %476, %476 : vector<16x32xf32>
    %cst_200 = arith.constant dense<0.000000e+00> : vector<16xf32>
    %478 = vector.multi_reduction <add>, %477, %cst_200 [1] : vector<16x32xf32> to vector<16xf32>
    %479 = vector.shape_cast %478 : vector<16xf32> to vector<16x1xf32>
    %cst_201 = arith.constant 3.200000e+01 : f32
    %480 = vector.broadcast %cst_201 : f32 to vector<16x1xf32>
    %481 = arith.divf %479, %480 : vector<16x1xf32>
    %482 = vector.broadcast %474 : vector<16x1xf32> to vector<16x32xf32>
    %483 = arith.subf %466, %482 : vector<16x32xf32>
    %cst_202 = arith.constant 9.99999974E-6 : f32
    %484 = vector.broadcast %cst_202 : f32 to vector<16x1xf32>
    %485 = arith.addf %481, %484 : vector<16x1xf32>
    %486 = math.rsqrt %485 : vector<16x1xf32>
    %487 = vector.broadcast %486 : vector<16x1xf32> to vector<16x32xf32>
    %488 = arith.mulf %483, %487 : vector<16x32xf32>
    %489 = vector.broadcast %468 : vector<1x32xf32> to vector<16x32xf32>
    %490 = arith.mulf %488, %489 : vector<16x32xf32>
    %491 = vector.broadcast %470 : vector<1x32xf32> to vector<16x32xf32>
    %492 = arith.addf %490, %491 : vector<16x32xf32>
    %493 = arith.truncf %492 : vector<16x32xf32> to vector<16x32xbf16>
    %c1_203 = arith.constant 1 : index
    %c0_204 = arith.constant 0 : index
    %c0_205 = arith.constant 0 : index
    %494 = vector.load %arg4[%c1_203, %c0_204, %c0_205] : memref<2x32x64xbf16, #tpu.memory_space<vmem>>, vector<1x32x64xbf16>
    %495 = vector.shape_cast %494 : vector<1x32x64xbf16> to vector<32x64xbf16>
    %cst_206 = arith.constant dense<0.000000e+00> : vector<16x64xf32>
    %496 = tpu.matmul %493, %495, %cst_206 {dimension_numbers = #tpu.dot_dimension_numbers<[1], [0], [0], [1], [0, 0, 1, 1], [], []>} : vector<16x32xbf16>, vector<32x64xbf16>, vector<16x64xf32> -> vector<16x64xf32>
    %c1_207 = arith.constant 1 : index
    %c0_208 = arith.constant 0 : index
    %c0_209 = arith.constant 0 : index
    %497 = vector.load %arg5[%c1_207, %c0_208, %c0_209] : memref<2x1x64xf32, #tpu.memory_space<vmem>>, vector<1x1x64xf32>
    %498 = vector.shape_cast %497 : vector<1x1x64xf32> to vector<1x64xf32>
    %499 = vector.broadcast %498 : vector<1x64xf32> to vector<16x64xf32>
    %500 = arith.addf %496, %499 : vector<16x64xf32>
    %501 = vector.extract_strided_slice %500 {offsets = [0, 0], sizes = [16, 32], strides = [1, 1]} : vector<16x64xf32> to vector<16x32xf32>
    %502 = vector.extract_strided_slice %500 {offsets = [0, 32], sizes = [16, 32], strides = [1, 1]} : vector<16x64xf32> to vector<16x32xf32>
    %503 = tpu.concatenate %501, %502 in 0 : vector<16x32xf32>, vector<16x32xf32> -> vector<32x32xf32>
    %cst_210 = arith.constant 0.594603539 : f32
    %504 = vector.broadcast %cst_210 : f32 to vector<32x32xf32>
    %505 = arith.mulf %503, %504 : vector<32x32xf32>
    %506 = arith.truncf %505 : vector<32x32xf32> to vector<32x32xbf16>
    %c1_211 = arith.constant 1 : index
    %c0_212 = arith.constant 0 : index
    %c0_213 = arith.constant 0 : index
    %507 = vector.load %arg10[%c1_211, %c0_212, %c0_213] : memref<2x32x64xbf16, #tpu.memory_space<vmem>>, vector<1x32x64xbf16>
    %508 = vector.shape_cast %507 : vector<1x32x64xbf16> to vector<32x64xbf16>
    %cst_214 = arith.constant dense<0.000000e+00> : vector<32x64xf32>
    %509 = tpu.matmul %506, %508, %cst_214 {dimension_numbers = #tpu.dot_dimension_numbers<[1], [0], [0], [1], [0, 0, 1, 1], [], []>} : vector<32x32xbf16>, vector<32x64xbf16>, vector<32x64xf32> -> vector<32x64xf32>
    %510 = arith.mulf %505, %505 : vector<32x32xf32>
    %cst_215 = arith.constant dense<0.000000e+00> : vector<32x64xf32>
    %511 = tpu.matmul %510, %2, %cst_215 {dimension_numbers = #tpu.dot_dimension_numbers<[1], [0], [0], [1], [0, 0, 1, 1], [], []>} : vector<32x32xf32>, vector<32x64xf32>, vector<32x64xf32> -> vector<32x64xf32>
    %cst_216 = arith.constant 5.000000e-01 : f32
    %512 = vector.broadcast %cst_216 : f32 to vector<32x64xf32>
    %513 = arith.mulf %512, %511 : vector<32x64xf32>
    %514 = vector.extract_strided_slice %509 {offsets = [0, 0], sizes = [32, 16], strides = [1, 1]} : vector<32x64xf32> to vector<32x16xf32>
    %cst_217 = arith.constant dense<0xFF800000> : vector<32xf32>
    %515 = vector.multi_reduction <maximumf>, %514, %cst_217 [1] : vector<32x16xf32> to vector<32xf32>
    %516 = vector.shape_cast %515 : vector<32xf32> to vector<32x1xf32>
    %517 = vector.extract_strided_slice %516 {offsets = [16, 0], sizes = [16, 1], strides = [1, 1]} : vector<32x1xf32> to vector<16x1xf32>
    %cst_218 = arith.constant dense<0xFF800000> : vector<1xf32>
    %518 = vector.multi_reduction <maximumf>, %517, %cst_218 [0] : vector<16x1xf32> to vector<1xf32>
    %519 = vector.shape_cast %518 : vector<1xf32> to vector<1x1xf32>
    %520 = vector.extract_strided_slice %516 {offsets = [0, 0], sizes = [16, 1], strides = [1, 1]} : vector<32x1xf32> to vector<16x1xf32>
    %521 = vector.shape_cast %519 : vector<1x1xf32> to vector<1x1xf32>
    %522 = vector.broadcast %521 : vector<1x1xf32> to vector<16x1xf32>
    %523 = tpu.concatenate %520, %522 in 0 : vector<16x1xf32>, vector<16x1xf32> -> vector<32x1xf32>
    %524 = vector.shape_cast %523 : vector<32x1xf32> to vector<32x1xf32>
    %525 = vector.broadcast %524 : vector<32x1xf32> to vector<32x16xf32>
    %526 = vector.extract_strided_slice %509 {offsets = [0, 16], sizes = [32, 16], strides = [1, 1]} : vector<32x64xf32> to vector<32x16xf32>
    %cst_219 = arith.constant dense<0xFF800000> : vector<32xf32>
    %527 = vector.multi_reduction <maximumf>, %526, %cst_219 [1] : vector<32x16xf32> to vector<32xf32>
    %528 = vector.shape_cast %527 : vector<32xf32> to vector<32x1xf32>
    %529 = vector.extract_strided_slice %528 {offsets = [16, 0], sizes = [16, 1], strides = [1, 1]} : vector<32x1xf32> to vector<16x1xf32>
    %cst_220 = arith.constant dense<0xFF800000> : vector<1xf32>
    %530 = vector.multi_reduction <maximumf>, %529, %cst_220 [0] : vector<16x1xf32> to vector<1xf32>
    %531 = vector.shape_cast %530 : vector<1xf32> to vector<1x1xf32>
    %532 = vector.extract_strided_slice %528 {offsets = [0, 0], sizes = [16, 1], strides = [1, 1]} : vector<32x1xf32> to vector<16x1xf32>
    %533 = vector.shape_cast %531 : vector<1x1xf32> to vector<1x1xf32>
    %534 = vector.broadcast %533 : vector<1x1xf32> to vector<16x1xf32>
    %535 = tpu.concatenate %532, %534 in 0 : vector<16x1xf32>, vector<16x1xf32> -> vector<32x1xf32>
    %536 = vector.shape_cast %535 : vector<32x1xf32> to vector<32x1xf32>
    %537 = vector.broadcast %536 : vector<32x1xf32> to vector<32x16xf32>
    %538 = vector.extract_strided_slice %509 {offsets = [0, 32], sizes = [32, 16], strides = [1, 1]} : vector<32x64xf32> to vector<32x16xf32>
    %cst_221 = arith.constant dense<0xFF800000> : vector<32xf32>
    %539 = vector.multi_reduction <maximumf>, %538, %cst_221 [1] : vector<32x16xf32> to vector<32xf32>
    %540 = vector.shape_cast %539 : vector<32xf32> to vector<32x1xf32>
    %541 = vector.extract_strided_slice %540 {offsets = [16, 0], sizes = [16, 1], strides = [1, 1]} : vector<32x1xf32> to vector<16x1xf32>
    %cst_222 = arith.constant dense<0xFF800000> : vector<1xf32>
    %542 = vector.multi_reduction <maximumf>, %541, %cst_222 [0] : vector<16x1xf32> to vector<1xf32>
    %543 = vector.shape_cast %542 : vector<1xf32> to vector<1x1xf32>
    %544 = vector.extract_strided_slice %540 {offsets = [0, 0], sizes = [16, 1], strides = [1, 1]} : vector<32x1xf32> to vector<16x1xf32>
    %545 = vector.shape_cast %543 : vector<1x1xf32> to vector<1x1xf32>
    %546 = vector.broadcast %545 : vector<1x1xf32> to vector<16x1xf32>
    %547 = tpu.concatenate %544, %546 in 0 : vector<16x1xf32>, vector<16x1xf32> -> vector<32x1xf32>
    %548 = vector.shape_cast %547 : vector<32x1xf32> to vector<32x1xf32>
    %549 = vector.broadcast %548 : vector<32x1xf32> to vector<32x16xf32>
    %550 = vector.extract_strided_slice %509 {offsets = [0, 48], sizes = [32, 16], strides = [1, 1]} : vector<32x64xf32> to vector<32x16xf32>
    %cst_223 = arith.constant dense<0xFF800000> : vector<32xf32>
    %551 = vector.multi_reduction <maximumf>, %550, %cst_223 [1] : vector<32x16xf32> to vector<32xf32>
    %552 = vector.shape_cast %551 : vector<32xf32> to vector<32x1xf32>
    %553 = vector.extract_strided_slice %552 {offsets = [16, 0], sizes = [16, 1], strides = [1, 1]} : vector<32x1xf32> to vector<16x1xf32>
    %cst_224 = arith.constant dense<0xFF800000> : vector<1xf32>
    %554 = vector.multi_reduction <maximumf>, %553, %cst_224 [0] : vector<16x1xf32> to vector<1xf32>
    %555 = vector.shape_cast %554 : vector<1xf32> to vector<1x1xf32>
    %556 = vector.extract_strided_slice %552 {offsets = [0, 0], sizes = [16, 1], strides = [1, 1]} : vector<32x1xf32> to vector<16x1xf32>
    %557 = vector.shape_cast %555 : vector<1x1xf32> to vector<1x1xf32>
    %558 = vector.broadcast %557 : vector<1x1xf32> to vector<16x1xf32>
    %559 = tpu.concatenate %556, %558 in 0 : vector<16x1xf32>, vector<16x1xf32> -> vector<32x1xf32>
    %560 = vector.shape_cast %559 : vector<32x1xf32> to vector<32x1xf32>
    %561 = vector.broadcast %560 : vector<32x1xf32> to vector<32x16xf32>
    %562 = tpu.concatenate %525, %537, %549, %561 in 1 : vector<32x16xf32>, vector<32x16xf32>, vector<32x16xf32>, vector<32x16xf32> -> vector<32x64xf32>
    %563 = arith.subf %509, %513 : vector<32x64xf32>
    %564 = arith.subf %563, %562 : vector<32x64xf32>
    %565 = math.exp %564 : vector<32x64xf32>
    %cst_225 = arith.constant 9.99999974E-5 : f32
    %566 = vector.broadcast %cst_225 : f32 to vector<32x64xf32>
    %567 = arith.addf %565, %566 : vector<32x64xf32>
    %cst_226 = arith.constant 2.500000e-01 : f32
    %568 = vector.broadcast %cst_226 : f32 to vector<32x64xf32>
    %569 = arith.mulf %568, %567 : vector<32x64xf32>
    %570 = vector.extract_strided_slice %569 {offsets = [0, 0], sizes = [16, 64], strides = [1, 1]} : vector<32x64xf32> to vector<16x64xf32>
    %571 = vector.extract_strided_slice %569 {offsets = [16, 0], sizes = [16, 64], strides = [1, 1]} : vector<32x64xf32> to vector<16x64xf32>
    %cst_227 = arith.constant dense<0.000000e+00> : vector<64xf32>
    %572 = vector.multi_reduction <add>, %571, %cst_227 [0] : vector<16x64xf32> to vector<64xf32>
    %573 = vector.shape_cast %572 : vector<64xf32> to vector<1x64xf32>
    %574 = vector.broadcast %573 : vector<1x64xf32> to vector<16x64xf32>
    %575 = arith.mulf %570, %574 : vector<16x64xf32>
    %cst_228 = arith.constant dense<0.000000e+00> : vector<16x64xf32>
    %576 = tpu.matmul %575, %4, %cst_228 {dimension_numbers = #tpu.dot_dimension_numbers<[1], [0], [0], [1], [0, 0, 1, 1], [], []>} : vector<16x64xf32>, vector<64x64xf32>, vector<16x64xf32> -> vector<16x64xf32>
    %577 = tpu.reciprocal %576 {approx = true} : vector<16x64xf32> -> vector<16x64xf32>
    %578 = arith.mulf %570, %577 : vector<16x64xf32>
    %cst_229 = arith.constant dense<0.000000e+00> : vector<16x16xf32>
    %579 = tpu.matmul %578, %571, %cst_229 {dimension_numbers = #tpu.dot_dimension_numbers<[1], [1], [0], [0], [0, 0, 1, 0], [], []>} : vector<16x64xf32>, vector<16x64xf32>, vector<16x16xf32> -> vector<16x16xf32>
    %cst_230 = arith.constant 2.500000e-01 : f32
    %580 = vector.broadcast %cst_230 : f32 to vector<16x16xf32>
    %581 = arith.mulf %579, %580 : vector<16x16xf32>
    %582 = arith.addf %252, %581 : vector<16x16xf32>
    %c1_231 = arith.constant 1 : index
    %c0_232 = arith.constant 0 : index
    %c0_233 = arith.constant 0 : index
    %583 = vector.load %arg11[%c1_231, %c0_232, %c0_233] : memref<2x1x32xf32, #tpu.memory_space<vmem>>, vector<1x1x32xf32>
    %584 = vector.shape_cast %583 : vector<1x1x32xf32> to vector<1x32xf32>
    %c1_234 = arith.constant 1 : index
    %c0_235 = arith.constant 0 : index
    %c0_236 = arith.constant 0 : index
    %585 = vector.load %arg12[%c1_234, %c0_235, %c0_236] : memref<2x1x32xf32, #tpu.memory_space<vmem>>, vector<1x1x32xf32>
    %586 = vector.shape_cast %585 : vector<1x1x32xf32> to vector<1x32xf32>
    %cst_237 = arith.constant dense<0.000000e+00> : vector<16xf32>
    %587 = vector.multi_reduction <add>, %466, %cst_237 [1] : vector<16x32xf32> to vector<16xf32>
    %588 = vector.shape_cast %587 : vector<16xf32> to vector<16x1xf32>
    %cst_238 = arith.constant 3.200000e+01 : f32
    %589 = vector.broadcast %cst_238 : f32 to vector<16x1xf32>
    %590 = arith.divf %588, %589 : vector<16x1xf32>
    %591 = vector.broadcast %590 : vector<16x1xf32> to vector<16x32xf32>
    %592 = arith.subf %466, %591 : vector<16x32xf32>
    %593 = arith.mulf %592, %592 : vector<16x32xf32>
    %cst_239 = arith.constant dense<0.000000e+00> : vector<16xf32>
    %594 = vector.multi_reduction <add>, %593, %cst_239 [1] : vector<16x32xf32> to vector<16xf32>
    %595 = vector.shape_cast %594 : vector<16xf32> to vector<16x1xf32>
    %cst_240 = arith.constant 3.200000e+01 : f32
    %596 = vector.broadcast %cst_240 : f32 to vector<16x1xf32>
    %597 = arith.divf %595, %596 : vector<16x1xf32>
    %598 = vector.broadcast %590 : vector<16x1xf32> to vector<16x32xf32>
    %599 = arith.subf %466, %598 : vector<16x32xf32>
    %cst_241 = arith.constant 9.99999974E-6 : f32
    %600 = vector.broadcast %cst_241 : f32 to vector<16x1xf32>
    %601 = arith.addf %597, %600 : vector<16x1xf32>
    %602 = math.rsqrt %601 : vector<16x1xf32>
    %603 = vector.broadcast %602 : vector<16x1xf32> to vector<16x32xf32>
    %604 = arith.mulf %599, %603 : vector<16x32xf32>
    %605 = vector.broadcast %584 : vector<1x32xf32> to vector<16x32xf32>
    %606 = arith.mulf %604, %605 : vector<16x32xf32>
    %607 = vector.broadcast %586 : vector<1x32xf32> to vector<16x32xf32>
    %608 = arith.addf %606, %607 : vector<16x32xf32>
    %609 = arith.truncf %608 : vector<16x32xf32> to vector<16x32xbf16>
    %c1_242 = arith.constant 1 : index
    %c0_243 = arith.constant 0 : index
    %c0_244 = arith.constant 0 : index
    %610 = vector.load %arg13[%c1_242, %c0_243, %c0_244] : memref<2x32x128xbf16, #tpu.memory_space<vmem>>, vector<1x32x128xbf16>
    %611 = vector.shape_cast %610 : vector<1x32x128xbf16> to vector<32x128xbf16>
    %cst_245 = arith.constant dense<0.000000e+00> : vector<16x128xf32>
    %612 = tpu.matmul %609, %611, %cst_245 {dimension_numbers = #tpu.dot_dimension_numbers<[1], [0], [0], [1], [0, 0, 1, 1], [], []>} : vector<16x32xbf16>, vector<32x128xbf16>, vector<16x128xf32> -> vector<16x128xf32>
    %c1_246 = arith.constant 1 : index
    %c0_247 = arith.constant 0 : index
    %c0_248 = arith.constant 0 : index
    %613 = vector.load %arg14[%c1_246, %c0_247, %c0_248] : memref<2x1x128xf32, #tpu.memory_space<vmem>>, vector<1x1x128xf32>
    %614 = vector.shape_cast %613 : vector<1x1x128xf32> to vector<1x128xf32>
    %615 = vector.broadcast %614 : vector<1x128xf32> to vector<16x128xf32>
    %616 = arith.addf %612, %615 : vector<16x128xf32>
    %cst_249 = arith.constant 5.000000e-01 : f32
    %617 = vector.broadcast %cst_249 : f32 to vector<16x128xf32>
    %618 = arith.mulf %617, %616 : vector<16x128xf32>
    %cst_250 = arith.constant 0.707106769 : f32
    %619 = vector.broadcast %cst_250 : f32 to vector<16x128xf32>
    %620 = arith.mulf %616, %619 : vector<16x128xf32>
    %621 = math.absf %620 : vector<16x128xf32>
    %cst_251 = arith.constant 0.327591091 : f32
    %622 = vector.broadcast %cst_251 : f32 to vector<16x128xf32>
    %623 = arith.mulf %622, %621 : vector<16x128xf32>
    %cst_252 = arith.constant 1.000000e+00 : f32
    %624 = vector.broadcast %cst_252 : f32 to vector<16x128xf32>
    %625 = arith.addf %624, %623 : vector<16x128xf32>
    %cst_253 = arith.constant 1.000000e+00 : f32
    %626 = vector.broadcast %cst_253 : f32 to vector<16x128xf32>
    %627 = arith.divf %626, %625 : vector<16x128xf32>
    %cst_254 = arith.constant 1.06140542 : f32
    %628 = vector.broadcast %cst_254 : f32 to vector<16x128xf32>
    %629 = arith.mulf %628, %627 : vector<16x128xf32>
    %cst_255 = arith.constant -1.45315206 : f32
    %630 = vector.broadcast %cst_255 : f32 to vector<16x128xf32>
    %631 = arith.addf %629, %630 : vector<16x128xf32>
    %632 = arith.mulf %631, %627 : vector<16x128xf32>
    %cst_256 = arith.constant 1.42141378 : f32
    %633 = vector.broadcast %cst_256 : f32 to vector<16x128xf32>
    %634 = arith.addf %632, %633 : vector<16x128xf32>
    %635 = arith.mulf %634, %627 : vector<16x128xf32>
    %cst_257 = arith.constant -0.284496725 : f32
    %636 = vector.broadcast %cst_257 : f32 to vector<16x128xf32>
    %637 = arith.addf %635, %636 : vector<16x128xf32>
    %638 = arith.mulf %637, %627 : vector<16x128xf32>
    %cst_258 = arith.constant 0.254829586 : f32
    %639 = vector.broadcast %cst_258 : f32 to vector<16x128xf32>
    %640 = arith.addf %638, %639 : vector<16x128xf32>
    %641 = arith.mulf %640, %627 : vector<16x128xf32>
    %cst_259 = arith.constant 0.000000e+00 : f32
    %642 = vector.broadcast %cst_259 : f32 to vector<16x128xf32>
    %643 = arith.subf %642, %621 : vector<16x128xf32>
    %644 = arith.mulf %643, %621 : vector<16x128xf32>
    %645 = math.exp %644 : vector<16x128xf32>
    %646 = arith.mulf %641, %645 : vector<16x128xf32>
    %cst_260 = arith.constant 1.000000e+00 : f32
    %647 = vector.broadcast %cst_260 : f32 to vector<16x128xf32>
    %648 = arith.subf %647, %646 : vector<16x128xf32>
    %cst_261 = arith.constant 0.000000e+00 : f32
    %649 = vector.broadcast %cst_261 : f32 to vector<16x128xf32>
    %650 = arith.cmpf oge, %620, %649 : vector<16x128xf32>
    %cst_262 = arith.constant 0.000000e+00 : f32
    %651 = vector.broadcast %cst_262 : f32 to vector<16x128xf32>
    %652 = arith.subf %651, %648 : vector<16x128xf32>
    %653 = arith.select %650, %648, %652 : vector<16x128xi1>, vector<16x128xf32>
    %cst_263 = arith.constant 1.000000e+00 : f32
    %654 = vector.broadcast %cst_263 : f32 to vector<16x128xf32>
    %655 = arith.addf %654, %653 : vector<16x128xf32>
    %656 = arith.mulf %618, %655 : vector<16x128xf32>
    %657 = arith.truncf %656 : vector<16x128xf32> to vector<16x128xbf16>
    %c1_264 = arith.constant 1 : index
    %c0_265 = arith.constant 0 : index
    %c0_266 = arith.constant 0 : index
    %658 = vector.load %arg15[%c1_264, %c0_265, %c0_266] : memref<2x128x32xbf16, #tpu.memory_space<vmem>>, vector<1x128x32xbf16>
    %659 = vector.shape_cast %658 : vector<1x128x32xbf16> to vector<128x32xbf16>
    %cst_267 = arith.constant dense<0.000000e+00> : vector<16x32xf32>
    %660 = tpu.matmul %657, %659, %cst_267 {dimension_numbers = #tpu.dot_dimension_numbers<[1], [0], [0], [1], [0, 0, 1, 1], [], []>} : vector<16x128xbf16>, vector<128x32xbf16>, vector<16x32xf32> -> vector<16x32xf32>
    %c1_268 = arith.constant 1 : index
    %c0_269 = arith.constant 0 : index
    %c0_270 = arith.constant 0 : index
    %661 = vector.load %arg16[%c1_268, %c0_269, %c0_270] : memref<2x1x32xf32, #tpu.memory_space<vmem>>, vector<1x1x32xf32>
    %662 = vector.shape_cast %661 : vector<1x1x32xf32> to vector<1x32xf32>
    %663 = vector.broadcast %662 : vector<1x32xf32> to vector<16x32xf32>
    %664 = arith.addf %660, %663 : vector<16x32xf32>
    %665 = arith.addf %466, %664 : vector<16x32xf32>
    %c0_271 = arith.constant 0 : index
    %c0_272 = arith.constant 0 : index
    %c0_273 = arith.constant 0 : index
    %666 = vector.load %arg20[%c0_271, %c0_272, %c0_273] : memref<1x16x32xf32, #tpu.memory_space<vmem>>, vector<1x16x32xf32>
    %667 = vector.shape_cast %666 : vector<1x16x32xf32> to vector<16x32xf32>
    %668 = vector.shape_cast %665 : vector<16x32xf32> to vector<1x16x32xf32>
    tpu.vector_store %arg20[%c0_271, %c0_272, %c0_273], %668 {strides = array<i32>} : memref<1x16x32xf32, #tpu.memory_space<vmem>>, vector<1x16x32xf32>,
    %cst_274 = arith.constant 5.000000e-01 : f32
    %669 = vector.broadcast %cst_274 : f32 to vector<16x16xf32>
    %670 = arith.mulf %582, %669 : vector<16x16xf32>
    %c0_275 = arith.constant 0 : index
    %c0_276 = arith.constant 0 : index
    %c0_277 = arith.constant 0 : index
    %671 = vector.load %arg21[%c0_275, %c0_276, %c0_277] : memref<1x16x16xf32, #tpu.memory_space<vmem>>, vector<1x16x16xf32>
    %672 = vector.shape_cast %671 : vector<1x16x16xf32> to vector<16x16xf32>
    %673 = vector.shape_cast %670 : vector<16x16xf32> to vector<1x16x16xf32>
    tpu.vector_store %arg21[%c0_275, %c0_276, %c0_277], %673 {strides = array<i32>} : memref<1x16x16xf32, #tpu.memory_space<vmem>>, vector<1x16x16xf32>,
    return
  }
  func.func @transform_0(%arg0: i32) -> (i32, i32, i32) {
    %c0_i32 = arith.constant 0 : i32
    %c0_i32_0 = arith.constant 0 : i32
    %c0_i32_1 = arith.constant 0 : i32
    return %arg0, %c0_i32, %c0_i32_0 : i32, i32, i32
  }
  func.func @transform_1(%arg0: i32) -> (i32, i32, i32) {
    %c0_i32 = arith.constant 0 : i32
    %c0_i32_0 = arith.constant 0 : i32
    %c0_i32_1 = arith.constant 0 : i32
    %c0_i32_2 = arith.constant 0 : i32
    return %c0_i32, %c0_i32_0, %c0_i32_1 : i32, i32, i32
  }
  func.func @transform_2(%arg0: i32) -> (i32, i32, i32) {
    %c0_i32 = arith.constant 0 : i32
    %c0_i32_0 = arith.constant 0 : i32
    %c0_i32_1 = arith.constant 0 : i32
    %c0_i32_2 = arith.constant 0 : i32
    return %c0_i32, %c0_i32_0, %c0_i32_1 : i32, i32, i32
  }
  func.func @transform_3(%arg0: i32) -> (i32, i32, i32) {
    %c0_i32 = arith.constant 0 : i32
    %c0_i32_0 = arith.constant 0 : i32
    %c0_i32_1 = arith.constant 0 : i32
    %c0_i32_2 = arith.constant 0 : i32
    return %c0_i32, %c0_i32_0, %c0_i32_1 : i32, i32, i32
  }
  func.func @transform_4(%arg0: i32) -> (i32, i32, i32) {
    %c0_i32 = arith.constant 0 : i32
    %c0_i32_0 = arith.constant 0 : i32
    %c0_i32_1 = arith.constant 0 : i32
    %c0_i32_2 = arith.constant 0 : i32
    return %c0_i32, %c0_i32_0, %c0_i32_1 : i32, i32, i32
  }
  func.func @transform_5(%arg0: i32) -> (i32, i32, i32) {
    %c0_i32 = arith.constant 0 : i32
    %c0_i32_0 = arith.constant 0 : i32
    %c0_i32_1 = arith.constant 0 : i32
    %c0_i32_2 = arith.constant 0 : i32
    return %c0_i32, %c0_i32_0, %c0_i32_1 : i32, i32, i32
  }
  func.func @transform_6(%arg0: i32) -> (i32, i32, i32) {
    %c0_i32 = arith.constant 0 : i32
    %c0_i32_0 = arith.constant 0 : i32
    %c0_i32_1 = arith.constant 0 : i32
    %c0_i32_2 = arith.constant 0 : i32
    return %c0_i32, %c0_i32_0, %c0_i32_1 : i32, i32, i32
  }
  func.func @transform_7(%arg0: i32) -> (i32, i32, i32) {
    %c0_i32 = arith.constant 0 : i32
    %c0_i32_0 = arith.constant 0 : i32
    %c0_i32_1 = arith.constant 0 : i32
    %c0_i32_2 = arith.constant 0 : i32
    return %c0_i32, %c0_i32_0, %c0_i32_1 : i32, i32, i32
  }
  func.func @transform_8(%arg0: i32) -> (i32, i32, i32) {
    %c0_i32 = arith.constant 0 : i32
    %c0_i32_0 = arith.constant 0 : i32
    %c0_i32_1 = arith.constant 0 : i32
    %c0_i32_2 = arith.constant 0 : i32
    return %c0_i32, %c0_i32_0, %c0_i32_1 : i32, i32, i32
  }
  func.func @transform_9(%arg0: i32) -> (i32, i32, i32) {
    %c0_i32 = arith.constant 0 : i32
    %c0_i32_0 = arith.constant 0 : i32
    %c0_i32_1 = arith.constant 0 : i32
    %c0_i32_2 = arith.constant 0 : i32
    return %c0_i32, %c0_i32_0, %c0_i32_1 : i32, i32, i32
  }
  func.func @transform_10(%arg0: i32) -> (i32, i32, i32) {
    %c0_i32 = arith.constant 0 : i32
    %c0_i32_0 = arith.constant 0 : i32
    %c0_i32_1 = arith.constant 0 : i32
    %c0_i32_2 = arith.constant 0 : i32
    return %c0_i32, %c0_i32_0, %c0_i32_1 : i32, i32, i32
  }
  func.func @transform_11(%arg0: i32) -> (i32, i32, i32) {
    %c0_i32 = arith.constant 0 : i32
    %c0_i32_0 = arith.constant 0 : i32
    %c0_i32_1 = arith.constant 0 : i32
    %c0_i32_2 = arith.constant 0 : i32
    return %c0_i32, %c0_i32_0, %c0_i32_1 : i32, i32, i32
  }
  func.func @transform_12(%arg0: i32) -> (i32, i32, i32) {
    %c0_i32 = arith.constant 0 : i32
    %c0_i32_0 = arith.constant 0 : i32
    %c0_i32_1 = arith.constant 0 : i32
    %c0_i32_2 = arith.constant 0 : i32
    return %c0_i32, %c0_i32_0, %c0_i32_1 : i32, i32, i32
  }
  func.func @transform_13(%arg0: i32) -> (i32, i32, i32) {
    %c0_i32 = arith.constant 0 : i32
    %c0_i32_0 = arith.constant 0 : i32
    %c0_i32_1 = arith.constant 0 : i32
    %c0_i32_2 = arith.constant 0 : i32
    return %c0_i32, %c0_i32_0, %c0_i32_1 : i32, i32, i32
  }
  func.func @transform_14(%arg0: i32) -> (i32, i32, i32) {
    %c0_i32 = arith.constant 0 : i32
    %c0_i32_0 = arith.constant 0 : i32
    %c0_i32_1 = arith.constant 0 : i32
    %c0_i32_2 = arith.constant 0 : i32
    return %c0_i32, %c0_i32_0, %c0_i32_1 : i32, i32, i32
  }
  func.func @transform_15(%arg0: i32) -> (i32, i32, i32) {
    %c0_i32 = arith.constant 0 : i32
    %c0_i32_0 = arith.constant 0 : i32
    %c0_i32_1 = arith.constant 0 : i32
    %c0_i32_2 = arith.constant 0 : i32
    return %c0_i32, %c0_i32_0, %c0_i32_1 : i32, i32, i32
  }
  func.func @transform_16(%arg0: i32) -> (i32, i32) {
    %c0_i32 = arith.constant 0 : i32
    %c0_i32_0 = arith.constant 0 : i32
    %c0_i32_1 = arith.constant 0 : i32
    return %c0_i32, %c0_i32_0 : i32, i32
  }
  func.func @transform_17(%arg0: i32) -> (i32, i32) {
    %c0_i32 = arith.constant 0 : i32
    %c0_i32_0 = arith.constant 0 : i32
    %c0_i32_1 = arith.constant 0 : i32
    return %c0_i32, %c0_i32_0 : i32, i32
  }
  func.func @transform_18(%arg0: i32) -> (i32, i32) {
    %c0_i32 = arith.constant 0 : i32
    %c0_i32_0 = arith.constant 0 : i32
    %c0_i32_1 = arith.constant 0 : i32
    return %c0_i32, %c0_i32_0 : i32, i32
  }
  func.func @transform_19(%arg0: i32) -> (i32, i32, i32) {
    %c0_i32 = arith.constant 0 : i32
    %c0_i32_0 = arith.constant 0 : i32
    %c0_i32_1 = arith.constant 0 : i32
    return %arg0, %c0_i32, %c0_i32_0 : i32, i32, i32
  }
  func.func @transform_20(%arg0: i32) -> (i32, i32, i32) {
    %c0_i32 = arith.constant 0 : i32
    %c0_i32_0 = arith.constant 0 : i32
    %c0_i32_1 = arith.constant 0 : i32
    return %arg0, %c0_i32, %c0_i32_0 : i32, i32, i32
  }
}

</mosaic_0001>

<llo_original>
// kernel: _lambda_.1
$region0: #{_lambda_.1}
  #allocation0 [shape = 'u32[]', space=smem, size = 0x4, offset = 0x4, fixed_abs, tag = 'smem constant byte address 0x4 - core index']
  #allocation1 [shape = 'u32[72,128]{1,0:T(1,128)}', space=vmem, size = 0x9000, scoped, tag = 'internal scratch']
  %s0 = inlined_call_operand.hbm [shape: f32[1,16,32], index: 0, kind: input, shape index: {}]
  %s1 = inlined_call_operand.vmem [shape: f32[2,1,32], index: 1, kind: input, shape index: {}]
  %s2 = inlined_call_operand.vmem [shape: f32[2,1,32], index: 2, kind: input, shape index: {}]
  %s3 = inlined_call_operand.vmem [shape: bf16[2,32,64], index: 3, kind: input, shape index: {}]
  %s4 = inlined_call_operand.hbm [shape: f32[2,1,64], index: 4, kind: input, shape index: {}]
  %s5 = inlined_call_operand.vmem [shape: bf16[2,32,32], index: 5, kind: input, shape index: {}]
  %s6 = inlined_call_operand.hbm [shape: f32[2,1,32], index: 6, kind: input, shape index: {}]
  %s7 = inlined_call_operand.vmem [shape: bf16[2,32,32], index: 7, kind: input, shape index: {}]
  %s8 = inlined_call_operand.hbm [shape: f32[2,1,32], index: 8, kind: input, shape index: {}]
  %s9 = inlined_call_operand.vmem [shape: bf16[2,32,64], index: 9, kind: input, shape index: {}]
  %s10 = inlined_call_operand.vmem [shape: f32[2,1,32], index: 10, kind: input, shape index: {}]
  %s11 = inlined_call_operand.vmem [shape: f32[2,1,32], index: 11, kind: input, shape index: {}]
  %s12 = inlined_call_operand.vmem [shape: bf16[2,32,128], index: 12, kind: input, shape index: {}]
  %s13 = inlined_call_operand.hbm [shape: f32[2,1,128], index: 13, kind: input, shape index: {}]
  %s14 = inlined_call_operand.vmem [shape: bf16[2,128,32], index: 14, kind: input, shape index: {}]
  %s15 = inlined_call_operand.hbm [shape: f32[2,1,32], index: 15, kind: input, shape index: {}]
  %s16 = inlined_call_operand.hbm [shape: f32[32,64], index: 16, kind: input, shape index: {}]
  %s17 = inlined_call_operand.vmem [shape: f32[64,32], index: 17, kind: input, shape index: {}]
  %s18 = inlined_call_operand.vmem [shape: f32[64,64], index: 18, kind: input, shape index: {}]
  %s19 = inlined_call_operand.hbm [shape: f32[1,16,32], index: 19, kind: output, shape index: {0}]
  %s20 = inlined_call_operand.hbm [shape: f32[1,16,16], index: 20, kind: output, shape index: {1}]
  %21 = xla_tuple %s19, %s20
  %s22 = sld [smem:[#allocation0]]
  $region122: #{_lambda_.1} parent=0
    _
  %s24 = ssub.s32 1, %s22
  %s25 = scalar_select 0, %s24, %s22
  $region1: #{_lambda_.1} parent=0
    #allocation2 [shape = 'u8[8192]{0}', space=vmem, size = 0x2000, scoped, tag = 'input window, operand 0, single buffered']
    #allocation3 [shape = 's32[1]{0}', space=sflag, size = 0x4, scoped, tag = 'scoped memory for _lambda_.1']
    #allocation4 [shape = 's32[1]{0}', space=sflag, size = 0x4, scoped, tag = 'scoped memory for _lambda_.1']
    #allocation5 [shape = 'u8[1024]{0}', space=vmem, size = 0x400, scoped, tag = 'input window, operand 4, single buffered']
    #allocation6 [shape = 's32[1]{0}', space=sflag, size = 0x4, scoped, tag = 'scoped memory for _lambda_.1']
    #allocation7 [shape = 'u8[1024]{0}', space=vmem, size = 0x400, scoped, tag = 'input window, operand 6, single buffered']
    #allocation8 [shape = 'u8[1024]{0}', space=vmem, size = 0x400, scoped, tag = 'input window, operand 8, single buffered']
    #allocation9 [shape = 's32[1]{0}', space=sflag, size = 0x4, scoped, tag = 'scoped memory for _lambda_.1']
    #allocation10 [shape = 'u8[1024]{0}', space=vmem, size = 0x400, scoped, tag = 'input window, operand 13, single buffered']
    #allocation11 [shape = 'u8[1024]{0}', space=vmem, size = 0x400, scoped, tag = 'input window, operand 15, single buffered']
    #allocation12 [shape = 's32[1]{0}', space=sflag, size = 0x4, scoped, tag = 'scoped memory for _lambda_.1']
    #allocation13 [shape = 'u8[16384]{0}', space=vmem, size = 0x4000, scoped, tag = 'input window, operand 16, single buffered']
    #allocation14 [shape = 'u8[8192]{0}', space=vmem, size = 0x2000, scoped, tag = 'output window, operand 0, single buffered']
    #allocation15 [shape = 'u8[8192]{0}', space=vmem, size = 0x2000, scoped, tag = 'output window, operand 1, single buffered']
    #allocation16 [shape = 's32[1]{0}', space=sflag, size = 0x4, scoped, tag = 'scoped memory for _lambda_.1']
    %26 = vsyncpa [#allocation3], 0
    %27 = vsyncpa [#allocation6], 0
    %28 = vsyncpa [#allocation9], 0
    %29 = vsyncpa [#allocation12], 0
    %30 = vsyncpa [#allocation4], 0
    %31 = vsyncpa [#allocation16], 0
    // Predicated region
    $region2: #{_lambda_.1} parent=1 // pred_check
      _
    $region3: #{_lambda_.1} parent=1 // pred_check_branch
      %33 = sbr.rel (0) target = $region5
    $region4: #{_lambda_.1} parent=1 // pred_region
      %35 = vsyncadd [#allocation3], 0
      %s36 = sshll.u32 %s0, 4
      %s37 = int_to_ptr.hbm [resolvable:$true] %s36
      %s38 = sshll.u32 [#allocation2], 4
      %s39 = int_to_ptr.vmem [resolvable:$true] %s38
      %44 = dma.hbm_to_vmem [thread:$0]  %s37, 256, %s39, [#allocation3], 128, 128, 8
    $region5: #{_lambda_.1} parent=1 // pred_fallthru
      _
    // Predicated region
    $region6: #{_lambda_.1} parent=1 // pred_check
      _
    $region7: #{_lambda_.1} parent=1 // pred_check_branch
      %46 = sbr.rel (0) target = $region9
    $region8: #{_lambda_.1} parent=1 // pred_region
      _
    $region9: #{_lambda_.1} parent=1 // pred_fallthru
      _
    // Predicated region
    $region10: #{_lambda_.1} parent=1 // pred_check
      _
    $region11: #{_lambda_.1} parent=1 // pred_check_branch
      %48 = sbr.rel (0) target = $region13
    $region12: #{_lambda_.1} parent=1 // pred_region
      _
    $region13: #{_lambda_.1} parent=1 // pred_fallthru
      _
    // Predicated region
    $region14: #{_lambda_.1} parent=1 // pred_check
      _
    $region15: #{_lambda_.1} parent=1 // pred_check_branch
      %50 = sbr.rel (0) target = $region17
    $region16: #{_lambda_.1} parent=1 // pred_region
      _
    $region17: #{_lambda_.1} parent=1 // pred_fallthru
      _
    // Predicated region
    $region18: #{_lambda_.1} parent=1 // pred_check
      _
    $region19: #{_lambda_.1} parent=1 // pred_check_branch
      %52 = sbr.rel (0) target = $region21
    $region20: #{_lambda_.1} parent=1 // pred_region
      %54 = vsyncadd [#allocation6], 0
      %s55 = sshll.u32 %s4, 4
      %s56 = int_to_ptr.hbm [resolvable:$true] %s55
      %s57 = sshll.u32 [#allocation5], 4
      %s58 = int_to_ptr.vmem [resolvable:$true] %s57
      %63 = dma.hbm_to_vmem [thread:$0]  %s56, 32, %s58, [#allocation6], 16, 16, 1
    $region21: #{_lambda_.1} parent=1 // pred_fallthru
      _
    // Predicated region
    $region22: #{_lambda_.1} parent=1 // pred_check
      _
    $region23: #{_lambda_.1} parent=1 // pred_check_branch
      %65 = sbr.rel (0) target = $region25
    $region24: #{_lambda_.1} parent=1 // pred_region
      _
    $region25: #{_lambda_.1} parent=1 // pred_fallthru
      _
    // Predicated region
    $region26: #{_lambda_.1} parent=1 // pred_check
      _
    $region27: #{_lambda_.1} parent=1 // pred_check_branch
      %67 = sbr.rel (0) target = $region29
    $region28: #{_lambda_.1} parent=1 // pred_region
      %69 = vsyncadd [#allocation6], 0
      %s70 = sshll.u32 %s6, 4
      %s71 = int_to_ptr.hbm [resolvable:$true] %s70
      %s72 = sshll.u32 [#allocation7], 4
      %s73 = int_to_ptr.vmem [resolvable:$true] %s72
      %78 = dma.hbm_to_vmem [thread:$0]  %s71, 32, %s73, [#allocation6], 16, 16, 1
    $region29: #{_lambda_.1} parent=1 // pred_fallthru
      _
    // Predicated region
    $region30: #{_lambda_.1} parent=1 // pred_check
      _
    $region31: #{_lambda_.1} parent=1 // pred_check_branch
      %80 = sbr.rel (0) target = $region33
    $region32: #{_lambda_.1} parent=1 // pred_region
      _
    $region33: #{_lambda_.1} parent=1 // pred_fallthru
      _
    // Predicated region
    $region34: #{_lambda_.1} parent=1 // pred_check
      _
    $region35: #{_lambda_.1} parent=1 // pred_check_branch
      %82 = sbr.rel (0) target = $region37
    $region36: #{_lambda_.1} parent=1 // pred_region
      %84 = vsyncadd [#allocation9], 0
      %s85 = sshll.u32 %s8, 4
      %s86 = int_to_ptr.hbm [resolvable:$true] %s85
      %s87 = sshll.u32 [#allocation8], 4
      %s88 = int_to_ptr.vmem [resolvable:$true] %s87
      %93 = dma.hbm_to_vmem [thread:$0]  %s86, 32, %s88, [#allocation9], 16, 16, 1
    $region37: #{_lambda_.1} parent=1 // pred_fallthru
      _
    // Predicated region
    $region38: #{_lambda_.1} parent=1 // pred_check
      _
    $region39: #{_lambda_.1} parent=1 // pred_check_branch
      %95 = sbr.rel (0) target = $region41
    $region40: #{_lambda_.1} parent=1 // pred_region
      _
    $region41: #{_lambda_.1} parent=1 // pred_fallthru
      _
    // Predicated region
    $region42: #{_lambda_.1} parent=1 // pred_check
      _
    $region43: #{_lambda_.1} parent=1 // pred_check_branch
      %97 = sbr.rel (0) target = $region45
    $region44: #{_lambda_.1} parent=1 // pred_region
      _
    $region45: #{_lambda_.1} parent=1 // pred_fallthru
      _
    // Predicated region
    $region46: #{_lambda_.1} parent=1 // pred_check
      _
    $region47: #{_lambda_.1} parent=1 // pred_check_branch
      %99 = sbr.rel (0) target = $region49
    $region48: #{_lambda_.1} parent=1 // pred_region
      _
    $region49: #{_lambda_.1} parent=1 // pred_fallthru
      _
    // Predicated region
    $region50: #{_lambda_.1} parent=1 // pred_check
      _
    $region51: #{_lambda_.1} parent=1 // pred_check_branch
      %101 = sbr.rel (0) target = $region53
    $region52: #{_lambda_.1} parent=1 // pred_region
      _
    $region53: #{_lambda_.1} parent=1 // pred_fallthru
      _
    // Predicated region
    $region54: #{_lambda_.1} parent=1 // pred_check
      _
    $region55: #{_lambda_.1} parent=1 // pred_check_branch
      %103 = sbr.rel (0) target = $region57
    $region56: #{_lambda_.1} parent=1 // pred_region
      %105 = vsyncadd [#allocation9], 0
      %s106 = sshll.u32 %s13, 4
      %s107 = int_to_ptr.hbm [resolvable:$true] %s106
      %s108 = sshll.u32 [#allocation10], 4
      %s109 = int_to_ptr.vmem [resolvable:$true] %s108
      %114 = dma.hbm_to_vmem [thread:$0]  %s107, 32, %s109, [#allocation9], 16, 16, 1
    $region57: #{_lambda_.1} parent=1 // pred_fallthru
      _
    // Predicated region
    $region58: #{_lambda_.1} parent=1 // pred_check
      _
    $region59: #{_lambda_.1} parent=1 // pred_check_branch
      %116 = sbr.rel (0) target = $region61
    $region60: #{_lambda_.1} parent=1 // pred_region
      _
    $region61: #{_lambda_.1} parent=1 // pred_fallthru
      _
    // Predicated region
    $region62: #{_lambda_.1} parent=1 // pred_check
      _
    $region63: #{_lambda_.1} parent=1 // pred_check_branch
      %118 = sbr.rel (0) target = $region65
    $region64: #{_lambda_.1} parent=1 // pred_region
      %120 = vsyncadd [#allocation12], 0
      %s121 = sshll.u32 %s15, 4
      %s122 = int_to_ptr.hbm [resolvable:$true] %s121
      %s123 = sshll.u32 [#allocation11], 4
      %s124 = int_to_ptr.vmem [resolvable:$true] %s123
      %129 = dma.hbm_to_vmem [thread:$0]  %s122, 32, %s124, [#allocation12], 16, 16, 1
    $region65: #{_lambda_.1} parent=1 // pred_fallthru
      _
    // Predicated region
    $region66: #{_lambda_.1} parent=1 // pred_check
      _
    $region67: #{_lambda_.1} parent=1 // pred_check_branch
      %131 = sbr.rel (0) target = $region69
    $region68: #{_lambda_.1} parent=1 // pred_region
      %133 = vsyncadd [#allocation12], 0
      %s134 = sshll.u32 %s16, 4
      %s135 = int_to_ptr.hbm [resolvable:$true] %s134
      %s136 = sshll.u32 [#allocation13], 4
      %s137 = int_to_ptr.vmem [resolvable:$true] %s136
      %142 = dma.hbm_to_vmem [thread:$0]  %s135, 512, %s137, [#allocation12], 128, 128, 8
    $region69: #{_lambda_.1} parent=1 // pred_fallthru
      _
    // Predicated region
    $region70: #{_lambda_.1} parent=1 // pred_check
      _
    $region71: #{_lambda_.1} parent=1 // pred_check_branch
      %144 = sbr.rel (0) target = $region73
    $region72: #{_lambda_.1} parent=1 // pred_region
      _
    $region73: #{_lambda_.1} parent=1 // pred_fallthru
      _
    // Predicated region
    $region74: #{_lambda_.1} parent=1 // pred_check
      _
    $region75: #{_lambda_.1} parent=1 // pred_check_branch
      %146 = sbr.rel (0) target = $region77
    $region76: #{_lambda_.1} parent=1 // pred_region
      _
    $region77: #{_lambda_.1} parent=1 // pred_fallthru
      _
    // Predicated region
    $region78: #{_lambda_.1} parent=1 // pred_check
      _
    $region79: #{_lambda_.1} parent=1 // pred_check_branch
      %148 = sbr.rel (0) target = $region81
    $region80: #{_lambda_.1} parent=1 // pred_region
      %150 = dma.done [#allocation3], 256
    $region81: #{_lambda_.1} parent=1 // pred_fallthru
      _
    // Predicated region
    $region82: #{_lambda_.1} parent=1 // pred_check
      _
    $region83: #{_lambda_.1} parent=1 // pred_check_branch
      %152 = sbr.rel (0) target = $region85
    $region84: #{_lambda_.1} parent=1 // pred_region
      %154 = dma.done [#allocation6], 32
    $region85: #{_lambda_.1} parent=1 // pred_fallthru
      _
    // Predicated region
    $region86: #{_lambda_.1} parent=1 // pred_check
      _
    $region87: #{_lambda_.1} parent=1 // pred_check_branch
      %156 = sbr.rel (0) target = $region89
    $region88: #{_lambda_.1} parent=1 // pred_region
      %158 = dma.done [#allocation6], 32
    $region89: #{_lambda_.1} parent=1 // pred_fallthru
      _
    // Predicated region
    $region90: #{_lambda_.1} parent=1 // pred_check
      _
    $region91: #{_lambda_.1} parent=1 // pred_check_branch
      %160 = sbr.rel (0) target = $region93
    $region92: #{_lambda_.1} parent=1 // pred_region
      %162 = dma.done [#allocation9], 32
    $region93: #{_lambda_.1} parent=1 // pred_fallthru
      _
    // Predicated region
    $region94: #{_lambda_.1} parent=1 // pred_check
      _
    $region95: #{_lambda_.1} parent=1 // pred_check_branch
      %164 = sbr.rel (0) target = $region97
    $region96: #{_lambda_.1} parent=1 // pred_region
      %166 = dma.done [#allocation9], 32
    $region97: #{_lambda_.1} parent=1 // pred_fallthru
      _
    // Predicated region
    $region98: #{_lambda_.1} parent=1 // pred_check
      _
    $region99: #{_lambda_.1} parent=1 // pred_check_branch
      %168 = sbr.rel (0) target = $region101
    $region100: #{_lambda_.1} parent=1 // pred_region
      %170 = dma.done [#allocation12], 32
    $region101: #{_lambda_.1} parent=1 // pred_fallthru
      _
    // Predicated region
    $region102: #{_lambda_.1} parent=1 // pred_check
      _
    $region103: #{_lambda_.1} parent=1 // pred_check_branch
      %172 = sbr.rel (0) target = $region105
    $region104: #{_lambda_.1} parent=1 // pred_region
      %174 = dma.done [#allocation12], 512
    $region105: #{_lambda_.1} parent=1 // pred_fallthru
      _
    %v176 = vld [vmem:[#allocation2] sm:$0xff]
    %v177 = vld [vmem:[#allocation2 + $0x8] sm:$0xff]
    %v178 = vld [vmem:[#allocation13] sm:$0xff]
    %v179 = vld [vmem:[#allocation13 + $0x8] sm:$0xff]
    %v180 = vld [vmem:[#allocation13 + $0x10] sm:$0xff]
    %v181 = vld [vmem:[#allocation13 + $0x18] sm:$0xff]
    %v182 = vld [vmem:[%s17] sm:$0xff]
    %v183 = vld [vmem:[%s17 + $0x8] sm:$0xff]
    %v184 = vld [vmem:[%s17 + $0x10] sm:$0xff]
    %v185 = vld [vmem:[%s17 + $0x18] sm:$0xff]
    %v186 = vld [vmem:[%s17 + $0x20] sm:$0xff]
    %v187 = vld [vmem:[%s17 + $0x28] sm:$0xff]
    %v188 = vld [vmem:[%s17 + $0x30] sm:$0xff]
    %v189 = vld [vmem:[%s17 + $0x38] sm:$0xff]
    %v190 = vld [vmem:[%s18] sm:$0xff]
    %v191 = vld [vmem:[%s18 + $0x8] sm:$0xff]
    %v192 = vld [vmem:[%s18 + $0x10] sm:$0xff]
    %v193 = vld [vmem:[%s18 + $0x18] sm:$0xff]
    %v194 = vld [vmem:[%s18 + $0x20] sm:$0xff]
    %v195 = vld [vmem:[%s18 + $0x28] sm:$0xff]
    %v196 = vld [vmem:[%s18 + $0x30] sm:$0xff]
    %v197 = vld [vmem:[%s18 + $0x38] sm:$0xff]
    %v198 = vld [vmem:[%s1] sm:$0x1]
    %v199 = vld [vmem:[%s2] sm:$0x1]
    %vm200 = vcmask 261120
    %v201 = vsel %vm200, %v176, 0.0
    %202 = vadd.xlane.f32.xlu0 %v201
    %v203 = vpop.xlane.xlu0 %202
    %v204 = vsel %vm200, %v177, 0.0
    %205 = vadd.xlane.f32.xlu0 %v204
    %v206 = vpop.xlane.xlu0 %205
    %v207 = vrcp.pop 32.0
    %v208 = vmul.f32 32.0, %v207
    %v209 = vsub.f32 1.0, %v208
    %v210 = vmul.f32 %v207, %v209
    %v211 = vadd.f32 %v207, %v210
    %vm212 = vweird.f32 %v207
    %v213 = vsel %vm212, %v207, %v211
    %v214 = vmul.f32 %v203, %v213
    %v215 = vmul.f32 %v206, %v213
    %v216 = vsub.f32 %v176, %v214
    %v217 = vsub.f32 %v177, %v215
    %v218 = vmul.f32 %v216, %v216
    %v219 = vmul.f32 %v217, %v217
    %v220 = vsel %vm200, %v218, 0.0
    %221 = vadd.xlane.f32.xlu0 %v220
    %v222 = vpop.xlane.xlu0 %221
    %v223 = vsel %vm200, %v219, 0.0
    %224 = vadd.xlane.f32.xlu0 %v223
    %v225 = vpop.xlane.xlu0 %224
    %v226 = vmul.f32 %v222, %v213
    %v227 = vmul.f32 %v225, %v213
    %v228 = vadd.f32 %v226, 1e-05
    %v229 = vadd.f32 %v227, 1e-05
    %v230 = vrsqrt.pop %v228
    %v231 = vmul.f32 %v230, %v228
    %v232 = vmul.f32 %v231, %v230
    %v233 = vmul.f32 0.5, %v232
    %v234 = vsub.f32 1.5, %v233
    %v235 = vmul.f32 %v230, %v234
    %vm236 = vweird.f32 %v228
    %vm237 = vweird.f32 %v230
    %vm238 = vmor %vm236, %vm237
    %v239 = vsel %vm238, %v230, %v235
    %v240 = vrsqrt.pop %v229
    %v241 = vmul.f32 %v240, %v229
    %v242 = vmul.f32 %v241, %v240
    %v243 = vmul.f32 0.5, %v242
    %v244 = vsub.f32 1.5, %v243
    %v245 = vmul.f32 %v240, %v244
    %vm246 = vweird.f32 %v229
    %vm247 = vweird.f32 %v240
    %vm248 = vmor %vm246, %vm247
    %v249 = vsel %vm248, %v240, %v245
    %v250 = vmul.f32 %v216, %v239
    %v251 = vmul.f32 %v217, %v249
    %v253 = vperm.slane %v198, 0
    %v255 = vmul.f32 %v250, %v253
    %v256 = vmul.f32 %v251, %v253
    %v258 = vperm.slane %v199, 0
    %v260 = vadd.f32 %v255, %v258
    %v261 = vadd.f32 %v256, %v258
    %v262 = vpack.c.bf16 %v261, %v260
    %v263 = vld [vmem:[%s3] sm:$0xf]
    %v264 = vld [vmem:[%s3 + $0x4] sm:$0xf]
    %v265 = vld [vmem:[%s3 + $0x8] sm:$0xf]
    %v266 = vld [vmem:[%s3 + $0xc] sm:$0xf]
    %v267 = vld [vmem:[#allocation5] sm:$0x1]
    %v269 = vperm.slane %v267, 0
    %v275 = vunpack.c.l.b16 %v263
    %v276 = vunpack.c.l.b16 %v264
    %v277 = vunpack.c.l.b16 %v265
    %v278 = vunpack.c.l.b16 %v266
    %v279 = vpack.c.b16 %v276, %v275
    %v280 = vpack.c.b16 %v278, %v277
    %v284 = vsel %vm200, %v262, 0
    %286 = vmatpush.bf16.msra.mxu0 0
    %287 = vmatpush.bf16.msra.mxu0 0
    %288 = vmatpush.bf16.msra.mxu0 0
    %289 = vmatpush.bf16.msra.mxu0 0
    %290 = vmatpush.bf16.msra.mxu0 0
    %291 = vmatpush.bf16.msra.mxu0 0
    %292 = vmatpush.bf16.msra.mxu0 %v280
    %293 = vmatpush.bf16.msra.mxu0 %v279
    %294 = vmatmul.bf16.gmra.mxu0 %v284
    %v295 = vpop.f32.mrf.mxu0
    %v296 = vadd.f32 %v269, %v295
    %v297 = vpop.f32.mrf.mxu0
    %v298 = vadd.f32 %v269, %v297
    %299 = vdwg.mxu0
    %302 = vrot.lane.b32.xlu0 %v296, 96
    %v303 = vpop.permute.xlu0 %302
    %304 = vrot.lane.b32.xlu0 %v298, 96
    %v305 = vpop.permute.xlu0 %304
    %v308 = vmul.f32 %v296, 0.59460354
    %v309 = vmul.f32 %v298, 0.59460354
    %v310 = vmul.f32 %v303, 0.59460354
    %v311 = vmul.f32 %v305, 0.59460354
    %v312 = vpack.c.bf16 %v309, %v308
    %v313 = vpack.c.bf16 %v311, %v310
    %v314 = vld [vmem:[%s9] sm:$0xf]
    %v315 = vld [vmem:[%s9 + $0x4] sm:$0xf]
    %v316 = vld [vmem:[%s9 + $0x8] sm:$0xf]
    %v317 = vld [vmem:[%s9 + $0xc] sm:$0xf]
    %v322 = vunpack.c.l.b16 %v314
    %v323 = vunpack.c.l.b16 %v315
    %v324 = vunpack.c.l.b16 %v316
    %v325 = vunpack.c.l.b16 %v317
    %v326 = vpack.c.b16 %v323, %v322
    %v327 = vpack.c.b16 %v325, %v324
    %v331 = vsel %vm200, %v312, 0
    %v334 = vsel %vm200, %v313, 0
    %336 = vmatpush.bf16.msra.mxu0 0
    %337 = vmatpush.bf16.msra.mxu0 0
    %338 = vmatpush.bf16.msra.mxu0 0
    %339 = vmatpush.bf16.msra.mxu0 0
    %340 = vmatpush.bf16.msra.mxu0 0
    %341 = vmatpush.bf16.msra.mxu0 0
    %342 = vmatpush.bf16.msra.mxu0 %v327
    %343 = vmatpush.bf16.msra.mxu0 %v326
    %344 = vmatmul.bf16.gmra.mxu0 %v331
    %v345 = vpop.f32.mrf.mxu0
    %v346 = vadd.f32 0.0, %v345
    %v347 = vpop.f32.mrf.mxu0
    %v348 = vadd.f32 0.0, %v347
    %349 = vmatmul.bf16.gmra.mxu0 %v334
    %v350 = vpop.f32.mrf.mxu0
    %v351 = vadd.f32 0.0, %v350
    %v352 = vpop.f32.mrf.mxu0
    %v353 = vadd.f32 0.0, %v352
    %354 = vdwg.mxu0
    %v355 = vmul.f32 %v308, %v308
    %v356 = vmul.f32 %v309, %v309
    %v357 = vmul.f32 %v310, %v310
    %v358 = vmul.f32 %v311, %v311
    %v360 = vsel %vm200, %v355, 0
    %v363 = vsel %vm200, %v356, 0
    %v366 = vsel %vm200, %v357, 0
    %v369 = vsel %vm200, %v358, 0
    %371 = vmatpush.msra.mxu0 0.0
    %372 = vmatpush.msra.mxu0 0.0
    %373 = vmatpush.msra.mxu0 0.0
    %374 = vmatpush.msra.mxu0 0.0
    %375 = vmatpush.msra.mxu0 0.0
    %376 = vmatpush.msra.mxu0 0.0
    %377 = vmatpush.msra.mxu0 0.0
    %378 = vmatpush.msra.mxu0 0.0
    %379 = vmatpush.msra.mxu0 0.0
    %380 = vmatpush.msra.mxu0 0.0
    %381 = vmatpush.msra.mxu0 0.0
    %382 = vmatpush.msra.mxu0 0.0
    %383 = vmatpush.msra.mxu0 %v181
    %384 = vmatpush.msra.mxu0 %v180
    %385 = vmatpush.msra.mxu0 %v179
    %386 = vmatpush.msra.mxu0 %v178
    %387 = vmatmul.f32.gmra.mxu0 %v360
    %v388 = vpop.f32.mrf.mxu0
    %v389 = vadd.f32 0.0, %v388
    %390 = vmatmul.f32.gmra.mxu0 %v363
    %v391 = vpop.f32.mrf.mxu0
    %v392 = vadd.f32 0.0, %v391
    %393 = vmatmul.f32.gmra.mxu0 %v366
    %v394 = vpop.f32.mrf.mxu0
    %v395 = vadd.f32 0.0, %v394
    %396 = vmatmul.f32.gmra.mxu0 %v369
    %v397 = vpop.f32.mrf.mxu0
    %v398 = vadd.f32 0.0, %v397
    %399 = vdwg.mxu0
    %v400 = vmul.f32 %v389, 0.5
    %v401 = vmul.f32 %v392, 0.5
    %v402 = vmul.f32 %v395, 0.5
    %v403 = vmul.f32 %v398, 0.5
    %vm404 = vcmask 130048
    %v405 = vsel %vm404, %v346, -inf
    %406 = vmax.xlane.f32.xlu0 %v405
    %v407 = vpop.xlane.xlu0 %406
    %v408 = vsel %vm404, %v348, -inf
    %409 = vmax.xlane.f32.xlu0 %v408
    %v410 = vpop.xlane.xlu0 %409
    %v411 = vsel %vm404, %v351, -inf
    %412 = vmax.xlane.f32.xlu0 %v411
    %v413 = vpop.xlane.xlu0 %412
    %v414 = vsel %vm404, %v353, -inf
    %415 = vmax.xlane.f32.xlu0 %v414
    %v416 = vpop.xlane.xlu0 %415
    %v417 = vmax.f32 %v413, %v416
    %v418 = vrot.slane %v417, 4
    %v419 = vmax.f32 %v417, %v418
    %v420 = vrot.slane %v419, 2
    %v421 = vmax.f32 %v419, %v420
    %v422 = vrot.slane %v421, 1
    %v423 = vmax.f32 %v421, %v422
    %425 = vset.pattern.permute.xlu0 0
    %426 = vperm.xlu0 %425, %v407
    %v427 = vpop.permute.xlu0 %426
    %430 = vset.pattern.permute.xlu0 0
    %431 = vperm.xlu0 %430, %v410
    %v432 = vpop.permute.xlu0 %431
    %435 = vset.pattern.permute.xlu0 0
    %436 = vperm.xlu0 %435, %v423
    %v437 = vpop.permute.xlu0 %436
    %vm439 = vcmask 261248
    %v440 = vsel %vm439, %v346, -inf
    %441 = vmax.xlane.f32.xlu0 %v440
    %v442 = vpop.xlane.xlu0 %441
    %v443 = vsel %vm439, %v348, -inf
    %444 = vmax.xlane.f32.xlu0 %v443
    %v445 = vpop.xlane.xlu0 %444
    %v446 = vsel %vm439, %v351, -inf
    %447 = vmax.xlane.f32.xlu0 %v446
    %v448 = vpop.xlane.xlu0 %447
    %v449 = vsel %vm439, %v353, -inf
    %450 = vmax.xlane.f32.xlu0 %v449
    %v451 = vpop.xlane.xlu0 %450
    %v452 = vmax.f32 %v448, %v451
    %v453 = vrot.slane %v452, 4
    %v454 = vmax.f32 %v452, %v453
    %v455 = vrot.slane %v454, 2
    %v456 = vmax.f32 %v454, %v455
    %v457 = vrot.slane %v456, 1
    %v458 = vmax.f32 %v456, %v457
    %460 = vset.pattern.permute.xlu0 0
    %461 = vperm.xlu0 %460, %v442
    %v462 = vpop.permute.xlu0 %461
    %465 = vset.pattern.permute.xlu0 0
    %466 = vperm.xlu0 %465, %v445
    %v467 = vpop.permute.xlu0 %466
    %470 = vset.pattern.permute.xlu0 0
    %471 = vperm.xlu0 %470, %v458
    %v472 = vpop.permute.xlu0 %471
    %vm474 = vcmask 392448
    %v475 = vsel %vm474, %v346, -inf
    %476 = vmax.xlane.f32.xlu0 %v475
    %v477 = vpop.xlane.xlu0 %476
    %v478 = vsel %vm474, %v348, -inf
    %479 = vmax.xlane.f32.xlu0 %v478
    %v480 = vpop.xlane.xlu0 %479
    %v481 = vsel %vm474, %v351, -inf
    %482 = vmax.xlane.f32.xlu0 %v481
    %v483 = vpop.xlane.xlu0 %482
    %v484 = vsel %vm474, %v353, -inf
    %485 = vmax.xlane.f32.xlu0 %v484
    %v486 = vpop.xlane.xlu0 %485
    %v487 = vmax.f32 %v483, %v486
    %v488 = vrot.slane %v487, 4
    %v489 = vmax.f32 %v487, %v488
    %v490 = vrot.slane %v489, 2
    %v491 = vmax.f32 %v489, %v490
    %v492 = vrot.slane %v491, 1
    %v493 = vmax.f32 %v491, %v492
    %495 = vset.pattern.permute.xlu0 0
    %496 = vperm.xlu0 %495, %v477
    %v497 = vpop.permute.xlu0 %496
    %500 = vset.pattern.permute.xlu0 0
    %501 = vperm.xlu0 %500, %v480
    %v502 = vpop.permute.xlu0 %501
    %505 = vset.pattern.permute.xlu0 0
    %506 = vperm.xlu0 %505, %v493
    %v507 = vpop.permute.xlu0 %506
    %vm509 = vcmask 523648
    %v510 = vsel %vm509, %v346, -inf
    %511 = vmax.xlane.f32.xlu0 %v510
    %v512 = vpop.xlane.xlu0 %511
    %v513 = vsel %vm509, %v348, -inf
    %514 = vmax.xlane.f32.xlu0 %v513
    %v515 = vpop.xlane.xlu0 %514
    %v516 = vsel %vm509, %v351, -inf
    %517 = vmax.xlane.f32.xlu0 %v516
    %v518 = vpop.xlane.xlu0 %517
    %v519 = vsel %vm509, %v353, -inf
    %520 = vmax.xlane.f32.xlu0 %v519
    %v521 = vpop.xlane.xlu0 %520
    %v522 = vmax.f32 %v518, %v521
    %v523 = vrot.slane %v522, 4
    %v524 = vmax.f32 %v522, %v523
    %v525 = vrot.slane %v524, 2
    %v526 = vmax.f32 %v524, %v525
    %v527 = vrot.slane %v526, 1
    %v528 = vmax.f32 %v526, %v527
    %530 = vset.pattern.permute.xlu0 0
    %531 = vperm.xlu0 %530, %v512
    %v532 = vpop.permute.xlu0 %531
    %535 = vset.pattern.permute.xlu0 0
    %536 = vperm.xlu0 %535, %v515
    %v537 = vpop.permute.xlu0 %536
    %540 = vset.pattern.permute.xlu0 0
    %541 = vperm.xlu0 %540, %v528
    %v542 = vpop.permute.xlu0 %541
    %v544 = vsel %vm404, %v427, %v462
    %v545 = vsel %vm404, %v432, %v467
    %v546 = vsel %vm404, %v437, %v472
    %v547 = vsel %vm200, %v544, %v497
    %v548 = vsel %vm200, %v545, %v502
    %v549 = vsel %vm200, %v546, %v507
    %vm550 = vcmask 392192
    %v551 = vsel %vm550, %v547, %v532
    %v552 = vsel %vm550, %v548, %v537
    %v553 = vsel %vm550, %v549, %v542
    %v554 = vsub.f32 %v346, %v400
    %v555 = vsub.f32 %v348, %v401
    %v556 = vsub.f32 %v351, %v402
    %v557 = vsub.f32 %v353, %v403
    %v558 = vsub.f32 %v554, %v551
    %v559 = vsub.f32 %v555, %v552
    %v560 = vsub.f32 %v556, %v553
    %v561 = vsub.f32 %v557, %v553
    %v562 = vmul.f32 %v558, 1.442695
    %v563 = vpow.pop %v562
    %v564 = vmul.f32 %v559, 1.442695
    %v565 = vpow.pop %v564
    %v566 = vmul.f32 %v560, 1.442695
    %v567 = vpow.pop %v566
    %v568 = vmul.f32 %v561, 1.442695
    %v569 = vpow.pop %v568
    %v570 = vadd.f32 %v563, 0.0001
    %v571 = vadd.f32 %v565, 0.0001
    %v572 = vadd.f32 %v567, 0.0001
    %v573 = vadd.f32 %v569, 0.0001
    %v574 = vmul.f32 %v570, 0.25
    %v575 = vmul.f32 %v571, 0.25
    %v576 = vmul.f32 %v572, 0.25
    %v577 = vmul.f32 %v573, 0.25
    %v578 = vld [vmem:[%s5] sm:$0xf]
    %v579 = vld [vmem:[%s5 + $0x4] sm:$0xf]
    %v580 = vld [vmem:[%s5 + $0x8] sm:$0xf]
    %v581 = vld [vmem:[%s5 + $0xc] sm:$0xf]
    %v582 = vld [vmem:[#allocation7] sm:$0x1]
    %v584 = vperm.slane %v582, 0
    %v590 = vunpack.c.l.b16 %v578
    %v591 = vunpack.c.l.b16 %v579
    %v592 = vunpack.c.l.b16 %v580
    %v593 = vunpack.c.l.b16 %v581
    %v594 = vpack.c.b16 %v591, %v590
    %v595 = vpack.c.b16 %v593, %v592
    %598 = vmatpush.bf16.msra.mxu0 0
    %599 = vmatpush.bf16.msra.mxu0 0
    %600 = vmatpush.bf16.msra.mxu0 0
    %601 = vmatpush.bf16.msra.mxu0 0
    %602 = vmatpush.bf16.msra.mxu0 0
    %603 = vmatpush.bf16.msra.mxu0 0
    %604 = vmatpush.bf16.msra.mxu0 %v595
    %605 = vmatpush.bf16.msra.mxu0 %v594
    %606 = vmatmul.bf16.gmra.mxu0 %v284
    %v607 = vpop.f32.mrf.mxu0
    %v608 = vadd.f32 %v584, %v607
    %v609 = vpop.f32.mrf.mxu0
    %v610 = vadd.f32 %v584, %v609
    %611 = vdwg.mxu0
    %vm612 = vcmask 523264
    %v613 = vsel %vm612, %v576, 0.0
    %v614 = vsel %vm612, %v577, 0.0
    %v615 = vadd.f32 %v613, %v614
    %v616 = vrot.slane %v615, 4
    %v617 = vadd.f32 %v615, %v616
    %v618 = vrot.slane %v617, 2
    %v619 = vadd.f32 %v617, %v618
    %v620 = vrot.slane %v619, 1
    %v621 = vadd.f32 %v619, %v620
    %v622 = vmul.f32 %v574, %v621
    %v623 = vmul.f32 %v575, %v621
    %v625 = vsel %vm612, %v622, 0
    %v628 = vsel %vm612, %v623, 0
    %630 = vmatpush.msra.mxu0 0.0
    %631 = vmatpush.msra.mxu0 0.0
    %632 = vmatpush.msra.mxu0 0.0
    %633 = vmatpush.msra.mxu0 0.0
    %634 = vmatpush.msra.mxu0 0.0
    %635 = vmatpush.msra.mxu0 0.0
    %636 = vmatpush.msra.mxu0 0.0
    %637 = vmatpush.msra.mxu0 0.0
    %638 = vmatpush.msra.mxu0 %v189
    %639 = vmatpush.msra.mxu0 %v188
    %640 = vmatpush.msra.mxu0 %v187
    %641 = vmatpush.msra.mxu0 %v186
    %642 = vmatpush.msra.mxu0 %v185
    %643 = vmatpush.msra.mxu0 %v184
    %644 = vmatpush.msra.mxu0 %v183
    %645 = vmatpush.msra.mxu0 %v182
    %646 = vmatmul.f32.gmra.mxu0 %v625
    %v647 = vpop.f32.mrf.mxu0
    %v648 = vadd.f32 0.0, %v647
    %649 = vmatmul.f32.gmra.mxu0 %v628
    %v650 = vpop.f32.mrf.mxu0
    %v651 = vadd.f32 0.0, %v650
    %652 = vdwg.mxu0
    %653 = vxpose.xlu0.b32.start [1/16] %v576, 128
    %654 = vxpose.xlu0.b32.cont [2/16] %v577, 128
    %655 = vxpose.xlu0.b32.cont [3/16] 0.0, 128
    %656 = vxpose.xlu0.b32.cont [4/16] 0.0, 128
    %657 = vxpose.xlu0.b32.cont [5/16] 0.0, 128
    %658 = vxpose.xlu0.b32.cont [6/16] 0.0, 128
    %659 = vxpose.xlu0.b32.cont [7/16] 0.0, 128
    %660 = vxpose.xlu0.b32.cont [8/16] 0.0, 128
    %661 = vxpose.xlu0.b32.cont [9/16] 0.0, 128
    %662 = vxpose.xlu0.b32.cont [10/16] 0.0, 128
    %663 = vxpose.xlu0.b32.cont [11/16] 0.0, 128
    %664 = vxpose.xlu0.b32.cont [12/16] 0.0, 128
    %665 = vxpose.xlu0.b32.cont [13/16] 0.0, 128
    %666 = vxpose.xlu0.b32.cont [14/16] 0.0, 128
    %667 = vxpose.xlu0.b32.cont [15/16] 0.0, 128
    %668 = vxpose.xlu0.b32.end [16/16] 0.0, 128
    %v669 = vpop.trf.xlu0
    %v670 = vpop.trf.xlu0
    %v671 = vpop.trf.xlu0
    %v672 = vpop.trf.xlu0
    %v673 = vpop.trf.xlu0
    %v674 = vpop.trf.xlu0
    %v675 = vpop.trf.xlu0
    %v676 = vpop.trf.xlu0
    %v677 = vpop.trf.xlu0
    %v678 = vpop.trf.xlu0
    %v679 = vpop.trf.xlu0
    %v680 = vpop.trf.xlu0
    %v681 = vpop.trf.xlu0
    %v682 = vpop.trf.xlu0
    %v683 = vpop.trf.xlu0
    %v684 = vpop.trf.xlu0
    %v686 = vsel %vm404, %v669, 0
    %v689 = vsel %vm404, %v670, 0
    %v692 = vsel %vm404, %v671, 0
    %v695 = vsel %vm404, %v672, 0
    %v698 = vsel %vm404, %v673, 0
    %v701 = vsel %vm404, %v674, 0
    %v704 = vsel %vm404, %v675, 0
    %v707 = vsel %vm404, %v676, 0
    %709 = vmatpush.msra.mxu0 0.0
    %710 = vmatpush.msra.mxu0 0.0
    %711 = vmatpush.msra.mxu0 0.0
    %712 = vmatpush.msra.mxu0 0.0
    %713 = vmatpush.msra.mxu0 0.0
    %714 = vmatpush.msra.mxu0 0.0
    %715 = vmatpush.msra.mxu0 0.0
    %716 = vmatpush.msra.mxu0 0.0
    %717 = vmatpush.msra.mxu0 0.0
    %718 = vmatpush.msra.mxu0 0.0
    %719 = vmatpush.msra.mxu0 0.0
    %720 = vmatpush.msra.mxu0 0.0
    %721 = vmatpush.msra.mxu0 0.0
    %722 = vmatpush.msra.mxu0 0.0
    %723 = vmatpush.msra.mxu0 %v610
    %724 = vmatpush.msra.mxu0 %v608
    %725 = vmatmul.f32.gmra.mxu0 %v686
    %v726 = vpop.f32.mrf.mxu0
    %v727 = vadd.f32 0.0, %v726
    %728 = vmatmul.f32.gmra.mxu0 %v689
    %v729 = vpop.f32.mrf.mxu0
    %v730 = vadd.f32 0.0, %v729
    %731 = vmatmul.f32.gmra.mxu0 %v692
    %v732 = vpop.f32.mrf.mxu0
    %v733 = vadd.f32 0.0, %v732
    %734 = vmatmul.f32.gmra.mxu0 %v695
    %v735 = vpop.f32.mrf.mxu0
    %v736 = vadd.f32 0.0, %v735
    %737 = vmatmul.f32.gmra.mxu0 %v698
    %v738 = vpop.f32.mrf.mxu0
    %v739 = vadd.f32 0.0, %v738
    %740 = vmatmul.f32.gmra.mxu0 %v701
    %v741 = vpop.f32.mrf.mxu0
    %v742 = vadd.f32 0.0, %v741
    %743 = vmatmul.f32.gmra.mxu0 %v704
    %v744 = vpop.f32.mrf.mxu0
    %v745 = vadd.f32 0.0, %v744
    %746 = vmatmul.f32.gmra.mxu0 %v707
    %v747 = vpop.f32.mrf.mxu0
    %v748 = vadd.f32 0.0, %v747
    %749 = vdwg.mxu0
    %v750 = vmul.f32 %v727, %v182
    %v751 = vmul.f32 %v730, %v183
    %v752 = vmul.f32 %v733, %v184
    %v753 = vmul.f32 %v736, %v185
    %v754 = vmul.f32 %v739, %v186
    %v755 = vmul.f32 %v742, %v187
    %v756 = vmul.f32 %v745, %v188
    %v757 = vmul.f32 %v748, %v189
    %v759 = vsel %vm612, %v574, 0
    %v762 = vsel %vm612, %v575, 0
    %764 = vmatpush.msra.mxu0 0.0
    %765 = vmatpush.msra.mxu0 0.0
    %766 = vmatpush.msra.mxu0 0.0
    %767 = vmatpush.msra.mxu0 0.0
    %768 = vmatpush.msra.mxu0 0.0
    %769 = vmatpush.msra.mxu0 0.0
    %770 = vmatpush.msra.mxu0 0.0
    %771 = vmatpush.msra.mxu0 0.0
    %772 = vmatpush.msra.mxu0 %v757
    %773 = vmatpush.msra.mxu0 %v756
    %774 = vmatpush.msra.mxu0 %v755
    %775 = vmatpush.msra.mxu0 %v754
    %776 = vmatpush.msra.mxu0 %v753
    %777 = vmatpush.msra.mxu0 %v752
    %778 = vmatpush.msra.mxu0 %v751
    %779 = vmatpush.msra.mxu0 %v750
    %780 = vmatmul.f32.gmra.mxu0 %v759
    %v781 = vpop.f32.mrf.mxu0
    %v782 = vadd.f32 0.0, %v781
    %783 = vmatmul.f32.gmra.mxu0 %v762
    %v784 = vpop.f32.mrf.mxu0
    %v785 = vadd.f32 0.0, %v784
    %786 = vdwg.mxu0
    %v787 = vrcp.pop %v648
    %v788 = vrcp.pop %v651
    %v789 = vmul.f32 %v782, %v787
    %v790 = vmul.f32 %v785, %v788
    %v791 = vpack.c.bf16 %v790, %v789
    %v792 = vld [vmem:[%s7] sm:$0xf]
    %v793 = vld [vmem:[%s7 + $0x4] sm:$0xf]
    %v794 = vld [vmem:[%s7 + $0x8] sm:$0xf]
    %v795 = vld [vmem:[%s7 + $0xc] sm:$0xf]
    %v796 = vld [vmem:[#allocation8] sm:$0x1]
    %v798 = vperm.slane %v796, 0
    %v804 = vunpack.c.l.b16 %v792
    %v805 = vunpack.c.l.b16 %v793
    %v806 = vunpack.c.l.b16 %v794
    %v807 = vunpack.c.l.b16 %v795
    %v808 = vpack.c.b16 %v805, %v804
    %v809 = vpack.c.b16 %v807, %v806
    %v813 = vsel %vm200, %v791, 0
    %815 = vmatpush.bf16.msra.mxu0 0
    %816 = vmatpush.bf16.msra.mxu0 0
    %817 = vmatpush.bf16.msra.mxu0 0
    %818 = vmatpush.bf16.msra.mxu0 0
    %819 = vmatpush.bf16.msra.mxu0 0
    %820 = vmatpush.bf16.msra.mxu0 0
    %821 = vmatpush.bf16.msra.mxu0 %v809
    %822 = vmatpush.bf16.msra.mxu0 %v808
    %823 = vmatmul.bf16.gmra.mxu0 %v813
    %v824 = vpop.f32.mrf.mxu0
    %v825 = vadd.f32 %v798, %v824
    %v826 = vpop.f32.mrf.mxu0
    %v827 = vadd.f32 %v798, %v826
    %828 = vdwg.mxu0
    %v829 = vadd.f32 %v176, %v825
    %v830 = vadd.f32 %v177, %v827
    %v831 = vsel %vm200, %v829, 0.0
    %832 = vadd.xlane.f32.xlu0 %v831
    %v833 = vpop.xlane.xlu0 %832
    %v834 = vsel %vm200, %v830, 0.0
    %835 = vadd.xlane.f32.xlu0 %v834
    %v836 = vpop.xlane.xlu0 %835
    %v837 = vmul.f32 %v833, %v213
    %v838 = vmul.f32 %v836, %v213
    %v839 = vsub.f32 %v829, %v837
    %v840 = vsub.f32 %v830, %v838
    %v841 = vmul.f32 %v839, %v839
    %v842 = vmul.f32 %v840, %v840
    %v843 = vsel %vm200, %v841, 0.0
    %844 = vadd.xlane.f32.xlu0 %v843
    %v845 = vpop.xlane.xlu0 %844
    %v846 = vsel %vm200, %v842, 0.0
    %847 = vadd.xlane.f32.xlu0 %v846
    %v848 = vpop.xlane.xlu0 %847
    %v849 = vmul.f32 %v845, %v213
    %v850 = vmul.f32 %v848, %v213
    %v851 = vadd.f32 %v849, 1e-05
    %v852 = vadd.f32 %v850, 1e-05
    %v853 = vrsqrt.pop %v851
    %v854 = vmul.f32 %v853, %v851
    %v855 = vmul.f32 %v854, %v853
    %v856 = vmul.f32 0.5, %v855
    %v857 = vsub.f32 1.5, %v856
    %v858 = vmul.f32 %v853, %v857
    %vm859 = vweird.f32 %v851
    %vm860 = vweird.f32 %v853
    %vm861 = vmor %vm859, %vm860
    %v862 = vsel %vm861, %v853, %v858
    %v863 = vrsqrt.pop %v852
    %v864 = vmul.f32 %v863, %v852
    %v865 = vmul.f32 %v864, %v863
    %v866 = vmul.f32 0.5, %v865
    %v867 = vsub.f32 1.5, %v866
    %v868 = vmul.f32 %v863, %v867
    %vm869 = vweird.f32 %v852
    %vm870 = vweird.f32 %v863
    %vm871 = vmor %vm869, %vm870
    %v872 = vsel %vm871, %v863, %v868
    %v873 = vmul.f32 %v839, %v862
    %v874 = vmul.f32 %v840, %v872
    %v875 = vmul.f32 %v873, %v253
    %v876 = vmul.f32 %v874, %v253
    %v877 = vadd.f32 %v875, %v258
    %v878 = vadd.f32 %v876, %v258
    %v879 = vpack.c.bf16 %v878, %v877
    %v881 = vsel %vm200, %v879, 0
    %883 = vmatpush.bf16.msra.mxu0 0
    %884 = vmatpush.bf16.msra.mxu0 0
    %885 = vmatpush.bf16.msra.mxu0 0
    %886 = vmatpush.bf16.msra.mxu0 0
    %887 = vmatpush.bf16.msra.mxu0 0
    %888 = vmatpush.bf16.msra.mxu0 0
    %889 = vmatpush.bf16.msra.mxu0 %v280
    %890 = vmatpush.bf16.msra.mxu0 %v279
    %891 = vmatmul.bf16.gmra.mxu0 %v881
    %v892 = vpop.f32.mrf.mxu0
    %v893 = vadd.f32 %v269, %v892
    %v894 = vpop.f32.mrf.mxu0
    %v895 = vadd.f32 %v269, %v894
    %896 = vdwg.mxu0
    %899 = vrot.lane.b32.xlu0 %v893, 96
    %v900 = vpop.permute.xlu0 %899
    %901 = vrot.lane.b32.xlu0 %v895, 96
    %v902 = vpop.permute.xlu0 %901
    %v905 = vmul.f32 %v893, 0.59460354
    %v906 = vmul.f32 %v895, 0.59460354
    %v907 = vmul.f32 %v900, 0.59460354
    %v908 = vmul.f32 %v902, 0.59460354
    %v909 = vpack.c.bf16 %v906, %v905
    %v910 = vpack.c.bf16 %v908, %v907
    %v912 = vsel %vm200, %v909, 0
    %v915 = vsel %vm200, %v910, 0
    %917 = vmatpush.bf16.msra.mxu0 0
    %918 = vmatpush.bf16.msra.mxu0 0
    %919 = vmatpush.bf16.msra.mxu0 0
    %920 = vmatpush.bf16.msra.mxu0 0
    %921 = vmatpush.bf16.msra.mxu0 0
    %922 = vmatpush.bf16.msra.mxu0 0
    %923 = vmatpush.bf16.msra.mxu0 %v327
    %924 = vmatpush.bf16.msra.mxu0 %v326
    %925 = vmatmul.bf16.gmra.mxu0 %v912
    %v926 = vpop.f32.mrf.mxu0
    %v927 = vadd.f32 0.0, %v926
    %v928 = vpop.f32.mrf.mxu0
    %v929 = vadd.f32 0.0, %v928
    %930 = vmatmul.bf16.gmra.mxu0 %v915
    %v931 = vpop.f32.mrf.mxu0
    %v932 = vadd.f32 0.0, %v931
    %v933 = vpop.f32.mrf.mxu0
    %v934 = vadd.f32 0.0, %v933
    %935 = vdwg.mxu0
    %v936 = vmul.f32 %v905, %v905
    %v937 = vmul.f32 %v906, %v906
    %v938 = vmul.f32 %v907, %v907
    %v939 = vmul.f32 %v908, %v908
    %v941 = vsel %vm200, %v936, 0
    %v944 = vsel %vm200, %v937, 0
    %v947 = vsel %vm200, %v938, 0
    %v950 = vsel %vm200, %v939, 0
    %952 = vmatpush.msra.mxu0 0.0
    %953 = vmatpush.msra.mxu0 0.0
    %954 = vmatpush.msra.mxu0 0.0
    %955 = vmatpush.msra.mxu0 0.0
    %956 = vmatpush.msra.mxu0 0.0
    %957 = vmatpush.msra.mxu0 0.0
    %958 = vmatpush.msra.mxu0 0.0
    %959 = vmatpush.msra.mxu0 0.0
    %960 = vmatpush.msra.mxu0 0.0
    %961 = vmatpush.msra.mxu0 0.0
    %962 = vmatpush.msra.mxu0 0.0
    %963 = vmatpush.msra.mxu0 0.0
    %964 = vmatpush.msra.mxu0 %v181
    %965 = vmatpush.msra.mxu0 %v180
    %966 = vmatpush.msra.mxu0 %v179
    %967 = vmatpush.msra.mxu0 %v178
    %968 = vmatmul.f32.gmra.mxu0 %v941
    %v969 = vpop.f32.mrf.mxu0
    %v970 = vadd.f32 0.0, %v969
    %971 = vmatmul.f32.gmra.mxu0 %v944
    %v972 = vpop.f32.mrf.mxu0
    %v973 = vadd.f32 0.0, %v972
    %974 = vmatmul.f32.gmra.mxu0 %v947
    %v975 = vpop.f32.mrf.mxu0
    %v976 = vadd.f32 0.0, %v975
    %977 = vmatmul.f32.gmra.mxu0 %v950
    %v978 = vpop.f32.mrf.mxu0
    %v979 = vadd.f32 0.0, %v978
    %980 = vdwg.mxu0
    %v981 = vmul.f32 %v970, 0.5
    %v982 = vmul.f32 %v973, 0.5
    %v983 = vmul.f32 %v976, 0.5
    %v984 = vmul.f32 %v979, 0.5
    %v985 = vsel %vm404, %v927, -inf
    %986 = vmax.xlane.f32.xlu0 %v985
    %v987 = vpop.xlane.xlu0 %986
    %v988 = vsel %vm404, %v929, -inf
    %989 = vmax.xlane.f32.xlu0 %v988
    %v990 = vpop.xlane.xlu0 %989
    %v991 = vsel %vm404, %v932, -inf
    %992 = vmax.xlane.f32.xlu0 %v991
    %v993 = vpop.xlane.xlu0 %992
    %v994 = vsel %vm404, %v934, -inf
    %995 = vmax.xlane.f32.xlu0 %v994
    %v996 = vpop.xlane.xlu0 %995
    %v997 = vmax.f32 %v993, %v996
    %v998 = vrot.slane %v997, 4
    %v999 = vmax.f32 %v997, %v998
    %v1000 = vrot.slane %v999, 2
    %v1001 = vmax.f32 %v999, %v1000
    %v1002 = vrot.slane %v1001, 1
    %v1003 = vmax.f32 %v1001, %v1002
    %1005 = vset.pattern.permute.xlu0 0
    %1006 = vperm.xlu0 %1005, %v987
    %v1007 = vpop.permute.xlu0 %1006
    %1010 = vset.pattern.permute.xlu0 0
    %1011 = vperm.xlu0 %1010, %v990
    %v1012 = vpop.permute.xlu0 %1011
    %1015 = vset.pattern.permute.xlu0 0
    %1016 = vperm.xlu0 %1015, %v1003
    %v1017 = vpop.permute.xlu0 %1016
    %v1019 = vsel %vm439, %v927, -inf
    %1020 = vmax.xlane.f32.xlu0 %v1019
    %v1021 = vpop.xlane.xlu0 %1020
    %v1022 = vsel %vm439, %v929, -inf
    %1023 = vmax.xlane.f32.xlu0 %v1022
    %v1024 = vpop.xlane.xlu0 %1023
    %v1025 = vsel %vm439, %v932, -inf
    %1026 = vmax.xlane.f32.xlu0 %v1025
    %v1027 = vpop.xlane.xlu0 %1026
    %v1028 = vsel %vm439, %v934, -inf
    %1029 = vmax.xlane.f32.xlu0 %v1028
    %v1030 = vpop.xlane.xlu0 %1029
    %v1031 = vmax.f32 %v1027, %v1030
    %v1032 = vrot.slane %v1031, 4
    %v1033 = vmax.f32 %v1031, %v1032
    %v1034 = vrot.slane %v1033, 2
    %v1035 = vmax.f32 %v1033, %v1034
    %v1036 = vrot.slane %v1035, 1
    %v1037 = vmax.f32 %v1035, %v1036
    %1039 = vset.pattern.permute.xlu0 0
    %1040 = vperm.xlu0 %1039, %v1021
    %v1041 = vpop.permute.xlu0 %1040
    %1044 = vset.pattern.permute.xlu0 0
    %1045 = vperm.xlu0 %1044, %v1024
    %v1046 = vpop.permute.xlu0 %1045
    %1049 = vset.pattern.permute.xlu0 0
    %1050 = vperm.xlu0 %1049, %v1037
    %v1051 = vpop.permute.xlu0 %1050
    %v1053 = vsel %vm474, %v927, -inf
    %1054 = vmax.xlane.f32.xlu0 %v1053
    %v1055 = vpop.xlane.xlu0 %1054
    %v1056 = vsel %vm474, %v929, -inf
    %1057 = vmax.xlane.f32.xlu0 %v1056
    %v1058 = vpop.xlane.xlu0 %1057
    %v1059 = vsel %vm474, %v932, -inf
    %1060 = vmax.xlane.f32.xlu0 %v1059
    %v1061 = vpop.xlane.xlu0 %1060
    %v1062 = vsel %vm474, %v934, -inf
    %1063 = vmax.xlane.f32.xlu0 %v1062
    %v1064 = vpop.xlane.xlu0 %1063
    %v1065 = vmax.f32 %v1061, %v1064
    %v1066 = vrot.slane %v1065, 4
    %v1067 = vmax.f32 %v1065, %v1066
    %v1068 = vrot.slane %v1067, 2
    %v1069 = vmax.f32 %v1067, %v1068
    %v1070 = vrot.slane %v1069, 1
    %v1071 = vmax.f32 %v1069, %v1070
    %1073 = vset.pattern.permute.xlu0 0
    %1074 = vperm.xlu0 %1073, %v1055
    %v1075 = vpop.permute.xlu0 %1074
    %1078 = vset.pattern.permute.xlu0 0
    %1079 = vperm.xlu0 %1078, %v1058
    %v1080 = vpop.permute.xlu0 %1079
    %1083 = vset.pattern.permute.xlu0 0
    %1084 = vperm.xlu0 %1083, %v1071
    %v1085 = vpop.permute.xlu0 %1084
    %v1087 = vsel %vm509, %v927, -inf
    %1088 = vmax.xlane.f32.xlu0 %v1087
    %v1089 = vpop.xlane.xlu0 %1088
    %v1090 = vsel %vm509, %v929, -inf
    %1091 = vmax.xlane.f32.xlu0 %v1090
    %v1092 = vpop.xlane.xlu0 %1091
    %v1093 = vsel %vm509, %v932, -inf
    %1094 = vmax.xlane.f32.xlu0 %v1093
    %v1095 = vpop.xlane.xlu0 %1094
    %v1096 = vsel %vm509, %v934, -inf
    %1097 = vmax.xlane.f32.xlu0 %v1096
    %v1098 = vpop.xlane.xlu0 %1097
    %v1099 = vmax.f32 %v1095, %v1098
    %v1100 = vrot.slane %v1099, 4
    %v1101 = vmax.f32 %v1099, %v1100
    %v1102 = vrot.slane %v1101, 2
    %v1103 = vmax.f32 %v1101, %v1102
    %v1104 = vrot.slane %v1103, 1
    %v1105 = vmax.f32 %v1103, %v1104
    %1107 = vset.pattern.permute.xlu0 0
    %1108 = vperm.xlu0 %1107, %v1089
    %v1109 = vpop.permute.xlu0 %1108
    %1112 = vset.pattern.permute.xlu0 0
    %1113 = vperm.xlu0 %1112, %v1092
    %v1114 = vpop.permute.xlu0 %1113
    %1117 = vset.pattern.permute.xlu0 0
    %1118 = vperm.xlu0 %1117, %v1105
    %v1119 = vpop.permute.xlu0 %1118
    %v1121 = vsel %vm404, %v1007, %v1041
    %v1122 = vsel %vm404, %v1012, %v1046
    %v1123 = vsel %vm404, %v1017, %v1051
    %v1124 = vsel %vm200, %v1121, %v1075
    %v1125 = vsel %vm200, %v1122, %v1080
    %v1126 = vsel %vm200, %v1123, %v1085
    %v1127 = vsel %vm550, %v1124, %v1109
    %v1128 = vsel %vm550, %v1125, %v1114
    %v1129 = vsel %vm550, %v1126, %v1119
    %v1130 = vsub.f32 %v927, %v981
    %v1131 = vsub.f32 %v929, %v982
    %v1132 = vsub.f32 %v932, %v983
    %v1133 = vsub.f32 %v934, %v984
    %v1134 = vsub.f32 %v1130, %v1127
    %v1135 = vsub.f32 %v1131, %v1128
    %v1136 = vsub.f32 %v1132, %v1129
    %v1137 = vsub.f32 %v1133, %v1129
    %v1138 = vmul.f32 %v1134, 1.442695
    %v1139 = vpow.pop %v1138
    %v1140 = vmul.f32 %v1135, 1.442695
    %v1141 = vpow.pop %v1140
    %v1142 = vmul.f32 %v1136, 1.442695
    %v1143 = vpow.pop %v1142
    %v1144 = vmul.f32 %v1137, 1.442695
    %v1145 = vpow.pop %v1144
    %v1146 = vadd.f32 %v1139, 0.0001
    %v1147 = vadd.f32 %v1141, 0.0001
    %v1148 = vadd.f32 %v1143, 0.0001
    %v1149 = vadd.f32 %v1145, 0.0001
    %v1150 = vmul.f32 %v1146, 0.25
    %v1151 = vmul.f32 %v1147, 0.25
    %v1152 = vmul.f32 %v1148, 0.25
    %v1153 = vmul.f32 %v1149, 0.25
    %v1154 = vsel %vm612, %v1152, 0.0
    %v1155 = vsel %vm612, %v1153, 0.0
    %v1156 = vadd.f32 %v1154, %v1155
    %v1157 = vrot.slane %v1156, 4
    %v1158 = vadd.f32 %v1156, %v1157
    %v1159 = vrot.slane %v1158, 2
    %v1160 = vadd.f32 %v1158, %v1159
    %v1161 = vrot.slane %v1160, 1
    %v1162 = vadd.f32 %v1160, %v1161
    %v1163 = vmul.f32 %v1150, %v1162
    %v1164 = vmul.f32 %v1151, %v1162
    %v1166 = vsel %vm612, %v1163, 0
    %v1169 = vsel %vm612, %v1164, 0
    %1171 = vmatpush.msra.mxu0 0.0
    %1172 = vmatpush.msra.mxu0 0.0
    %1173 = vmatpush.msra.mxu0 0.0
    %1174 = vmatpush.msra.mxu0 0.0
    %1175 = vmatpush.msra.mxu0 0.0
    %1176 = vmatpush.msra.mxu0 0.0
    %1177 = vmatpush.msra.mxu0 0.0
    %1178 = vmatpush.msra.mxu0 0.0
    %1179 = vmatpush.msra.mxu0 %v197
    %1180 = vmatpush.msra.mxu0 %v196
    %1181 = vmatpush.msra.mxu0 %v195
    %1182 = vmatpush.msra.mxu0 %v194
    %1183 = vmatpush.msra.mxu0 %v193
    %1184 = vmatpush.msra.mxu0 %v192
    %1185 = vmatpush.msra.mxu0 %v191
    %1186 = vmatpush.msra.mxu0 %v190
    %1187 = vmatmul.f32.gmra.mxu0 %v1166
    %v1188 = vpop.f32.mrf.mxu0
    %v1189 = vadd.f32 0.0, %v1188
    %1190 = vmatmul.f32.gmra.mxu0 %v1169
    %v1191 = vpop.f32.mrf.mxu0
    %v1192 = vadd.f32 0.0, %v1191
    %1193 = vdwg.mxu0
    %v1194 = vrcp.pop %v1189
    %v1195 = vrcp.pop %v1192
    %v1196 = vmul.f32 %v1150, %v1194
    %v1197 = vmul.f32 %v1151, %v1195
    %v1199 = vsel %vm612, %v1196, 0
    %v1202 = vsel %vm612, %v1197, 0
    %v1205 = vsel %vm612, %v1152, 0
    %v1208 = vsel %vm612, %v1153, 0
    %1210 = vmatpush.xpose.msra.mxu0 0.0
    %1211 = vmatpush.xpose.msra.mxu0 0.0
    %1212 = vmatpush.xpose.msra.mxu0 0.0
    %1213 = vmatpush.xpose.msra.mxu0 0.0
    %1214 = vmatpush.xpose.msra.mxu0 0.0
    %1215 = vmatpush.xpose.msra.mxu0 0.0
    %1216 = vmatpush.xpose.msra.mxu0 0.0
    %1217 = vmatpush.xpose.msra.mxu0 0.0
    %1218 = vmatpush.xpose.msra.mxu0 0.0
    %1219 = vmatpush.xpose.msra.mxu0 0.0
    %1220 = vmatpush.xpose.msra.mxu0 0.0
    %1221 = vmatpush.xpose.msra.mxu0 0.0
    %1222 = vmatpush.xpose.msra.mxu0 0.0
    %1223 = vmatpush.xpose.msra.mxu0 0.0
    %1224 = vmatpush.xpose.msra.mxu0 %v1208
    %1225 = vmatpush.xpose.msra.mxu0 %v1205
    %1226 = vmatmul.f32.gmra.mxu0 %v1199
    %v1227 = vpop.f32.mrf.mxu0
    %v1228 = vadd.f32 0.0, %v1227
    %1229 = vmatmul.f32.gmra.mxu0 %v1202
    %v1230 = vpop.f32.mrf.mxu0
    %v1231 = vadd.f32 0.0, %v1230
    %1232 = vdwg.mxu0
    %v1233 = vmul.f32 %v1228, 0.25
    %v1234 = vmul.f32 %v1231, 0.25
    %v1235 = vadd.f32 %v1233, 0.0
    %v1236 = vadd.f32 %v1234, 0.0
    %v1237 = vld [vmem:[%s10] sm:$0x1]
    %v1238 = vld [vmem:[%s11] sm:$0x1]
    %v1240 = vperm.slane %v1237, 0
    %v1242 = vmul.f32 %v873, %v1240
    %v1243 = vmul.f32 %v874, %v1240
    %v1245 = vperm.slane %v1238, 0
    %v1247 = vadd.f32 %v1242, %v1245
    %v1248 = vadd.f32 %v1243, %v1245
    %v1249 = vpack.c.bf16 %v1248, %v1247
    %v1250 = vld [vmem:[%s12] sm:$0xf]
    %v1251 = vld [vmem:[%s12 + $0x4] sm:$0xf]
    %v1252 = vld [vmem:[%s12 + $0x8] sm:$0xf]
    %v1253 = vld [vmem:[%s12 + $0xc] sm:$0xf]
    %v1254 = vld [vmem:[#allocation10] sm:$0x1]
    %v1256 = vperm.slane %v1254, 0
    %v1262 = vunpack.c.l.b16 %v1250
    %v1263 = vunpack.c.l.b16 %v1251
    %v1264 = vunpack.c.l.b16 %v1252
    %v1265 = vunpack.c.l.b16 %v1253
    %v1266 = vpack.c.b16 %v1263, %v1262
    %v1267 = vpack.c.b16 %v1265, %v1264
    %v1271 = vsel %vm200, %v1249, 0
    %1273 = vmatpush.bf16.msra.mxu0 0
    %1274 = vmatpush.bf16.msra.mxu0 0
    %1275 = vmatpush.bf16.msra.mxu0 0
    %1276 = vmatpush.bf16.msra.mxu0 0
    %1277 = vmatpush.bf16.msra.mxu0 0
    %1278 = vmatpush.bf16.msra.mxu0 0
    %1279 = vmatpush.bf16.msra.mxu0 %v1267
    %1280 = vmatpush.bf16.msra.mxu0 %v1266
    %1281 = vmatmul.bf16.gmra.mxu0 %v1271
    %v1282 = vpop.f32.mrf.mxu0
    %v1283 = vadd.f32 %v1256, %v1282
    %v1284 = vpop.f32.mrf.mxu0
    %v1285 = vadd.f32 %v1256, %v1284
    %1286 = vdwg.mxu0
    %v1287 = vmul.f32 %v1283, 0.5
    %v1288 = vmul.f32 %v1285, 0.5
    %v1289 = vmul.f32 %v1283, 0.70710677
    %v1290 = vmul.f32 %v1285, 0.70710677
    %v1291 = vand.u32 2147483647, %v1289
    %v1292 = vand.u32 2147483647, %v1290
    %v1293 = vmul.f32 %v1291, 0.3275911
    %v1294 = vmul.f32 %v1292, 0.3275911
    %v1295 = vadd.f32 %v1293, 1.0
    %v1296 = vadd.f32 %v1294, 1.0
    %v1297 = vrcp.pop %v1295
    %v1298 = vmul.f32 %v1295, %v1297
    %v1299 = vsub.f32 1.0, %v1298
    %v1300 = vmul.f32 %v1297, %v1299
    %v1301 = vadd.f32 %v1297, %v1300
    %vm1302 = vweird.f32 %v1295
    %vm1303 = vweird.f32 %v1297
    %vm1304 = vmor %vm1302, %vm1303
    %v1305 = vsel %vm1304, %v1297, %v1301
    %v1306 = vand.u32 2147483647, %v1295
    %vm1307 = vcmp.eq.f32.partialorder %v1306, 8.507059e+37
    %v1308 = vand.u32 %v1295, 2147483648
    %v1309 = vor.u32 1.1754944e-38, %v1308
    %v1310 = vsel %vm1307, %v1309, %v1305
    %v1311 = vmul.f32 1.0, %v1310
    %v1312 = vrcp.pop %v1296
    %v1313 = vmul.f32 %v1296, %v1312
    %v1314 = vsub.f32 1.0, %v1313
    %v1315 = vmul.f32 %v1312, %v1314
    %v1316 = vadd.f32 %v1312, %v1315
    %vm1317 = vweird.f32 %v1296
    %vm1318 = vweird.f32 %v1312
    %vm1319 = vmor %vm1317, %vm1318
    %v1320 = vsel %vm1319, %v1312, %v1316
    %v1321 = vand.u32 2147483647, %v1296
    %vm1322 = vcmp.eq.f32.partialorder %v1321, 8.507059e+37
    %v1323 = vand.u32 %v1296, 2147483648
    %v1324 = vor.u32 1.1754944e-38, %v1323
    %v1325 = vsel %vm1322, %v1324, %v1320
    %v1326 = vmul.f32 1.0, %v1325
    %v1327 = vmul.f32 %v1311, 1.0614054
    %v1328 = vmul.f32 %v1326, 1.0614054
    %v1329 = vadd.f32 %v1327, -1.4531521
    %v1330 = vadd.f32 %v1328, -1.4531521
    %v1331 = vmul.f32 %v1329, %v1311
    %v1332 = vmul.f32 %v1330, %v1326
    %v1333 = vadd.f32 %v1331, 1.4214138
    %v1334 = vadd.f32 %v1332, 1.4214138
    %v1335 = vmul.f32 %v1333, %v1311
    %v1336 = vmul.f32 %v1334, %v1326
    %v1337 = vadd.f32 %v1335, -0.28449672
    %v1338 = vadd.f32 %v1336, -0.28449672
    %v1339 = vmul.f32 %v1337, %v1311
    %v1340 = vmul.f32 %v1338, %v1326
    %v1341 = vadd.f32 %v1339, 0.2548296
    %v1342 = vadd.f32 %v1340, 0.2548296
    %v1343 = vmul.f32 %v1341, %v1311
    %v1344 = vmul.f32 %v1342, %v1326
    %v1345 = vsub.f32 0.0, %v1291
    %v1346 = vsub.f32 0.0, %v1292
    %v1347 = vmul.f32 %v1345, %v1291
    %v1348 = vmul.f32 %v1346, %v1292
    %v1349 = vmul.f32 %v1347, 1.442695
    %v1350 = vpow.pop %v1349
    %v1351 = vmul.f32 %v1348, 1.442695
    %v1352 = vpow.pop %v1351
    %v1353 = vmul.f32 %v1343, %v1350
    %v1354 = vmul.f32 %v1344, %v1352
    %v1355 = vsub.f32 1.0, %v1353
    %v1356 = vsub.f32 1.0, %v1354
    %vm1357 = vcmp.ge.f32.partialorder %v1289, 0.0
    %vm1358 = vcmp.ge.f32.partialorder %v1290, 0.0
    %v1359 = vsub.f32 0.0, %v1355
    %v1360 = vsub.f32 0.0, %v1356
    %v1361 = vsel %vm1357, %v1355, %v1359
    %v1362 = vsel %vm1358, %v1356, %v1360
    %v1363 = vadd.f32 %v1361, 1.0
    %v1364 = vadd.f32 %v1362, 1.0
    %v1365 = vmul.f32 %v1287, %v1363
    %v1366 = vmul.f32 %v1288, %v1364
    %v1367 = vpack.c.bf16 %v1366, %v1365
    %v1368 = vld [vmem:[%s14] sm:$0xf]
    %v1369 = vld [vmem:[%s14 + $0x4] sm:$0xf]
    %v1370 = vld [vmem:[%s14 + $0x8] sm:$0xf]
    %v1371 = vld [vmem:[%s14 + $0xc] sm:$0xf]
    %v1372 = vld [vmem:[%s14 + $0x10] sm:$0xf]
    %v1373 = vld [vmem:[%s14 + $0x14] sm:$0xf]
    %v1374 = vld [vmem:[%s14 + $0x18] sm:$0xf]
    %v1375 = vld [vmem:[%s14 + $0x1c] sm:$0xf]
    %v1376 = vld [vmem:[%s14 + $0x20] sm:$0xf]
    %v1377 = vld [vmem:[%s14 + $0x24] sm:$0xf]
    %v1378 = vld [vmem:[%s14 + $0x28] sm:$0xf]
    %v1379 = vld [vmem:[%s14 + $0x2c] sm:$0xf]
    %v1380 = vld [vmem:[%s14 + $0x30] sm:$0xf]
    %v1381 = vld [vmem:[%s14 + $0x34] sm:$0xf]
    %v1382 = vld [vmem:[%s14 + $0x38] sm:$0xf]
    %v1383 = vld [vmem:[%s14 + $0x3c] sm:$0xf]
    %v1384 = vld [vmem:[#allocation11] sm:$0x1]
    %v1386 = vperm.slane %v1384, 0
    %v1404 = vunpack.c.l.b16 %v1368
    %v1405 = vunpack.c.l.b16 %v1369
    %v1406 = vunpack.c.l.b16 %v1370
    %v1407 = vunpack.c.l.b16 %v1371
    %v1408 = vunpack.c.l.b16 %v1372
    %v1409 = vunpack.c.l.b16 %v1373
    %v1410 = vunpack.c.l.b16 %v1374
    %v1411 = vunpack.c.l.b16 %v1375
    %v1412 = vunpack.c.l.b16 %v1376
    %v1413 = vunpack.c.l.b16 %v1377
    %v1414 = vunpack.c.l.b16 %v1378
    %v1415 = vunpack.c.l.b16 %v1379
    %v1416 = vunpack.c.l.b16 %v1380
    %v1417 = vunpack.c.l.b16 %v1381
    %v1418 = vunpack.c.l.b16 %v1382
    %v1419 = vunpack.c.l.b16 %v1383
    %v1420 = vpack.c.b16 %v1405, %v1404
    %v1421 = vpack.c.b16 %v1407, %v1406
    %v1422 = vpack.c.b16 %v1409, %v1408
    %v1423 = vpack.c.b16 %v1411, %v1410
    %v1424 = vpack.c.b16 %v1413, %v1412
    %v1425 = vpack.c.b16 %v1415, %v1414
    %v1426 = vpack.c.b16 %v1417, %v1416
    %v1427 = vpack.c.b16 %v1419, %v1418
    %1436 = vmatpush.bf16.msra.mxu0 %v1427
    %1437 = vmatpush.bf16.msra.mxu0 %v1426
    %1438 = vmatpush.bf16.msra.mxu0 %v1425
    %1439 = vmatpush.bf16.msra.mxu0 %v1424
    %1440 = vmatpush.bf16.msra.mxu0 %v1423
    %1441 = vmatpush.bf16.msra.mxu0 %v1422
    %1442 = vmatpush.bf16.msra.mxu0 %v1421
    %1443 = vmatpush.bf16.msra.mxu0 %v1420
    %1444 = vmatmul.bf16.gmra.mxu0 %v1367
    %v1445 = vpop.f32.mrf.mxu0
    %v1446 = vadd.f32 %v1386, %v1445
    %v1447 = vpop.f32.mrf.mxu0
    %v1448 = vadd.f32 %v1386, %v1447
    %1449 = vdwg.mxu0
    %v1450 = vadd.f32 %v829, %v1446
    %v1451 = vadd.f32 %v830, %v1448
    %s1452 = scalar_lea.vmem %s1, 1
    %v1453 = vld [vmem:[%s1452] sm:$0x1]
    %s1454 = scalar_lea.vmem %s2, 1
    %v1455 = vld [vmem:[%s1454] sm:$0x1]
    %v1456 = vsel %vm200, %v1450, 0.0
    %1457 = vadd.xlane.f32.xlu0 %v1456
    %v1458 = vpop.xlane.xlu0 %1457
    %v1459 = vsel %vm200, %v1451, 0.0
    %1460 = vadd.xlane.f32.xlu0 %v1459
    %v1461 = vpop.xlane.xlu0 %1460
    %v1462 = vmul.f32 %v1458, %v213
    %v1463 = vmul.f32 %v1461, %v213
    %v1464 = vsub.f32 %v1450, %v1462
    %v1465 = vsub.f32 %v1451, %v1463
    %v1466 = vmul.f32 %v1464, %v1464
    %v1467 = vmul.f32 %v1465, %v1465
    %v1468 = vsel %vm200, %v1466, 0.0
    %1469 = vadd.xlane.f32.xlu0 %v1468
    %v1470 = vpop.xlane.xlu0 %1469
    %v1471 = vsel %vm200, %v1467, 0.0
    %1472 = vadd.xlane.f32.xlu0 %v1471
    %v1473 = vpop.xlane.xlu0 %1472
    %v1474 = vmul.f32 %v1470, %v213
    %v1475 = vmul.f32 %v1473, %v213
    %v1476 = vadd.f32 %v1474, 1e-05
    %v1477 = vadd.f32 %v1475, 1e-05
    %v1478 = vrsqrt.pop %v1476
    %v1479 = vmul.f32 %v1478, %v1476
    %v1480 = vmul.f32 %v1479, %v1478
    %v1481 = vmul.f32 0.5, %v1480
    %v1482 = vsub.f32 1.5, %v1481
    %v1483 = vmul.f32 %v1478, %v1482
    %vm1484 = vweird.f32 %v1476
    %vm1485 = vweird.f32 %v1478
    %vm1486 = vmor %vm1484, %vm1485
    %v1487 = vsel %vm1486, %v1478, %v1483
    %v1488 = vrsqrt.pop %v1477
    %v1489 = vmul.f32 %v1488, %v1477
    %v1490 = vmul.f32 %v1489, %v1488
    %v1491 = vmul.f32 0.5, %v1490
    %v1492 = vsub.f32 1.5, %v1491
    %v1493 = vmul.f32 %v1488, %v1492
    %vm1494 = vweird.f32 %v1477
    %vm1495 = vweird.f32 %v1488
    %vm1496 = vmor %vm1494, %vm1495
    %v1497 = vsel %vm1496, %v1488, %v1493
    %v1498 = vmul.f32 %v1464, %v1487
    %v1499 = vmul.f32 %v1465, %v1497
    %v1501 = vperm.slane %v1453, 0
    %v1503 = vmul.f32 %v1498, %v1501
    %v1504 = vmul.f32 %v1499, %v1501
    %v1506 = vperm.slane %v1455, 0
    %v1508 = vadd.f32 %v1503, %v1506
    %v1509 = vadd.f32 %v1504, %v1506
    %v1510 = vpack.c.bf16 %v1509, %v1508
    %s1511 = scalar_lea.vmem %s3, 16
    %v1512 = vld [vmem:[%s1511] sm:$0xf]
    %v1513 = vld [vmem:[%s1511 + $0x4] sm:$0xf]
    %v1514 = vld [vmem:[%s1511 + $0x8] sm:$0xf]
    %v1515 = vld [vmem:[%s1511 + $0xc] sm:$0xf]
    %s1516 = scalar_lea.vmem [#allocation5], 1
    %v1517 = vld [vmem:[%s1516] sm:$0x1]
    %v1519 = vperm.slane %v1517, 0
    %v1525 = vunpack.c.l.b16 %v1512
    %v1526 = vunpack.c.l.b16 %v1513
    %v1527 = vunpack.c.l.b16 %v1514
    %v1528 = vunpack.c.l.b16 %v1515
    %v1529 = vpack.c.b16 %v1526, %v1525
    %v1530 = vpack.c.b16 %v1528, %v1527
    %v1534 = vsel %vm200, %v1510, 0
    %1536 = vmatpush.bf16.msra.mxu0 0
    %1537 = vmatpush.bf16.msra.mxu0 0
    %1538 = vmatpush.bf16.msra.mxu0 0
    %1539 = vmatpush.bf16.msra.mxu0 0
    %1540 = vmatpush.bf16.msra.mxu0 0
    %1541 = vmatpush.bf16.msra.mxu0 0
    %1542 = vmatpush.bf16.msra.mxu0 %v1530
    %1543 = vmatpush.bf16.msra.mxu0 %v1529
    %1544 = vmatmul.bf16.gmra.mxu0 %v1534
    %v1545 = vpop.f32.mrf.mxu0
    %v1546 = vadd.f32 %v1519, %v1545
    %v1547 = vpop.f32.mrf.mxu0
    %v1548 = vadd.f32 %v1519, %v1547
    %1549 = vdwg.mxu0
    %1552 = vrot.lane.b32.xlu0 %v1546, 96
    %v1553 = vpop.permute.xlu0 %1552
    %1554 = vrot.lane.b32.xlu0 %v1548, 96
    %v1555 = vpop.permute.xlu0 %1554
    %v1558 = vmul.f32 %v1546, 0.59460354
    %v1559 = vmul.f32 %v1548, 0.59460354
    %v1560 = vmul.f32 %v1553, 0.59460354
    %v1561 = vmul.f32 %v1555, 0.59460354
    %v1562 = vpack.c.bf16 %v1559, %v1558
    %v1563 = vpack.c.bf16 %v1561, %v1560
    %s1564 = scalar_lea.vmem %s9, 16
    %v1565 = vld [vmem:[%s1564] sm:$0xf]
    %v1566 = vld [vmem:[%s1564 + $0x4] sm:$0xf]
    %v1567 = vld [vmem:[%s1564 + $0x8] sm:$0xf]
    %v1568 = vld [vmem:[%s1564 + $0xc] sm:$0xf]
    %v1573 = vunpack.c.l.b16 %v1565
    %v1574 = vunpack.c.l.b16 %v1566
    %v1575 = vunpack.c.l.b16 %v1567
    %v1576 = vunpack.c.l.b16 %v1568
    %v1577 = vpack.c.b16 %v1574, %v1573
    %v1578 = vpack.c.b16 %v1576, %v1575
    %v1582 = vsel %vm200, %v1562, 0
    %v1585 = vsel %vm200, %v1563, 0
    %1587 = vmatpush.bf16.msra.mxu0 0
    %1588 = vmatpush.bf16.msra.mxu0 0
    %1589 = vmatpush.bf16.msra.mxu0 0
    %1590 = vmatpush.bf16.msra.mxu0 0
    %1591 = vmatpush.bf16.msra.mxu0 0
    %1592 = vmatpush.bf16.msra.mxu0 0
    %1593 = vmatpush.bf16.msra.mxu0 %v1578
    %1594 = vmatpush.bf16.msra.mxu0 %v1577
    %1595 = vmatmul.bf16.gmra.mxu0 %v1582
    %v1596 = vpop.f32.mrf.mxu0
    %v1597 = vadd.f32 0.0, %v1596
    %v1598 = vpop.f32.mrf.mxu0
    %v1599 = vadd.f32 0.0, %v1598
    %1600 = vmatmul.bf16.gmra.mxu0 %v1585
    %v1601 = vpop.f32.mrf.mxu0
    %v1602 = vadd.f32 0.0, %v1601
    %v1603 = vpop.f32.mrf.mxu0
    %v1604 = vadd.f32 0.0, %v1603
    %1605 = vdwg.mxu0
    %v1606 = vmul.f32 %v1558, %v1558
    %v1607 = vmul.f32 %v1559, %v1559
    %v1608 = vmul.f32 %v1560, %v1560
    %v1609 = vmul.f32 %v1561, %v1561
    %v1611 = vsel %vm200, %v1606, 0
    %v1614 = vsel %vm200, %v1607, 0
    %v1617 = vsel %vm200, %v1608, 0
    %v1620 = vsel %vm200, %v1609, 0
    %1622 = vmatpush.msra.mxu0 0.0
    %1623 = vmatpush.msra.mxu0 0.0
    %1624 = vmatpush.msra.mxu0 0.0
    %1625 = vmatpush.msra.mxu0 0.0
    %1626 = vmatpush.msra.mxu0 0.0
    %1627 = vmatpush.msra.mxu0 0.0
    %1628 = vmatpush.msra.mxu0 0.0
    %1629 = vmatpush.msra.mxu0 0.0
    %1630 = vmatpush.msra.mxu0 0.0
    %1631 = vmatpush.msra.mxu0 0.0
    %1632 = vmatpush.msra.mxu0 0.0
    %1633 = vmatpush.msra.mxu0 0.0
    %1634 = vmatpush.msra.mxu0 %v181
    %1635 = vmatpush.msra.mxu0 %v180
    %1636 = vmatpush.msra.mxu0 %v179
    %1637 = vmatpush.msra.mxu0 %v178
    %1638 = vmatmul.f32.gmra.mxu0 %v1611
    %v1639 = vpop.f32.mrf.mxu0
    %v1640 = vadd.f32 0.0, %v1639
    %1641 = vmatmul.f32.gmra.mxu0 %v1614
    %v1642 = vpop.f32.mrf.mxu0
    %v1643 = vadd.f32 0.0, %v1642
    %1644 = vmatmul.f32.gmra.mxu0 %v1617
    %v1645 = vpop.f32.mrf.mxu0
    %v1646 = vadd.f32 0.0, %v1645
    %1647 = vmatmul.f32.gmra.mxu0 %v1620
    %v1648 = vpop.f32.mrf.mxu0
    %v1649 = vadd.f32 0.0, %v1648
    %1650 = vdwg.mxu0
    %v1651 = vmul.f32 %v1640, 0.5
    %v1652 = vmul.f32 %v1643, 0.5
    %v1653 = vmul.f32 %v1646, 0.5
    %v1654 = vmul.f32 %v1649, 0.5
    %v1655 = vsel %vm404, %v1597, -inf
    %1656 = vmax.xlane.f32.xlu0 %v1655
    %v1657 = vpop.xlane.xlu0 %1656
    %v1658 = vsel %vm404, %v1599, -inf
    %1659 = vmax.xlane.f32.xlu0 %v1658
    %v1660 = vpop.xlane.xlu0 %1659
    %v1661 = vsel %vm404, %v1602, -inf
    %1662 = vmax.xlane.f32.xlu0 %v1661
    %v1663 = vpop.xlane.xlu0 %1662
    %v1664 = vsel %vm404, %v1604, -inf
    %1665 = vmax.xlane.f32.xlu0 %v1664
    %v1666 = vpop.xlane.xlu0 %1665
    %v1667 = vmax.f32 %v1663, %v1666
    %v1668 = vrot.slane %v1667, 4
    %v1669 = vmax.f32 %v1667, %v1668
    %v1670 = vrot.slane %v1669, 2
    %v1671 = vmax.f32 %v1669, %v1670
    %v1672 = vrot.slane %v1671, 1
    %v1673 = vmax.f32 %v1671, %v1672
    %1675 = vset.pattern.permute.xlu0 0
    %1676 = vperm.xlu0 %1675, %v1657
    %v1677 = vpop.permute.xlu0 %1676
    %1680 = vset.pattern.permute.xlu0 0
    %1681 = vperm.xlu0 %1680, %v1660
    %v1682 = vpop.permute.xlu0 %1681
    %1685 = vset.pattern.permute.xlu0 0
    %1686 = vperm.xlu0 %1685, %v1673
    %v1687 = vpop.permute.xlu0 %1686
    %v1689 = vsel %vm439, %v1597, -inf
    %1690 = vmax.xlane.f32.xlu0 %v1689
    %v1691 = vpop.xlane.xlu0 %1690
    %v1692 = vsel %vm439, %v1599, -inf
    %1693 = vmax.xlane.f32.xlu0 %v1692
    %v1694 = vpop.xlane.xlu0 %1693
    %v1695 = vsel %vm439, %v1602, -inf
    %1696 = vmax.xlane.f32.xlu0 %v1695
    %v1697 = vpop.xlane.xlu0 %1696
    %v1698 = vsel %vm439, %v1604, -inf
    %1699 = vmax.xlane.f32.xlu0 %v1698
    %v1700 = vpop.xlane.xlu0 %1699
    %v1701 = vmax.f32 %v1697, %v1700
    %v1702 = vrot.slane %v1701, 4
    %v1703 = vmax.f32 %v1701, %v1702
    %v1704 = vrot.slane %v1703, 2
    %v1705 = vmax.f32 %v1703, %v1704
    %v1706 = vrot.slane %v1705, 1
    %v1707 = vmax.f32 %v1705, %v1706
    %1709 = vset.pattern.permute.xlu0 0
    %1710 = vperm.xlu0 %1709, %v1691
    %v1711 = vpop.permute.xlu0 %1710
    %1714 = vset.pattern.permute.xlu0 0
    %1715 = vperm.xlu0 %1714, %v1694
    %v1716 = vpop.permute.xlu0 %1715
    %1719 = vset.pattern.permute.xlu0 0
    %1720 = vperm.xlu0 %1719, %v1707
    %v1721 = vpop.permute.xlu0 %1720
    %v1723 = vsel %vm474, %v1597, -inf
    %1724 = vmax.xlane.f32.xlu0 %v1723
    %v1725 = vpop.xlane.xlu0 %1724
    %v1726 = vsel %vm474, %v1599, -inf
    %1727 = vmax.xlane.f32.xlu0 %v1726
    %v1728 = vpop.xlane.xlu0 %1727
    %v1729 = vsel %vm474, %v1602, -inf
    %1730 = vmax.xlane.f32.xlu0 %v1729
    %v1731 = vpop.xlane.xlu0 %1730
    %v1732 = vsel %vm474, %v1604, -inf
    %1733 = vmax.xlane.f32.xlu0 %v1732
    %v1734 = vpop.xlane.xlu0 %1733
    %v1735 = vmax.f32 %v1731, %v1734
    %v1736 = vrot.slane %v1735, 4
    %v1737 = vmax.f32 %v1735, %v1736
    %v1738 = vrot.slane %v1737, 2
    %v1739 = vmax.f32 %v1737, %v1738
    %v1740 = vrot.slane %v1739, 1
    %v1741 = vmax.f32 %v1739, %v1740
    %1743 = vset.pattern.permute.xlu0 0
    %1744 = vperm.xlu0 %1743, %v1725
    %v1745 = vpop.permute.xlu0 %1744
    %1748 = vset.pattern.permute.xlu0 0
    %1749 = vperm.xlu0 %1748, %v1728
    %v1750 = vpop.permute.xlu0 %1749
    %1753 = vset.pattern.permute.xlu0 0
    %1754 = vperm.xlu0 %1753, %v1741
    %v1755 = vpop.permute.xlu0 %1754
    %v1757 = vsel %vm509, %v1597, -inf
    %1758 = vmax.xlane.f32.xlu0 %v1757
    %v1759 = vpop.xlane.xlu0 %1758
    %v1760 = vsel %vm509, %v1599, -inf
    %1761 = vmax.xlane.f32.xlu0 %v1760
    %v1762 = vpop.xlane.xlu0 %1761
    %v1763 = vsel %vm509, %v1602, -inf
    %1764 = vmax.xlane.f32.xlu0 %v1763
    %v1765 = vpop.xlane.xlu0 %1764
    %v1766 = vsel %vm509, %v1604, -inf
    %1767 = vmax.xlane.f32.xlu0 %v1766
    %v1768 = vpop.xlane.xlu0 %1767
    %v1769 = vmax.f32 %v1765, %v1768
    %v1770 = vrot.slane %v1769, 4
    %v1771 = vmax.f32 %v1769, %v1770
    %v1772 = vrot.slane %v1771, 2
    %v1773 = vmax.f32 %v1771, %v1772
    %v1774 = vrot.slane %v1773, 1
    %v1775 = vmax.f32 %v1773, %v1774
    %1777 = vset.pattern.permute.xlu0 0
    %1778 = vperm.xlu0 %1777, %v1759
    %v1779 = vpop.permute.xlu0 %1778
    %1782 = vset.pattern.permute.xlu0 0
    %1783 = vperm.xlu0 %1782, %v1762
    %v1784 = vpop.permute.xlu0 %1783
    %1787 = vset.pattern.permute.xlu0 0
    %1788 = vperm.xlu0 %1787, %v1775
    %v1789 = vpop.permute.xlu0 %1788
    %v1791 = vsel %vm404, %v1677, %v1711
    %v1792 = vsel %vm404, %v1682, %v1716
    %v1793 = vsel %vm404, %v1687, %v1721
    %v1794 = vsel %vm200, %v1791, %v1745
    %v1795 = vsel %vm200, %v1792, %v1750
    %v1796 = vsel %vm200, %v1793, %v1755
    %v1797 = vsel %vm550, %v1794, %v1779
    %v1798 = vsel %vm550, %v1795, %v1784
    %v1799 = vsel %vm550, %v1796, %v1789
    %v1800 = vsub.f32 %v1597, %v1651
    %v1801 = vsub.f32 %v1599, %v1652
    %v1802 = vsub.f32 %v1602, %v1653
    %v1803 = vsub.f32 %v1604, %v1654
    %v1804 = vsub.f32 %v1800, %v1797
    %v1805 = vsub.f32 %v1801, %v1798
    %v1806 = vsub.f32 %v1802, %v1799
    %v1807 = vsub.f32 %v1803, %v1799
    %v1808 = vmul.f32 %v1804, 1.442695
    %v1809 = vpow.pop %v1808
    %v1810 = vmul.f32 %v1805, 1.442695
    %v1811 = vpow.pop %v1810
    %v1812 = vmul.f32 %v1806, 1.442695
    %v1813 = vpow.pop %v1812
    %v1814 = vmul.f32 %v1807, 1.442695
    %v1815 = vpow.pop %v1814
    %v1816 = vadd.f32 %v1809, 0.0001
    %v1817 = vadd.f32 %v1811, 0.0001
    %v1818 = vadd.f32 %v1813, 0.0001
    %v1819 = vadd.f32 %v1815, 0.0001
    %v1820 = vmul.f32 %v1816, 0.25
    %v1821 = vmul.f32 %v1817, 0.25
    %v1822 = vmul.f32 %v1818, 0.25
    %v1823 = vmul.f32 %v1819, 0.25
    %s1824 = scalar_lea.vmem %s5, 16
    %v1825 = vld [vmem:[%s1824] sm:$0xf]
    %v1826 = vld [vmem:[%s1824 + $0x4] sm:$0xf]
    %v1827 = vld [vmem:[%s1824 + $0x8] sm:$0xf]
    %v1828 = vld [vmem:[%s1824 + $0xc] sm:$0xf]
    %s1829 = scalar_lea.vmem [#allocation7], 1
    %v1830 = vld [vmem:[%s1829] sm:$0x1]
    %v1832 = vperm.slane %v1830, 0
    %v1838 = vunpack.c.l.b16 %v1825
    %v1839 = vunpack.c.l.b16 %v1826
    %v1840 = vunpack.c.l.b16 %v1827
    %v1841 = vunpack.c.l.b16 %v1828
    %v1842 = vpack.c.b16 %v1839, %v1838
    %v1843 = vpack.c.b16 %v1841, %v1840
    %1846 = vmatpush.bf16.msra.mxu0 0
    %1847 = vmatpush.bf16.msra.mxu0 0
    %1848 = vmatpush.bf16.msra.mxu0 0
    %1849 = vmatpush.bf16.msra.mxu0 0
    %1850 = vmatpush.bf16.msra.mxu0 0
    %1851 = vmatpush.bf16.msra.mxu0 0
    %1852 = vmatpush.bf16.msra.mxu0 %v1843
    %1853 = vmatpush.bf16.msra.mxu0 %v1842
    %1854 = vmatmul.bf16.gmra.mxu0 %v1534
    %v1855 = vpop.f32.mrf.mxu0
    %v1856 = vadd.f32 %v1832, %v1855
    %v1857 = vpop.f32.mrf.mxu0
    %v1858 = vadd.f32 %v1832, %v1857
    %1859 = vdwg.mxu0
    %v1860 = vsel %vm612, %v1822, 0.0
    %v1861 = vsel %vm612, %v1823, 0.0
    %v1862 = vadd.f32 %v1860, %v1861
    %v1863 = vrot.slane %v1862, 4
    %v1864 = vadd.f32 %v1862, %v1863
    %v1865 = vrot.slane %v1864, 2
    %v1866 = vadd.f32 %v1864, %v1865
    %v1867 = vrot.slane %v1866, 1
    %v1868 = vadd.f32 %v1866, %v1867
    %v1869 = vmul.f32 %v1820, %v1868
    %v1870 = vmul.f32 %v1821, %v1868
    %v1872 = vsel %vm612, %v1869, 0
    %v1875 = vsel %vm612, %v1870, 0
    %1877 = vmatpush.msra.mxu0 0.0
    %1878 = vmatpush.msra.mxu0 0.0
    %1879 = vmatpush.msra.mxu0 0.0
    %1880 = vmatpush.msra.mxu0 0.0
    %1881 = vmatpush.msra.mxu0 0.0
    %1882 = vmatpush.msra.mxu0 0.0
    %1883 = vmatpush.msra.mxu0 0.0
    %1884 = vmatpush.msra.mxu0 0.0
    %1885 = vmatpush.msra.mxu0 %v189
    %1886 = vmatpush.msra.mxu0 %v188
    %1887 = vmatpush.msra.mxu0 %v187
    %1888 = vmatpush.msra.mxu0 %v186
    %1889 = vmatpush.msra.mxu0 %v185
    %1890 = vmatpush.msra.mxu0 %v184
    %1891 = vmatpush.msra.mxu0 %v183
    %1892 = vmatpush.msra.mxu0 %v182
    %1893 = vmatmul.f32.gmra.mxu0 %v1872
    %v1894 = vpop.f32.mrf.mxu0
    %v1895 = vadd.f32 0.0, %v1894
    %1896 = vmatmul.f32.gmra.mxu0 %v1875
    %v1897 = vpop.f32.mrf.mxu0
    %v1898 = vadd.f32 0.0, %v1897
    %1899 = vdwg.mxu0
    %1900 = vxpose.xlu0.b32.start [1/16] %v1822, 128
    %1901 = vxpose.xlu0.b32.cont [2/16] %v1823, 128
    %1902 = vxpose.xlu0.b32.cont [3/16] 0.0, 128
    %1903 = vxpose.xlu0.b32.cont [4/16] 0.0, 128
    %1904 = vxpose.xlu0.b32.cont [5/16] 0.0, 128
    %1905 = vxpose.xlu0.b32.cont [6/16] 0.0, 128
    %1906 = vxpose.xlu0.b32.cont [7/16] 0.0, 128
    %1907 = vxpose.xlu0.b32.cont [8/16] 0.0, 128
    %1908 = vxpose.xlu0.b32.cont [9/16] 0.0, 128
    %1909 = vxpose.xlu0.b32.cont [10/16] 0.0, 128
    %1910 = vxpose.xlu0.b32.cont [11/16] 0.0, 128
    %1911 = vxpose.xlu0.b32.cont [12/16] 0.0, 128
    %1912 = vxpose.xlu0.b32.cont [13/16] 0.0, 128
    %1913 = vxpose.xlu0.b32.cont [14/16] 0.0, 128
    %1914 = vxpose.xlu0.b32.cont [15/16] 0.0, 128
    %1915 = vxpose.xlu0.b32.end [16/16] 0.0, 128
    %v1916 = vpop.trf.xlu0
    %v1917 = vpop.trf.xlu0
    %v1918 = vpop.trf.xlu0
    %v1919 = vpop.trf.xlu0
    %v1920 = vpop.trf.xlu0
    %v1921 = vpop.trf.xlu0
    %v1922 = vpop.trf.xlu0
    %v1923 = vpop.trf.xlu0
    %v1924 = vpop.trf.xlu0
    %v1925 = vpop.trf.xlu0
    %v1926 = vpop.trf.xlu0
    %v1927 = vpop.trf.xlu0
    %v1928 = vpop.trf.xlu0
    %v1929 = vpop.trf.xlu0
    %v1930 = vpop.trf.xlu0
    %v1931 = vpop.trf.xlu0
    %v1933 = vsel %vm404, %v1916, 0
    %v1936 = vsel %vm404, %v1917, 0
    %v1939 = vsel %vm404, %v1918, 0
    %v1942 = vsel %vm404, %v1919, 0
    %v1945 = vsel %vm404, %v1920, 0
    %v1948 = vsel %vm404, %v1921, 0
    %v1951 = vsel %vm404, %v1922, 0
    %v1954 = vsel %vm404, %v1923, 0
    %1956 = vmatpush.msra.mxu0 0.0
    %1957 = vmatpush.msra.mxu0 0.0
    %1958 = vmatpush.msra.mxu0 0.0
    %1959 = vmatpush.msra.mxu0 0.0
    %1960 = vmatpush.msra.mxu0 0.0
    %1961 = vmatpush.msra.mxu0 0.0
    %1962 = vmatpush.msra.mxu0 0.0
    %1963 = vmatpush.msra.mxu0 0.0
    %1964 = vmatpush.msra.mxu0 0.0
    %1965 = vmatpush.msra.mxu0 0.0
    %1966 = vmatpush.msra.mxu0 0.0
    %1967 = vmatpush.msra.mxu0 0.0
    %1968 = vmatpush.msra.mxu0 0.0
    %1969 = vmatpush.msra.mxu0 0.0
    %1970 = vmatpush.msra.mxu0 %v1858
    %1971 = vmatpush.msra.mxu0 %v1856
    %1972 = vmatmul.f32.gmra.mxu0 %v1933
    %v1973 = vpop.f32.mrf.mxu0
    %v1974 = vadd.f32 0.0, %v1973
    %1975 = vmatmul.f32.gmra.mxu0 %v1936
    %v1976 = vpop.f32.mrf.mxu0
    %v1977 = vadd.f32 0.0, %v1976
    %1978 = vmatmul.f32.gmra.mxu0 %v1939
    %v1979 = vpop.f32.mrf.mxu0
    %v1980 = vadd.f32 0.0, %v1979
    %1981 = vmatmul.f32.gmra.mxu0 %v1942
    %v1982 = vpop.f32.mrf.mxu0
    %v1983 = vadd.f32 0.0, %v1982
    %1984 = vmatmul.f32.gmra.mxu0 %v1945
    %v1985 = vpop.f32.mrf.mxu0
    %v1986 = vadd.f32 0.0, %v1985
    %1987 = vmatmul.f32.gmra.mxu0 %v1948
    %v1988 = vpop.f32.mrf.mxu0
    %v1989 = vadd.f32 0.0, %v1988
    %1990 = vmatmul.f32.gmra.mxu0 %v1951
    %v1991 = vpop.f32.mrf.mxu0
    %v1992 = vadd.f32 0.0, %v1991
    %1993 = vmatmul.f32.gmra.mxu0 %v1954
    %v1994 = vpop.f32.mrf.mxu0
    %v1995 = vadd.f32 0.0, %v1994
    %1996 = vdwg.mxu0
    %v1997 = vmul.f32 %v1974, %v182
    %v1998 = vmul.f32 %v1977, %v183
    %v1999 = vmul.f32 %v1980, %v184
    %v2000 = vmul.f32 %v1983, %v185
    %v2001 = vmul.f32 %v1986, %v186
    %v2002 = vmul.f32 %v1989, %v187
    %v2003 = vmul.f32 %v1992, %v188
    %v2004 = vmul.f32 %v1995, %v189
    %v2006 = vsel %vm612, %v1820, 0
    %v2009 = vsel %vm612, %v1821, 0
    %2011 = vmatpush.msra.mxu0 0.0
    %2012 = vmatpush.msra.mxu0 0.0
    %2013 = vmatpush.msra.mxu0 0.0
    %2014 = vmatpush.msra.mxu0 0.0
    %2015 = vmatpush.msra.mxu0 0.0
    %2016 = vmatpush.msra.mxu0 0.0
    %2017 = vmatpush.msra.mxu0 0.0
    %2018 = vmatpush.msra.mxu0 0.0
    %2019 = vmatpush.msra.mxu0 %v2004
    %2020 = vmatpush.msra.mxu0 %v2003
    %2021 = vmatpush.msra.mxu0 %v2002
    %2022 = vmatpush.msra.mxu0 %v2001
    %2023 = vmatpush.msra.mxu0 %v2000
    %2024 = vmatpush.msra.mxu0 %v1999
    %2025 = vmatpush.msra.mxu0 %v1998
    %2026 = vmatpush.msra.mxu0 %v1997
    %2027 = vmatmul.f32.gmra.mxu0 %v2006
    %v2028 = vpop.f32.mrf.mxu0
    %v2029 = vadd.f32 0.0, %v2028
    %2030 = vmatmul.f32.gmra.mxu0 %v2009
    %v2031 = vpop.f32.mrf.mxu0
    %v2032 = vadd.f32 0.0, %v2031
    %2033 = vdwg.mxu0
    %v2034 = vrcp.pop %v1895
    %v2035 = vrcp.pop %v1898
    %v2036 = vmul.f32 %v2029, %v2034
    %v2037 = vmul.f32 %v2032, %v2035
    %v2038 = vpack.c.bf16 %v2037, %v2036
    %s2039 = scalar_lea.vmem %s7, 16
    %v2040 = vld [vmem:[%s2039] sm:$0xf]
    %v2041 = vld [vmem:[%s2039 + $0x4] sm:$0xf]
    %v2042 = vld [vmem:[%s2039 + $0x8] sm:$0xf]
    %v2043 = vld [vmem:[%s2039 + $0xc] sm:$0xf]
    %s2044 = scalar_lea.vmem [#allocation8], 1
    %v2045 = vld [vmem:[%s2044] sm:$0x1]
    %v2047 = vperm.slane %v2045, 0
    %v2053 = vunpack.c.l.b16 %v2040
    %v2054 = vunpack.c.l.b16 %v2041
    %v2055 = vunpack.c.l.b16 %v2042
    %v2056 = vunpack.c.l.b16 %v2043
    %v2057 = vpack.c.b16 %v2054, %v2053
    %v2058 = vpack.c.b16 %v2056, %v2055
    %v2062 = vsel %vm200, %v2038, 0
    %2064 = vmatpush.bf16.msra.mxu0 0
    %2065 = vmatpush.bf16.msra.mxu0 0
    %2066 = vmatpush.bf16.msra.mxu0 0
    %2067 = vmatpush.bf16.msra.mxu0 0
    %2068 = vmatpush.bf16.msra.mxu0 0
    %2069 = vmatpush.bf16.msra.mxu0 0
    %2070 = vmatpush.bf16.msra.mxu0 %v2058
    %2071 = vmatpush.bf16.msra.mxu0 %v2057
    %2072 = vmatmul.bf16.gmra.mxu0 %v2062
    %v2073 = vpop.f32.mrf.mxu0
    %v2074 = vadd.f32 %v2047, %v2073
    %v2075 = vpop.f32.mrf.mxu0
    %v2076 = vadd.f32 %v2047, %v2075
    %2077 = vdwg.mxu0
    %v2078 = vadd.f32 %v1450, %v2074
    %v2079 = vadd.f32 %v1451, %v2076
    %v2080 = vsel %vm200, %v2078, 0.0
    %2081 = vadd.xlane.f32.xlu0 %v2080
    %v2082 = vpop.xlane.xlu0 %2081
    %v2083 = vsel %vm200, %v2079, 0.0
    %2084 = vadd.xlane.f32.xlu0 %v2083
    %v2085 = vpop.xlane.xlu0 %2084
    %v2086 = vmul.f32 %v2082, %v213
    %v2087 = vmul.f32 %v2085, %v213
    %v2088 = vsub.f32 %v2078, %v2086
    %v2089 = vsub.f32 %v2079, %v2087
    %v2090 = vmul.f32 %v2088, %v2088
    %v2091 = vmul.f32 %v2089, %v2089
    %v2092 = vsel %vm200, %v2090, 0.0
    %2093 = vadd.xlane.f32.xlu0 %v2092
    %v2094 = vpop.xlane.xlu0 %2093
    %v2095 = vsel %vm200, %v2091, 0.0
    %2096 = vadd.xlane.f32.xlu0 %v2095
    %v2097 = vpop.xlane.xlu0 %2096
    %v2098 = vmul.f32 %v2094, %v213
    %v2099 = vmul.f32 %v2097, %v213
    %v2100 = vadd.f32 %v2098, 1e-05
    %v2101 = vadd.f32 %v2099, 1e-05
    %v2102 = vrsqrt.pop %v2100
    %v2103 = vmul.f32 %v2102, %v2100
    %v2104 = vmul.f32 %v2103, %v2102
    %v2105 = vmul.f32 0.5, %v2104
    %v2106 = vsub.f32 1.5, %v2105
    %v2107 = vmul.f32 %v2102, %v2106
    %vm2108 = vweird.f32 %v2100
    %vm2109 = vweird.f32 %v2102
    %vm2110 = vmor %vm2108, %vm2109
    %v2111 = vsel %vm2110, %v2102, %v2107
    %v2112 = vrsqrt.pop %v2101
    %v2113 = vmul.f32 %v2112, %v2101
    %v2114 = vmul.f32 %v2113, %v2112
    %v2115 = vmul.f32 0.5, %v2114
    %v2116 = vsub.f32 1.5, %v2115
    %v2117 = vmul.f32 %v2112, %v2116
    %vm2118 = vweird.f32 %v2101
    %vm2119 = vweird.f32 %v2112
    %vm2120 = vmor %vm2118, %vm2119
    %v2121 = vsel %vm2120, %v2112, %v2117
    %v2122 = vmul.f32 %v2088, %v2111
    %v2123 = vmul.f32 %v2089, %v2121
    %v2124 = vmul.f32 %v2122, %v1501
    %v2125 = vmul.f32 %v2123, %v1501
    %v2126 = vadd.f32 %v2124, %v1506
    %v2127 = vadd.f32 %v2125, %v1506
    %v2128 = vpack.c.bf16 %v2127, %v2126
    %v2130 = vsel %vm200, %v2128, 0
    %2132 = vmatpush.bf16.msra.mxu0 0
    %2133 = vmatpush.bf16.msra.mxu0 0
    %2134 = vmatpush.bf16.msra.mxu0 0
    %2135 = vmatpush.bf16.msra.mxu0 0
    %2136 = vmatpush.bf16.msra.mxu0 0
    %2137 = vmatpush.bf16.msra.mxu0 0
    %2138 = vmatpush.bf16.msra.mxu0 %v1530
    %2139 = vmatpush.bf16.msra.mxu0 %v1529
    %2140 = vmatmul.bf16.gmra.mxu0 %v2130
    %v2141 = vpop.f32.mrf.mxu0
    %v2142 = vadd.f32 %v1519, %v2141
    %v2143 = vpop.f32.mrf.mxu0
    %v2144 = vadd.f32 %v1519, %v2143
    %2145 = vdwg.mxu0
    %2148 = vrot.lane.b32.xlu0 %v2142, 96
    %v2149 = vpop.permute.xlu0 %2148
    %2150 = vrot.lane.b32.xlu0 %v2144, 96
    %v2151 = vpop.permute.xlu0 %2150
    %v2154 = vmul.f32 %v2142, 0.59460354
    %v2155 = vmul.f32 %v2144, 0.59460354
    %v2156 = vmul.f32 %v2149, 0.59460354
    %v2157 = vmul.f32 %v2151, 0.59460354
    %v2158 = vpack.c.bf16 %v2155, %v2154
    %v2159 = vpack.c.bf16 %v2157, %v2156
    %v2161 = vsel %vm200, %v2158, 0
    %v2164 = vsel %vm200, %v2159, 0
    %2166 = vmatpush.bf16.msra.mxu0 0
    %2167 = vmatpush.bf16.msra.mxu0 0
    %2168 = vmatpush.bf16.msra.mxu0 0
    %2169 = vmatpush.bf16.msra.mxu0 0
    %2170 = vmatpush.bf16.msra.mxu0 0
    %2171 = vmatpush.bf16.msra.mxu0 0
    %2172 = vmatpush.bf16.msra.mxu0 %v1578
    %2173 = vmatpush.bf16.msra.mxu0 %v1577
    %2174 = vmatmul.bf16.gmra.mxu0 %v2161
    %v2175 = vpop.f32.mrf.mxu0
    %v2176 = vadd.f32 0.0, %v2175
    %v2177 = vpop.f32.mrf.mxu0
    %v2178 = vadd.f32 0.0, %v2177
    %2179 = vmatmul.bf16.gmra.mxu0 %v2164
    %v2180 = vpop.f32.mrf.mxu0
    %v2181 = vadd.f32 0.0, %v2180
    %v2182 = vpop.f32.mrf.mxu0
    %v2183 = vadd.f32 0.0, %v2182
    %2184 = vdwg.mxu0
    %v2185 = vmul.f32 %v2154, %v2154
    %v2186 = vmul.f32 %v2155, %v2155
    %v2187 = vmul.f32 %v2156, %v2156
    %v2188 = vmul.f32 %v2157, %v2157
    %v2190 = vsel %vm200, %v2185, 0
    %v2193 = vsel %vm200, %v2186, 0
    %v2196 = vsel %vm200, %v2187, 0
    %v2199 = vsel %vm200, %v2188, 0
    %2201 = vmatpush.msra.mxu0 0.0
    %2202 = vmatpush.msra.mxu0 0.0
    %2203 = vmatpush.msra.mxu0 0.0
    %2204 = vmatpush.msra.mxu0 0.0
    %2205 = vmatpush.msra.mxu0 0.0
    %2206 = vmatpush.msra.mxu0 0.0
    %2207 = vmatpush.msra.mxu0 0.0
    %2208 = vmatpush.msra.mxu0 0.0
    %2209 = vmatpush.msra.mxu0 0.0
    %2210 = vmatpush.msra.mxu0 0.0
    %2211 = vmatpush.msra.mxu0 0.0
    %2212 = vmatpush.msra.mxu0 0.0
    %2213 = vmatpush.msra.mxu0 %v181
    %2214 = vmatpush.msra.mxu0 %v180
    %2215 = vmatpush.msra.mxu0 %v179
    %2216 = vmatpush.msra.mxu0 %v178
    %2217 = vmatmul.f32.gmra.mxu0 %v2190
    %v2218 = vpop.f32.mrf.mxu0
    %v2219 = vadd.f32 0.0, %v2218
    %2220 = vmatmul.f32.gmra.mxu0 %v2193
    %v2221 = vpop.f32.mrf.mxu0
    %v2222 = vadd.f32 0.0, %v2221
    %2223 = vmatmul.f32.gmra.mxu0 %v2196
    %v2224 = vpop.f32.mrf.mxu0
    %v2225 = vadd.f32 0.0, %v2224
    %2226 = vmatmul.f32.gmra.mxu0 %v2199
    %v2227 = vpop.f32.mrf.mxu0
    %v2228 = vadd.f32 0.0, %v2227
    %2229 = vdwg.mxu0
    %v2230 = vmul.f32 %v2219, 0.5
    %v2231 = vmul.f32 %v2222, 0.5
    %v2232 = vmul.f32 %v2225, 0.5
    %v2233 = vmul.f32 %v2228, 0.5
    %v2234 = vsel %vm404, %v2176, -inf
    %2235 = vmax.xlane.f32.xlu0 %v2234
    %v2236 = vpop.xlane.xlu0 %2235
    %v2237 = vsel %vm404, %v2178, -inf
    %2238 = vmax.xlane.f32.xlu0 %v2237
    %v2239 = vpop.xlane.xlu0 %2238
    %v2240 = vsel %vm404, %v2181, -inf
    %2241 = vmax.xlane.f32.xlu0 %v2240
    %v2242 = vpop.xlane.xlu0 %2241
    %v2243 = vsel %vm404, %v2183, -inf
    %2244 = vmax.xlane.f32.xlu0 %v2243
    %v2245 = vpop.xlane.xlu0 %2244
    %v2246 = vmax.f32 %v2242, %v2245
    %v2247 = vrot.slane %v2246, 4
    %v2248 = vmax.f32 %v2246, %v2247
    %v2249 = vrot.slane %v2248, 2
    %v2250 = vmax.f32 %v2248, %v2249
    %v2251 = vrot.slane %v2250, 1
    %v2252 = vmax.f32 %v2250, %v2251
    %2254 = vset.pattern.permute.xlu0 0
    %2255 = vperm.xlu0 %2254, %v2236
    %v2256 = vpop.permute.xlu0 %2255
    %2259 = vset.pattern.permute.xlu0 0
    %2260 = vperm.xlu0 %2259, %v2239
    %v2261 = vpop.permute.xlu0 %2260
    %2264 = vset.pattern.permute.xlu0 0
    %2265 = vperm.xlu0 %2264, %v2252
    %v2266 = vpop.permute.xlu0 %2265
    %v2268 = vsel %vm439, %v2176, -inf
    %2269 = vmax.xlane.f32.xlu0 %v2268
    %v2270 = vpop.xlane.xlu0 %2269
    %v2271 = vsel %vm439, %v2178, -inf
    %2272 = vmax.xlane.f32.xlu0 %v2271
    %v2273 = vpop.xlane.xlu0 %2272
    %v2274 = vsel %vm439, %v2181, -inf
    %2275 = vmax.xlane.f32.xlu0 %v2274
    %v2276 = vpop.xlane.xlu0 %2275
    %v2277 = vsel %vm439, %v2183, -inf
    %2278 = vmax.xlane.f32.xlu0 %v2277
    %v2279 = vpop.xlane.xlu0 %2278
    %v2280 = vmax.f32 %v2276, %v2279
    %v2281 = vrot.slane %v2280, 4
    %v2282 = vmax.f32 %v2280, %v2281
    %v2283 = vrot.slane %v2282, 2
    %v2284 = vmax.f32 %v2282, %v2283
    %v2285 = vrot.slane %v2284, 1
    %v2286 = vmax.f32 %v2284, %v2285
    %2288 = vset.pattern.permute.xlu0 0
    %2289 = vperm.xlu0 %2288, %v2270
    %v2290 = vpop.permute.xlu0 %2289
    %2293 = vset.pattern.permute.xlu0 0
    %2294 = vperm.xlu0 %2293, %v2273
    %v2295 = vpop.permute.xlu0 %2294
    %2298 = vset.pattern.permute.xlu0 0
    %2299 = vperm.xlu0 %2298, %v2286
    %v2300 = vpop.permute.xlu0 %2299
    %v2302 = vsel %vm474, %v2176, -inf
    %2303 = vmax.xlane.f32.xlu0 %v2302
    %v2304 = vpop.xlane.xlu0 %2303
    %v2305 = vsel %vm474, %v2178, -inf
    %2306 = vmax.xlane.f32.xlu0 %v2305
    %v2307 = vpop.xlane.xlu0 %2306
    %v2308 = vsel %vm474, %v2181, -inf
    %2309 = vmax.xlane.f32.xlu0 %v2308
    %v2310 = vpop.xlane.xlu0 %2309
    %v2311 = vsel %vm474, %v2183, -inf
    %2312 = vmax.xlane.f32.xlu0 %v2311
    %v2313 = vpop.xlane.xlu0 %2312
    %v2314 = vmax.f32 %v2310, %v2313
    %v2315 = vrot.slane %v2314, 4
    %v2316 = vmax.f32 %v2314, %v2315
    %v2317 = vrot.slane %v2316, 2
    %v2318 = vmax.f32 %v2316, %v2317
    %v2319 = vrot.slane %v2318, 1
    %v2320 = vmax.f32 %v2318, %v2319
    %2322 = vset.pattern.permute.xlu0 0
    %2323 = vperm.xlu0 %2322, %v2304
    %v2324 = vpop.permute.xlu0 %2323
    %2327 = vset.pattern.permute.xlu0 0
    %2328 = vperm.xlu0 %2327, %v2307
    %v2329 = vpop.permute.xlu0 %2328
    %2332 = vset.pattern.permute.xlu0 0
    %2333 = vperm.xlu0 %2332, %v2320
    %v2334 = vpop.permute.xlu0 %2333
    %v2336 = vsel %vm509, %v2176, -inf
    %2337 = vmax.xlane.f32.xlu0 %v2336
    %v2338 = vpop.xlane.xlu0 %2337
    %v2339 = vsel %vm509, %v2178, -inf
    %2340 = vmax.xlane.f32.xlu0 %v2339
    %v2341 = vpop.xlane.xlu0 %2340
    %v2342 = vsel %vm509, %v2181, -inf
    %2343 = vmax.xlane.f32.xlu0 %v2342
    %v2344 = vpop.xlane.xlu0 %2343
    %v2345 = vsel %vm509, %v2183, -inf
    %2346 = vmax.xlane.f32.xlu0 %v2345
    %v2347 = vpop.xlane.xlu0 %2346
    %v2348 = vmax.f32 %v2344, %v2347
    %v2349 = vrot.slane %v2348, 4
    %v2350 = vmax.f32 %v2348, %v2349
    %v2351 = vrot.slane %v2350, 2
    %v2352 = vmax.f32 %v2350, %v2351
    %v2353 = vrot.slane %v2352, 1
    %v2354 = vmax.f32 %v2352, %v2353
    %2356 = vset.pattern.permute.xlu0 0
    %2357 = vperm.xlu0 %2356, %v2338
    %v2358 = vpop.permute.xlu0 %2357
    %2361 = vset.pattern.permute.xlu0 0
    %2362 = vperm.xlu0 %2361, %v2341
    %v2363 = vpop.permute.xlu0 %2362
    %2366 = vset.pattern.permute.xlu0 0
    %2367 = vperm.xlu0 %2366, %v2354
    %v2368 = vpop.permute.xlu0 %2367
    %v2370 = vsel %vm404, %v2256, %v2290
    %v2371 = vsel %vm404, %v2261, %v2295
    %v2372 = vsel %vm404, %v2266, %v2300
    %v2373 = vsel %vm200, %v2370, %v2324
    %v2374 = vsel %vm200, %v2371, %v2329
    %v2375 = vsel %vm200, %v2372, %v2334
    %v2376 = vsel %vm550, %v2373, %v2358
    %v2377 = vsel %vm550, %v2374, %v2363
    %v2378 = vsel %vm550, %v2375, %v2368
    %v2379 = vsub.f32 %v2176, %v2230
    %v2380 = vsub.f32 %v2178, %v2231
    %v2381 = vsub.f32 %v2181, %v2232
    %v2382 = vsub.f32 %v2183, %v2233
    %v2383 = vsub.f32 %v2379, %v2376
    %v2384 = vsub.f32 %v2380, %v2377
    %v2385 = vsub.f32 %v2381, %v2378
    %v2386 = vsub.f32 %v2382, %v2378
    %v2387 = vmul.f32 %v2383, 1.442695
    %v2388 = vpow.pop %v2387
    %v2389 = vmul.f32 %v2384, 1.442695
    %v2390 = vpow.pop %v2389
    %v2391 = vmul.f32 %v2385, 1.442695
    %v2392 = vpow.pop %v2391
    %v2393 = vmul.f32 %v2386, 1.442695
    %v2394 = vpow.pop %v2393
    %v2395 = vadd.f32 %v2388, 0.0001
    %v2396 = vadd.f32 %v2390, 0.0001
    %v2397 = vadd.f32 %v2392, 0.0001
    %v2398 = vadd.f32 %v2394, 0.0001
    %v2399 = vmul.f32 %v2395, 0.25
    %v2400 = vmul.f32 %v2396, 0.25
    %v2401 = vmul.f32 %v2397, 0.25
    %v2402 = vmul.f32 %v2398, 0.25
    %v2403 = vsel %vm612, %v2401, 0.0
    %v2404 = vsel %vm612, %v2402, 0.0
    %v2405 = vadd.f32 %v2403, %v2404
    %v2406 = vrot.slane %v2405, 4
    %v2407 = vadd.f32 %v2405, %v2406
    %v2408 = vrot.slane %v2407, 2
    %v2409 = vadd.f32 %v2407, %v2408
    %v2410 = vrot.slane %v2409, 1
    %v2411 = vadd.f32 %v2409, %v2410
    %v2412 = vmul.f32 %v2399, %v2411
    %v2413 = vmul.f32 %v2400, %v2411
    %v2415 = vsel %vm612, %v2412, 0
    %v2418 = vsel %vm612, %v2413, 0
    %2420 = vmatpush.msra.mxu0 0.0
    %2421 = vmatpush.msra.mxu0 0.0
    %2422 = vmatpush.msra.mxu0 0.0
    %2423 = vmatpush.msra.mxu0 0.0
    %2424 = vmatpush.msra.mxu0 0.0
    %2425 = vmatpush.msra.mxu0 0.0
    %2426 = vmatpush.msra.mxu0 0.0
    %2427 = vmatpush.msra.mxu0 0.0
    %2428 = vmatpush.msra.mxu0 %v197
    %2429 = vmatpush.msra.mxu0 %v196
    %2430 = vmatpush.msra.mxu0 %v195
    %2431 = vmatpush.msra.mxu0 %v194
    %2432 = vmatpush.msra.mxu0 %v193
    %2433 = vmatpush.msra.mxu0 %v192
    %2434 = vmatpush.msra.mxu0 %v191
    %2435 = vmatpush.msra.mxu0 %v190
    %2436 = vmatmul.f32.gmra.mxu0 %v2415
    %v2437 = vpop.f32.mrf.mxu0
    %v2438 = vadd.f32 0.0, %v2437
    %2439 = vmatmul.f32.gmra.mxu0 %v2418
    %v2440 = vpop.f32.mrf.mxu0
    %v2441 = vadd.f32 0.0, %v2440
    %2442 = vdwg.mxu0
    %v2443 = vrcp.pop %v2438
    %v2444 = vrcp.pop %v2441
    %v2445 = vmul.f32 %v2399, %v2443
    %v2446 = vmul.f32 %v2400, %v2444
    %v2448 = vsel %vm612, %v2445, 0
    %v2451 = vsel %vm612, %v2446, 0
    %v2454 = vsel %vm612, %v2401, 0
    %v2457 = vsel %vm612, %v2402, 0
    %2459 = vmatpush.xpose.msra.mxu0 0.0
    %2460 = vmatpush.xpose.msra.mxu0 0.0
    %2461 = vmatpush.xpose.msra.mxu0 0.0
    %2462 = vmatpush.xpose.msra.mxu0 0.0
    %2463 = vmatpush.xpose.msra.mxu0 0.0
    %2464 = vmatpush.xpose.msra.mxu0 0.0
    %2465 = vmatpush.xpose.msra.mxu0 0.0
    %2466 = vmatpush.xpose.msra.mxu0 0.0
    %2467 = vmatpush.xpose.msra.mxu0 0.0
    %2468 = vmatpush.xpose.msra.mxu0 0.0
    %2469 = vmatpush.xpose.msra.mxu0 0.0
    %2470 = vmatpush.xpose.msra.mxu0 0.0
    %2471 = vmatpush.xpose.msra.mxu0 0.0
    %2472 = vmatpush.xpose.msra.mxu0 0.0
    %2473 = vmatpush.xpose.msra.mxu0 %v2457
    %2474 = vmatpush.xpose.msra.mxu0 %v2454
    %2475 = vmatmul.f32.gmra.mxu0 %v2448
    %v2476 = vpop.f32.mrf.mxu0
    %v2477 = vadd.f32 0.0, %v2476
    %2478 = vmatmul.f32.gmra.mxu0 %v2451
    %v2479 = vpop.f32.mrf.mxu0
    %v2480 = vadd.f32 0.0, %v2479
    %2481 = vdwg.mxu0
    %v2482 = vmul.f32 %v2477, 0.25
    %v2483 = vmul.f32 %v2480, 0.25
    %v2484 = vadd.f32 %v1235, %v2482
    %v2485 = vadd.f32 %v1236, %v2483
    %s2486 = scalar_lea.vmem %s10, 1
    %v2487 = vld [vmem:[%s2486] sm:$0x1]
    %s2488 = scalar_lea.vmem %s11, 1
    %v2489 = vld [vmem:[%s2488] sm:$0x1]
    %v2491 = vperm.slane %v2487, 0
    %v2493 = vmul.f32 %v2122, %v2491
    %v2494 = vmul.f32 %v2123, %v2491
    %v2496 = vperm.slane %v2489, 0
    %v2498 = vadd.f32 %v2493, %v2496
    %v2499 = vadd.f32 %v2494, %v2496
    %v2500 = vpack.c.bf16 %v2499, %v2498
    %s2501 = scalar_lea.vmem %s12, 16
    %v2502 = vld [vmem:[%s2501] sm:$0xf]
    %v2503 = vld [vmem:[%s2501 + $0x4] sm:$0xf]
    %v2504 = vld [vmem:[%s2501 + $0x8] sm:$0xf]
    %v2505 = vld [vmem:[%s2501 + $0xc] sm:$0xf]
    %s2506 = scalar_lea.vmem [#allocation10], 1
    %v2507 = vld [vmem:[%s2506] sm:$0x1]
    %v2509 = vperm.slane %v2507, 0
    %v2515 = vunpack.c.l.b16 %v2502
    %v2516 = vunpack.c.l.b16 %v2503
    %v2517 = vunpack.c.l.b16 %v2504
    %v2518 = vunpack.c.l.b16 %v2505
    %v2519 = vpack.c.b16 %v2516, %v2515
    %v2520 = vpack.c.b16 %v2518, %v2517
    %v2524 = vsel %vm200, %v2500, 0
    %2526 = vmatpush.bf16.msra.mxu0 0
    %2527 = vmatpush.bf16.msra.mxu0 0
    %2528 = vmatpush.bf16.msra.mxu0 0
    %2529 = vmatpush.bf16.msra.mxu0 0
    %2530 = vmatpush.bf16.msra.mxu0 0
    %2531 = vmatpush.bf16.msra.mxu0 0
    %2532 = vmatpush.bf16.msra.mxu0 %v2520
    %2533 = vmatpush.bf16.msra.mxu0 %v2519
    %2534 = vmatmul.bf16.gmra.mxu0 %v2524
    %v2535 = vpop.f32.mrf.mxu0
    %v2536 = vadd.f32 %v2509, %v2535
    %v2537 = vpop.f32.mrf.mxu0
    %v2538 = vadd.f32 %v2509, %v2537
    %2539 = vdwg.mxu0
    %v2540 = vmul.f32 %v2536, 0.5
    %v2541 = vmul.f32 %v2538, 0.5
    %v2542 = vmul.f32 %v2536, 0.70710677
    %v2543 = vmul.f32 %v2538, 0.70710677
    %v2544 = vand.u32 2147483647, %v2542
    %v2545 = vand.u32 2147483647, %v2543
    %v2546 = vmul.f32 %v2544, 0.3275911
    %v2547 = vmul.f32 %v2545, 0.3275911
    %v2548 = vadd.f32 %v2546, 1.0
    %v2549 = vadd.f32 %v2547, 1.0
    %v2550 = vrcp.pop %v2548
    %v2551 = vmul.f32 %v2548, %v2550
    %v2552 = vsub.f32 1.0, %v2551
    %v2553 = vmul.f32 %v2550, %v2552
    %v2554 = vadd.f32 %v2550, %v2553
    %vm2555 = vweird.f32 %v2548
    %vm2556 = vweird.f32 %v2550
    %vm2557 = vmor %vm2555, %vm2556
    %v2558 = vsel %vm2557, %v2550, %v2554
    %v2559 = vand.u32 2147483647, %v2548
    %vm2560 = vcmp.eq.f32.partialorder %v2559, 8.507059e+37
    %v2561 = vand.u32 %v2548, 2147483648
    %v2562 = vor.u32 1.1754944e-38, %v2561
    %v2563 = vsel %vm2560, %v2562, %v2558
    %v2564 = vmul.f32 1.0, %v2563
    %v2565 = vrcp.pop %v2549
    %v2566 = vmul.f32 %v2549, %v2565
    %v2567 = vsub.f32 1.0, %v2566
    %v2568 = vmul.f32 %v2565, %v2567
    %v2569 = vadd.f32 %v2565, %v2568
    %vm2570 = vweird.f32 %v2549
    %vm2571 = vweird.f32 %v2565
    %vm2572 = vmor %vm2570, %vm2571
    %v2573 = vsel %vm2572, %v2565, %v2569
    %v2574 = vand.u32 2147483647, %v2549
    %vm2575 = vcmp.eq.f32.partialorder %v2574, 8.507059e+37
    %v2576 = vand.u32 %v2549, 2147483648
    %v2577 = vor.u32 1.1754944e-38, %v2576
    %v2578 = vsel %vm2575, %v2577, %v2573
    %v2579 = vmul.f32 1.0, %v2578
    %v2580 = vmul.f32 %v2564, 1.0614054
    %v2581 = vmul.f32 %v2579, 1.0614054
    %v2582 = vadd.f32 %v2580, -1.4531521
    %v2583 = vadd.f32 %v2581, -1.4531521
    %v2584 = vmul.f32 %v2582, %v2564
    %v2585 = vmul.f32 %v2583, %v2579
    %v2586 = vadd.f32 %v2584, 1.4214138
    %v2587 = vadd.f32 %v2585, 1.4214138
    %v2588 = vmul.f32 %v2586, %v2564
    %v2589 = vmul.f32 %v2587, %v2579
    %v2590 = vadd.f32 %v2588, -0.28449672
    %v2591 = vadd.f32 %v2589, -0.28449672
    %v2592 = vmul.f32 %v2590, %v2564
    %v2593 = vmul.f32 %v2591, %v2579
    %v2594 = vadd.f32 %v2592, 0.2548296
    %v2595 = vadd.f32 %v2593, 0.2548296
    %v2596 = vmul.f32 %v2594, %v2564
    %v2597 = vmul.f32 %v2595, %v2579
    %v2598 = vsub.f32 0.0, %v2544
    %v2599 = vsub.f32 0.0, %v2545
    %v2600 = vmul.f32 %v2598, %v2544
    %v2601 = vmul.f32 %v2599, %v2545
    %v2602 = vmul.f32 %v2600, 1.442695
    %v2603 = vpow.pop %v2602
    %v2604 = vmul.f32 %v2601, 1.442695
    %v2605 = vpow.pop %v2604
    %v2606 = vmul.f32 %v2596, %v2603
    %v2607 = vmul.f32 %v2597, %v2605
    %v2608 = vsub.f32 1.0, %v2606
    %v2609 = vsub.f32 1.0, %v2607
    %vm2610 = vcmp.ge.f32.partialorder %v2542, 0.0
    %vm2611 = vcmp.ge.f32.partialorder %v2543, 0.0
    %v2612 = vsub.f32 0.0, %v2608
    %v2613 = vsub.f32 0.0, %v2609
    %v2614 = vsel %vm2610, %v2608, %v2612
    %v2615 = vsel %vm2611, %v2609, %v2613
    %v2616 = vadd.f32 %v2614, 1.0
    %v2617 = vadd.f32 %v2615, 1.0
    %v2618 = vmul.f32 %v2540, %v2616
    %v2619 = vmul.f32 %v2541, %v2617
    %v2620 = vpack.c.bf16 %v2619, %v2618
    %s2621 = scalar_lea.vmem %s14, 64
    %v2622 = vld [vmem:[%s2621] sm:$0xf]
    %v2623 = vld [vmem:[%s2621 + $0x4] sm:$0xf]
    %v2624 = vld [vmem:[%s2621 + $0x8] sm:$0xf]
    %v2625 = vld [vmem:[%s2621 + $0xc] sm:$0xf]
    %v2626 = vld [vmem:[%s2621 + $0x10] sm:$0xf]
    %v2627 = vld [vmem:[%s2621 + $0x14] sm:$0xf]
    %v2628 = vld [vmem:[%s2621 + $0x18] sm:$0xf]
    %v2629 = vld [vmem:[%s2621 + $0x1c] sm:$0xf]
    %v2630 = vld [vmem:[%s2621 + $0x20] sm:$0xf]
    %v2631 = vld [vmem:[%s2621 + $0x24] sm:$0xf]
    %v2632 = vld [vmem:[%s2621 + $0x28] sm:$0xf]
    %v2633 = vld [vmem:[%s2621 + $0x2c] sm:$0xf]
    %v2634 = vld [vmem:[%s2621 + $0x30] sm:$0xf]
    %v2635 = vld [vmem:[%s2621 + $0x34] sm:$0xf]
    %v2636 = vld [vmem:[%s2621 + $0x38] sm:$0xf]
    %v2637 = vld [vmem:[%s2621 + $0x3c] sm:$0xf]
    %s2638 = scalar_lea.vmem [#allocation11], 1
    %v2639 = vld [vmem:[%s2638] sm:$0x1]
    %v2641 = vperm.slane %v2639, 0
    %v2659 = vunpack.c.l.b16 %v2622
    %v2660 = vunpack.c.l.b16 %v2623
    %v2661 = vunpack.c.l.b16 %v2624
    %v2662 = vunpack.c.l.b16 %v2625
    %v2663 = vunpack.c.l.b16 %v2626
    %v2664 = vunpack.c.l.b16 %v2627
    %v2665 = vunpack.c.l.b16 %v2628
    %v2666 = vunpack.c.l.b16 %v2629
    %v2667 = vunpack.c.l.b16 %v2630
    %v2668 = vunpack.c.l.b16 %v2631
    %v2669 = vunpack.c.l.b16 %v2632
    %v2670 = vunpack.c.l.b16 %v2633
    %v2671 = vunpack.c.l.b16 %v2634
    %v2672 = vunpack.c.l.b16 %v2635
    %v2673 = vunpack.c.l.b16 %v2636
    %v2674 = vunpack.c.l.b16 %v2637
    %v2675 = vpack.c.b16 %v2660, %v2659
    %v2676 = vpack.c.b16 %v2662, %v2661
    %v2677 = vpack.c.b16 %v2664, %v2663
    %v2678 = vpack.c.b16 %v2666, %v2665
    %v2679 = vpack.c.b16 %v2668, %v2667
    %v2680 = vpack.c.b16 %v2670, %v2669
    %v2681 = vpack.c.b16 %v2672, %v2671
    %v2682 = vpack.c.b16 %v2674, %v2673
    %2691 = vmatpush.bf16.msra.mxu0 %v2682
    %2692 = vmatpush.bf16.msra.mxu0 %v2681
    %2693 = vmatpush.bf16.msra.mxu0 %v2680
    %2694 = vmatpush.bf16.msra.mxu0 %v2679
    %2695 = vmatpush.bf16.msra.mxu0 %v2678
    %2696 = vmatpush.bf16.msra.mxu0 %v2677
    %2697 = vmatpush.bf16.msra.mxu0 %v2676
    %2698 = vmatpush.bf16.msra.mxu0 %v2675
    %2699 = vmatmul.bf16.gmra.mxu0 %v2620
    %v2700 = vpop.f32.mrf.mxu0
    %v2701 = vadd.f32 %v2641, %v2700
    %v2702 = vpop.f32.mrf.mxu0
    %v2703 = vadd.f32 %v2641, %v2702
    %2704 = vdwg.mxu0
    %v2705 = vadd.f32 %v2078, %v2701
    %v2706 = vadd.f32 %v2079, %v2703
    %2707 = vst.msk [vmem:[#allocation14] sm:$0xff] %vm200, %v2705
    %2708 = vst.msk [vmem:[#allocation14 + $0x8] sm:$0xff] %vm200, %v2706
    %v2709 = vmul.f32 %v2484, 0.5
    %v2710 = vmul.f32 %v2485, 0.5
    %2711 = vst.msk [vmem:[#allocation15] sm:$0xff] %vm404, %v2709
    %2712 = vst.msk [vmem:[#allocation15 + $0x8] sm:$0xff] %vm404, %v2710
    // Predicated region
    $region106: #{_lambda_.1} parent=1 // pred_check
      _
    $region107: #{_lambda_.1} parent=1 // pred_check_branch
      %2714 = sbr.rel (0) target = $region109
    $region108: #{_lambda_.1} parent=1 // pred_region
      %2716 = vsyncadd [#allocation4], 0
      %s2717 = sshll.u32 [#allocation14], 4
      %s2718 = int_to_ptr.vmem [resolvable:$true] %s2717
      %s2719 = sshll.u32 %s19, 4
      %s2720 = int_to_ptr.hbm [resolvable:$true] %s2719
      %2725 = dma.vmem_to_hbm [thread:$0]  %s2718, 256, %s2720, [#allocation4], 128, 128, 8
    $region109: #{_lambda_.1} parent=1 // pred_fallthru
      _
    // Predicated region
    $region110: #{_lambda_.1} parent=1 // pred_check
      _
    $region111: #{_lambda_.1} parent=1 // pred_check_branch
      %2727 = sbr.rel (0) target = $region113
    $region112: #{_lambda_.1} parent=1 // pred_region
      %2729 = vsyncadd [#allocation16], 0
      %s2730 = sshll.u32 [#allocation15], 4
      %s2731 = int_to_ptr.vmem [resolvable:$true] %s2730
      %s2732 = sshll.u32 %s20, 4
      %s2733 = int_to_ptr.hbm [resolvable:$true] %s2732
      %2738 = dma.vmem_to_hbm [thread:$0]  %s2731, 256, %s2733, [#allocation16], 128, 128, 8
    $region113: #{_lambda_.1} parent=1 // pred_fallthru
      _
    // Predicated region
    $region114: #{_lambda_.1} parent=1 // pred_check
      _
    $region115: #{_lambda_.1} parent=1 // pred_check_branch
      %2740 = sbr.rel (0) target = $region117
    $region116: #{_lambda_.1} parent=1 // pred_region
      %2742 = dma.done [#allocation4], 256
    $region117: #{_lambda_.1} parent=1 // pred_fallthru
      _
    // Predicated region
    $region118: #{_lambda_.1} parent=1 // pred_check
      _
    $region119: #{_lambda_.1} parent=1 // pred_check_branch
      %2744 = sbr.rel (0) target = $region121
    $region120: #{_lambda_.1} parent=1 // pred_region
      %2746 = dma.done [#allocation16], 256
    $region121: #{_lambda_.1} parent=1 // pred_fallthru
      _
    %2747 = vsyncpa [#allocation3], 1
    %2748 = vsyncpa [#allocation6], 1
    %2749 = vsyncpa [#allocation9], 1
    %2750 = vsyncpa [#allocation12], 1
    %2751 = vsyncpa [#allocation4], 1
    %2752 = vsyncpa [#allocation16], 1

</llo_original>
